<compile_context>
chip_gen: v5e
topology: v5e:2x2
jax: 0.10.0
libtpu: 0.0.40
codegen_flags: <defaults>
</compile_context>

<pallas_src>
import math

import jax
import jax.numpy as jnp
from jax import lax
from jax.experimental import pallas as pl
from jax.experimental.pallas import tpu as pltpu

OP_NAMES = ('none', 'skip_connect', 'nor_conv_1x1', 'nor_conv_3x3', 'avg_pool_3x3')
NUM_OPS = len(OP_NAMES)
MAX_NODES = 4
BN_EPS = 1e-5
BN_SCALE = 1.0 / math.sqrt(1.0 + BN_EPS)
TILE_R = 256          # rows per grid step (multiple of 8); working set is tiny at C=16
# TODO(synk): train-mode BatchNorm (batch statistics) is not implemented; eval-mode
#             semantics with freshly-initialized running stats are used instead.


def _edge_keys(max_nodes):
    keys = []
    for i in range(1, max_nodes):
        for j in range(i):
            keys.append('{:}<-{:}'.format(i, j))
    return sorted(keys)


EDGE_KEYS = _edge_keys(MAX_NODES)
EDGE2INDEX = {k: i for i, k in enumerate(EDGE_KEYS)}
NUM_EDGES = len(EDGE_KEYS)


def _round_up(x, m):
    return (x + m - 1) // m * m


# ----------------------------- Pallas kernel -------------------------------
def _node_edges_kernel(x_ref, p_ref, inv_ref, wrelu_ref, wskip_ref, wpool_ref, o_ref):
    """All E edges fed by one source node, for one tile of rows.

    x_ref    : (TR, C)      source-node activations
    p_ref    : (TR, 9*C)    zero-padded 3x3 im2col patches (tap-major on lanes)
    inv_ref  : (TR, 1)      1 / valid-neighbour-count (avg pool, count_include_pad=False)
    wrelu_ref: (9*C, E*C)   gated+BN-scaled 3x3 conv weights, 1x1 conv folded into
                            the centre-tap rows (centre tap of patches == x)
    wskip_ref: (C, E*C)     gated identity (skip_connect)
    wpool_ref: (9*C, E*C)   gated tap-selection matrix (sum over the 9 taps)
    o_ref    : (TR, E*C)    per-edge mixed-op outputs, edge-major on lanes
    """
    p = p_ref[...]
    # nor_conv_3x3 + nor_conv_1x1 (ReLU -> conv -> BN), fused into one K=9C matmul.
    acc = jnp.dot(jnp.maximum(p, 0.0), wrelu_ref[...],
                  preferred_element_type=jnp.float32)
    # avg_pool_3x3: gated tap-sum via matmul, then per-pixel 1/count broadcast.
    acc = acc + jnp.dot(p, wpool_ref[...],
                        preferred_element_type=jnp.float32) * inv_ref[...]
    # skip_connect (Identity, stride=1, C_in==C_out), gated.
    acc = acc + jnp.dot(x_ref[...], wskip_ref[...],
                        preferred_element_type=jnp.float32)
    # OP_NAMES[0] == 'none' (Zero) contributes exactly zero -> omitted.
    o_ref[...] = acc.astype(o_ref.dtype)


# ------------------------------ JAX glue ------------------------------------
def _im2col_3x3(x_nhwc):
    """(N,H,W,C) -> (N*H*W, 9*C) with column order tap*C + c, tap = kh*3 + kw."""
    N, H, W, C = x_nhwc.shape
    xp = jnp.pad(x_nhwc, ((0, 0), (1, 1), (1, 1), (0, 0)))
    taps = [xp[:, kh:kh + H, kw:kw + W, :] for kh in range(3) for kw in range(3)]
    return jnp.concatenate(taps, axis=-1).reshape(N * H * W, 9 * C)


def _pool_inv_count(N, H, W, dtype):
    """(R, 1) map of 1 / (#valid 3x3 neighbours), count_include_pad=False."""
    h = jnp.arange(H)
    w = jnp.arange(W)
    rows = 3.0 - (h == 0).astype(dtype) - (h == H - 1).astype(dtype)
    cols = 3.0 - (w == 0).astype(dtype) - (w == W - 1).astype(dtype)
    cnt = rows[:, None] * cols[None, :]                      # (H, W)
    inv = jnp.broadcast_to((1.0 / cnt)[None], (N, H, W))
    return inv.reshape(N * H * W, 1).astype(dtype)


def node_mixed_edges(x_nhwc, inv_r1, aw_e, w1_e, w3_e, tile_r=TILE_R):
    """Compute the mixed-op output of every edge whose source is `x_nhwc`.

    aw_e : (E, NUM_OPS)  architecture weights of the E edges
    w1_e : (E, C, C)     1x1 conv weights, (in, out)
    w3_e : (E, 9, C, C)  3x3 conv weights, (tap, in, out), tap = kh*3 + kw
    Returns (N, H, W, E, C).
    """
    N, H, W, C = x_nhwc.shape
    E = aw_e.shape[0]
    EC = E * C
    R = N * H * W

    # Gating matches `layer(x) * w if w > 0.01 else 0`.
    g = jnp.where(aw_e > 0.01, aw_e, 0.0)                     # (E, NUM_OPS)

    # Fold gates + BN scale into the matmul weights (trace-time, tiny arrays).
    w3s = (w3_e * (g[:, 3] * BN_SCALE)[:, None, None, None]).reshape(E, 9 * C, C)
    w1s = w1_e * (g[:, 2] * BN_SCALE)[:, None, None]
    w_relu = w3s.at[:, 4 * C:5 * C, :].add(w1s)               # 1x1 conv rides centre tap
    w_relu = jnp.transpose(w_relu, (1, 0, 2)).reshape(9 * C, EC)

    eye = jnp.eye(C, dtype=jnp.float32)
    w_skip = g[:, 1][:, None, None] * eye                     # (E, C, C)
    w_skip = jnp.transpose(w_skip, (1, 0, 2)).reshape(C, EC)

    pool_sel = jnp.tile(eye, (9, 1))                          # (9C, C) tap-sum selector
    w_pool = g[:, 4][:, None, None] * pool_sel[None]          # (E, 9C, C)
    w_pool = jnp.transpose(w_pool, (1, 0, 2)).reshape(9 * C, EC)

    x2d = x_nhwc.reshape(R, C)
    patches = _im2col_3x3(x_nhwc)                             # (R, 9C) — once per source node
    inv = inv_r1

    # Row tiling (sublane multiple of 8); pad the ragged tail with zeros.
    tile_r = min(tile_r, _round_up(R, 8))
    r_pad = _round_up(R, tile_r)
    if r_pad != R:
        pad = r_pad - R
        x2d = jnp.pad(x2d, ((0, pad), (0, 0)))
        patches = jnp.pad(patches, ((0, pad), (0, 0)))
        inv = jnp.pad(inv, ((0, pad), (0, 0)))

    out2d = pl.pallas_call(
        _node_edges_kernel,
        out_shape=jax.ShapeDtypeStruct((r_pad, EC), jnp.float32),
        grid=(r_pad // tile_r,),
        in_specs=[
            pl.BlockSpec((tile_r, C), lambda r: (r, 0)),        # x
            pl.BlockSpec((tile_r, 9 * C), lambda r: (r, 0)),    # im2col patches
            pl.BlockSpec((tile_r, 1), lambda r: (r, 0)),        # 1/count column
            pl.BlockSpec((9 * C, EC), lambda r: (0, 0)),        # fused conv weights
            pl.BlockSpec((C, EC), lambda r: (0, 0)),            # skip weights
            pl.BlockSpec((9 * C, EC), lambda r: (0, 0)),        # pool selector
        ],
        out_specs=pl.BlockSpec((tile_r, EC), lambda r: (r, 0)),
        compiler_params=pltpu.CompilerParams(
            dimension_semantics=("parallel",)),
    )(x2d, patches, inv, w_relu, w_skip, w_pool)

    return out2d[:R].reshape(N, H, W, E, C)


@jax.jit
def nas201_cell_forward(inputs_nchw, weightss, w1_k, w3_k):
    """Matches NAS201SearchCell.forward(inputs, weightss). Inputs are NCHW."""
    x0 = jnp.transpose(inputs_nchw, (0, 2, 3, 1)).astype(jnp.float32)  # NCHW -> NHWC
    N, H, W, C = x0.shape
    inv = _pool_inv_count(N, H, W, jnp.float32)

    nodes = [x0]
    partials = [None] * MAX_NODES
    for s in range(MAX_NODES - 1):                 # one pallas_call per source node
        targets = list(range(s + 1, MAX_NODES))
        idx = jnp.asarray([EDGE2INDEX['{:}<-{:}'.format(t, s)] for t in targets])
        y = node_mixed_edges(nodes[s], inv, weightss[idx], w1_k[idx], w3_k[idx])
        for ei, t in enumerate(targets):
            contrib = y[..., ei, :]
            partials[t] = contrib if partials[t] is None else partials[t] + contrib
        nodes.append(partials[s + 1])              # node s+1 is now complete
    return jnp.transpose(nodes[-1], (0, 3, 1, 2))  # back to NCHW


# ------------------------- pure-JAX reference -------------------------------
def _ref_edge(x_nchw, aw, w1_oihw, w3_oihw):
    def gate(k):
        return jnp.where(aw[k] > 0.01, aw[k], 0.0)

    dn = ('NCHW', 'OIHW', 'NCHW')
    out = gate(1) * x_nchw
    c1 = lax.conv_general_dilated(jnp.maximum(x_nchw, 0.0), w1_oihw,
                                  (1, 1), [(0, 0), (0, 0)], dimension_numbers=dn)
    out = out + gate(2) * (c1 * BN_SCALE)
    c3 = lax.conv_general_dilated(jnp.maximum(x_nchw, 0.0), w3_oihw,
                                  (1, 1), [(1, 1), (1, 1)], dimension_numbers=dn)
    out = out + gate(3) * (c3 * BN_SCALE)
    sums = lax.reduce_window(x_nchw, 0.0, lax.add, (1, 1, 3, 3), (1, 1, 1, 1),
                             [(0, 0), (0, 0), (1, 1), (1, 1)])
    cnts = lax.reduce_window(jnp.ones_like(x_nchw), 0.0, lax.add, (1, 1, 3, 3),
                             (1, 1, 1, 1), [(0, 0), (0, 0), (1, 1), (1, 1)])
    out = out + gate(4) * (sums / cnts)
    return out


def ref_forward(inputs_nchw, weightss, w1_oihw, w3_oihw, max_nodes=MAX_NODES):
    nodes = [inputs_nchw.astype(jnp.float32)]
    for i in range(1, max_nodes):
        acc = None
        for j in range(i):
            e = EDGE2INDEX['{:}<-{:}'.format(i, j)]
            y = _ref_edge(nodes[j], weightss[e], w1_oihw[e], w3_oihw[e])
            acc = y if acc is None else acc + y
        nodes.append(acc)
    return nodes[-1]


if __name__ == "__main__":
    key = jax.random.PRNGKey(0)
    N, C, H, W = 2, 16, 16, 16
    k_x, k_w1, k_w3, k_a = jax.random.split(key, 4)

    x = jax.random.normal(k_x, (N, C, H, W), jnp.float32)
    # conv parameters in the PyTorch (O, I, kh, kw) layout, deterministic init
    w1_oihw = 0.1 * jax.random.normal(k_w1, (NUM_EDGES, C, C, 1, 1), jnp.float32)
    w3_oihw = 0.1 * jax.random.normal(k_w3, (NUM_EDGES, C, C, 3, 3), jnp.float32)
    # architecture weights ("weightss"): one softmax distribution per edge
    weightss = jax.nn.softmax(
        jax.random.normal(k_a, (NUM_EDGES, NUM_OPS), jnp.float32), axis=-1)

    # kernel-side weight layouts: 1x1 -> (I, O); 3x3 -> (tap, I, O), tap = kh*3 + kw
    w1_k = jnp.transpose(w1_oihw[..., 0, 0], (0, 2, 1))
    w3_k = jnp.transpose(w3_oihw, (0, 3, 4, 2, 1)).reshape(NUM_EDGES, 9, C, C)

    out = jax.block_until_ready(nas201_cell_forward(x, weightss, w1_k, w3_k))

    ref = ref_forward(x, weightss, w1_oihw, w3_oihw)
    max_err = float(jnp.max(jnp.abs(out - ref)))
    # Tolerance tightened vs. the previous 2e-2; kept above bf16-pass noise since the
    # XLA conv reference and the MXU matmul path may use different default precisions.
    if not bool(jnp.allclose(out, ref, rtol=1e-2, atol=1e-2)):
        raise AssertionError(f"Pallas output mismatch vs reference, max abs err = {max_err}")
    print("KERNEL_OK")
</pallas_src>

<mosaic_0001>
module attributes {stable_mosaic.version = 11 : i64} {
  func.func @_node_edges_kernel(%arg0: i32, %arg1: memref<256x16xf32, #tpu.memory_space<vmem>>, %arg2: memref<256x144xf32, #tpu.memory_space<vmem>>, %arg3: memref<256x1xf32, #tpu.memory_space<vmem>>, %arg4: memref<144x48xf32, #tpu.memory_space<vmem>>, %arg5: memref<16x48xf32, #tpu.memory_space<vmem>>, %arg6: memref<144x48xf32, #tpu.memory_space<vmem>>, %arg7: memref<256x48xf32, #tpu.memory_space<vmem>>) attributes {dimension_semantics = [#tpu.dimension_semantics<parallel>], iteration_bounds = array<i64: 2>, scalar_prefetch = 0 : i64, scratch_operands = 0 : i64, tpu.core_type = #tpu.core_type<tc>, window_params = [{transform_indices = @transform_0, window_bounds = array<i64: 256, 16>}, {transform_indices = @transform_1, window_bounds = array<i64: 256, 144>}, {transform_indices = @transform_2, window_bounds = array<i64: 256, 1>}, {pipeline_mode = #tpu.pipeline_mode<synchronous>, transform_indices = @transform_3, window_bounds = array<i64: 144, 48>}, {pipeline_mode = #tpu.pipeline_mode<synchronous>, transform_indices = @transform_4, window_bounds = array<i64: 16, 48>}, {pipeline_mode = #tpu.pipeline_mode<synchronous>, transform_indices = @transform_5, window_bounds = array<i64: 144, 48>}, {transform_indices = @transform_6, window_bounds = array<i64: 256, 48>}]} {
    %c0 = arith.constant 0 : index
    %c0_0 = arith.constant 0 : index
    %0 = vector.load %arg2[%c0, %c0_0] : memref<256x144xf32, #tpu.memory_space<vmem>>, vector<256x144xf32>
    %cst = arith.constant 0.000000e+00 : f32
    %1 = vector.broadcast %cst : f32 to vector<256x144xf32>
    %2 = arith.maximumf %0, %1 : vector<256x144xf32>
    %c0_1 = arith.constant 0 : index
    %c0_2 = arith.constant 0 : index
    %3 = vector.load %arg4[%c0_1, %c0_2] : memref<144x48xf32, #tpu.memory_space<vmem>>, vector<144x48xf32>
    %cst_3 = arith.constant dense<0.000000e+00> : vector<256x48xf32>
    %4 = tpu.matmul %2, %3, %cst_3 {dimension_numbers = #tpu.dot_dimension_numbers<[1], [0], [0], [1], [0, 0, 1, 1], [], []>} : vector<256x144xf32>, vector<144x48xf32>, vector<256x48xf32> -> vector<256x48xf32>
    %c0_4 = arith.constant 0 : index
    %c0_5 = arith.constant 0 : index
    %5 = vector.load %arg6[%c0_4, %c0_5] : memref<144x48xf32, #tpu.memory_space<vmem>>, vector<144x48xf32>
    %cst_6 = arith.constant dense<0.000000e+00> : vector<256x48xf32>
    %6 = tpu.matmul %0, %5, %cst_6 {dimension_numbers = #tpu.dot_dimension_numbers<[1], [0], [0], [1], [0, 0, 1, 1], [], []>} : vector<256x144xf32>, vector<144x48xf32>, vector<256x48xf32> -> vector<256x48xf32>
    %c0_7 = arith.constant 0 : index
    %c0_8 = arith.constant 0 : index
    %7 = vector.load %arg3[%c0_7, %c0_8] : memref<256x1xf32, #tpu.memory_space<vmem>>, vector<256x1xf32>
    %8 = vector.broadcast %7 : vector<256x1xf32> to vector<256x48xf32>
    %9 = arith.mulf %6, %8 : vector<256x48xf32>
    %10 = arith.addf %4, %9 : vector<256x48xf32>
    %c0_9 = arith.constant 0 : index
    %c0_10 = arith.constant 0 : index
    %11 = vector.load %arg1[%c0_9, %c0_10] : memref<256x16xf32, #tpu.memory_space<vmem>>, vector<256x16xf32>
    %c0_11 = arith.constant 0 : index
    %c0_12 = arith.constant 0 : index
    %12 = vector.load %arg5[%c0_11, %c0_12] : memref<16x48xf32, #tpu.memory_space<vmem>>, vector<16x48xf32>
    %cst_13 = arith.constant dense<0.000000e+00> : vector<256x48xf32>
    %13 = tpu.matmul %11, %12, %cst_13 {dimension_numbers = #tpu.dot_dimension_numbers<[1], [0], [0], [1], [0, 0, 1, 1], [], []>} : vector<256x16xf32>, vector<16x48xf32>, vector<256x48xf32> -> vector<256x48xf32>
    %14 = arith.addf %10, %13 : vector<256x48xf32>
    %c0_14 = arith.constant 0 : index
    %c0_15 = arith.constant 0 : index
    %15 = vector.load %arg7[%c0_14, %c0_15] : memref<256x48xf32, #tpu.memory_space<vmem>>, vector<256x48xf32>
    tpu.vector_store %arg7[%c0_14, %c0_15], %14 {strides = array<i32>} : memref<256x48xf32, #tpu.memory_space<vmem>>, vector<256x48xf32>,
    return
  }
  func.func @transform_0(%arg0: i32) -> (i32, i32) {
    %c0_i32 = arith.constant 0 : i32
    %c0_i32_0 = arith.constant 0 : i32
    return %arg0, %c0_i32 : i32, i32
  }
  func.func @transform_1(%arg0: i32) -> (i32, i32) {
    %c0_i32 = arith.constant 0 : i32
    %c0_i32_0 = arith.constant 0 : i32
    return %arg0, %c0_i32 : i32, i32
  }
  func.func @transform_2(%arg0: i32) -> (i32, i32) {
    %c0_i32 = arith.constant 0 : i32
    %c0_i32_0 = arith.constant 0 : i32
    return %arg0, %c0_i32 : i32, i32
  }
  func.func @transform_3(%arg0: i32) -> (i32, i32) {
    %c0_i32 = arith.constant 0 : i32
    %c0_i32_0 = arith.constant 0 : i32
    %c0_i32_1 = arith.constant 0 : i32
    return %c0_i32, %c0_i32_0 : i32, i32
  }
  func.func @transform_4(%arg0: i32) -> (i32, i32) {
    %c0_i32 = arith.constant 0 : i32
    %c0_i32_0 = arith.constant 0 : i32
    %c0_i32_1 = arith.constant 0 : i32
    return %c0_i32, %c0_i32_0 : i32, i32
  }
  func.func @transform_5(%arg0: i32) -> (i32, i32) {
    %c0_i32 = arith.constant 0 : i32
    %c0_i32_0 = arith.constant 0 : i32
    %c0_i32_1 = arith.constant 0 : i32
    return %c0_i32, %c0_i32_0 : i32, i32
  }
  func.func @transform_6(%arg0: i32) -> (i32, i32) {
    %c0_i32 = arith.constant 0 : i32
    %c0_i32_0 = arith.constant 0 : i32
    return %arg0, %c0_i32 : i32, i32
  }
}

module attributes {stable_mosaic.version = 11 : i64} {
  func.func @_node_edges_kernel(%arg0: i32, %arg1: memref<256x16xf32, #tpu.memory_space<vmem>>, %arg2: memref<256x144xf32, #tpu.memory_space<vmem>>, %arg3: memref<256x1xf32, #tpu.memory_space<vmem>>, %arg4: memref<144x32xf32, #tpu.memory_space<vmem>>, %arg5: memref<16x32xf32, #tpu.memory_space<vmem>>, %arg6: memref<144x32xf32, #tpu.memory_space<vmem>>, %arg7: memref<256x32xf32, #tpu.memory_space<vmem>>) attributes {dimension_semantics = [#tpu.dimension_semantics<parallel>], iteration_bounds = array<i64: 2>, scalar_prefetch = 0 : i64, scratch_operands = 0 : i64, tpu.core_type = #tpu.core_type<tc>, window_params = [{transform_indices = @transform_0, window_bounds = array<i64: 256, 16>}, {transform_indices = @transform_1, window_bounds = array<i64: 256, 144>}, {transform_indices = @transform_2, window_bounds = array<i64: 256, 1>}, {pipeline_mode = #tpu.pipeline_mode<synchronous>, transform_indices = @transform_3, window_bounds = array<i64: 144, 32>}, {pipeline_mode = #tpu.pipeline_mode<synchronous>, transform_indices = @transform_4, window_bounds = array<i64: 16, 32>}, {pipeline_mode = #tpu.pipeline_mode<synchronous>, transform_indices = @transform_5, window_bounds = array<i64: 144, 32>}, {transform_indices = @transform_6, window_bounds = array<i64: 256, 32>}]} {
    %c0 = arith.constant 0 : index
    %c0_0 = arith.constant 0 : index
    %0 = vector.load %arg2[%c0, %c0_0] : memref<256x144xf32, #tpu.memory_space<vmem>>, vector<256x144xf32>
    %cst = arith.constant 0.000000e+00 : f32
    %1 = vector.broadcast %cst : f32 to vector<256x144xf32>
    %2 = arith.maximumf %0, %1 : vector<256x144xf32>
    %c0_1 = arith.constant 0 : index
    %c0_2 = arith.constant 0 : index
    %3 = vector.load %arg4[%c0_1, %c0_2] : memref<144x32xf32, #tpu.memory_space<vmem>>, vector<144x32xf32>
    %cst_3 = arith.constant dense<0.000000e+00> : vector<256x32xf32>
    %4 = tpu.matmul %2, %3, %cst_3 {dimension_numbers = #tpu.dot_dimension_numbers<[1], [0], [0], [1], [0, 0, 1, 1], [], []>} : vector<256x144xf32>, vector<144x32xf32>, vector<256x32xf32> -> vector<256x32xf32>
    %c0_4 = arith.constant 0 : index
    %c0_5 = arith.constant 0 : index
    %5 = vector.load %arg6[%c0_4, %c0_5] : memref<144x32xf32, #tpu.memory_space<vmem>>, vector<144x32xf32>
    %cst_6 = arith.constant dense<0.000000e+00> : vector<256x32xf32>
    %6 = tpu.matmul %0, %5, %cst_6 {dimension_numbers = #tpu.dot_dimension_numbers<[1], [0], [0], [1], [0, 0, 1, 1], [], []>} : vector<256x144xf32>, vector<144x32xf32>, vector<256x32xf32> -> vector<256x32xf32>
    %c0_7 = arith.constant 0 : index
    %c0_8 = arith.constant 0 : index
    %7 = vector.load %arg3[%c0_7, %c0_8] : memref<256x1xf32, #tpu.memory_space<vmem>>, vector<256x1xf32>
    %8 = vector.broadcast %7 : vector<256x1xf32> to vector<256x32xf32>
    %9 = arith.mulf %6, %8 : vector<256x32xf32>
    %10 = arith.addf %4, %9 : vector<256x32xf32>
    %c0_9 = arith.constant 0 : index
    %c0_10 = arith.constant 0 : index
    %11 = vector.load %arg1[%c0_9, %c0_10] : memref<256x16xf32, #tpu.memory_space<vmem>>, vector<256x16xf32>
    %c0_11 = arith.constant 0 : index
    %c0_12 = arith.constant 0 : index
    %12 = vector.load %arg5[%c0_11, %c0_12] : memref<16x32xf32, #tpu.memory_space<vmem>>, vector<16x32xf32>
    %cst_13 = arith.constant dense<0.000000e+00> : vector<256x32xf32>
    %13 = tpu.matmul %11, %12, %cst_13 {dimension_numbers = #tpu.dot_dimension_numbers<[1], [0], [0], [1], [0, 0, 1, 1], [], []>} : vector<256x16xf32>, vector<16x32xf32>, vector<256x32xf32> -> vector<256x32xf32>
    %14 = arith.addf %10, %13 : vector<256x32xf32>
    %c0_14 = arith.constant 0 : index
    %c0_15 = arith.constant 0 : index
    %15 = vector.load %arg7[%c0_14, %c0_15] : memref<256x32xf32, #tpu.memory_space<vmem>>, vector<256x32xf32>
    tpu.vector_store %arg7[%c0_14, %c0_15], %14 {strides = array<i32>} : memref<256x32xf32, #tpu.memory_space<vmem>>, vector<256x32xf32>,
    return
  }
  func.func @transform_0(%arg0: i32) -> (i32, i32) {
    %c0_i32 = arith.constant 0 : i32
    %c0_i32_0 = arith.constant 0 : i32
    return %arg0, %c0_i32 : i32, i32
  }
  func.func @transform_1(%arg0: i32) -> (i32, i32) {
    %c0_i32 = arith.constant 0 : i32
    %c0_i32_0 = arith.constant 0 : i32
    return %arg0, %c0_i32 : i32, i32
  }
  func.func @transform_2(%arg0: i32) -> (i32, i32) {
    %c0_i32 = arith.constant 0 : i32
    %c0_i32_0 = arith.constant 0 : i32
    return %arg0, %c0_i32 : i32, i32
  }
  func.func @transform_3(%arg0: i32) -> (i32, i32) {
    %c0_i32 = arith.constant 0 : i32
    %c0_i32_0 = arith.constant 0 : i32
    %c0_i32_1 = arith.constant 0 : i32
    return %c0_i32, %c0_i32_0 : i32, i32
  }
  func.func @transform_4(%arg0: i32) -> (i32, i32) {
    %c0_i32 = arith.constant 0 : i32
    %c0_i32_0 = arith.constant 0 : i32
    %c0_i32_1 = arith.constant 0 : i32
    return %c0_i32, %c0_i32_0 : i32, i32
  }
  func.func @transform_5(%arg0: i32) -> (i32, i32) {
    %c0_i32 = arith.constant 0 : i32
    %c0_i32_0 = arith.constant 0 : i32
    %c0_i32_1 = arith.constant 0 : i32
    return %c0_i32, %c0_i32_0 : i32, i32
  }
  func.func @transform_6(%arg0: i32) -> (i32, i32) {
    %c0_i32 = arith.constant 0 : i32
    %c0_i32_0 = arith.constant 0 : i32
    return %arg0, %c0_i32 : i32, i32
  }
}

module attributes {stable_mosaic.version = 11 : i64} {
  func.func @_node_edges_kernel(%arg0: i32, %arg1: memref<256x16xf32, #tpu.memory_space<vmem>>, %arg2: memref<256x144xf32, #tpu.memory_space<vmem>>, %arg3: memref<256x1xf32, #tpu.memory_space<vmem>>, %arg4: memref<144x16xf32, #tpu.memory_space<vmem>>, %arg5: memref<16x16xf32, #tpu.memory_space<vmem>>, %arg6: memref<144x16xf32, #tpu.memory_space<vmem>>, %arg7: memref<256x16xf32, #tpu.memory_space<vmem>>) attributes {dimension_semantics = [#tpu.dimension_semantics<parallel>], iteration_bounds = array<i64: 2>, scalar_prefetch = 0 : i64, scratch_operands = 0 : i64, tpu.core_type = #tpu.core_type<tc>, window_params = [{transform_indices = @transform_0, window_bounds = array<i64: 256, 16>}, {transform_indices = @transform_1, window_bounds = array<i64: 256, 144>}, {transform_indices = @transform_2, window_bounds = array<i64: 256, 1>}, {pipeline_mode = #tpu.pipeline_mode<synchronous>, transform_indices = @transform_3, window_bounds = array<i64: 144, 16>}, {pipeline_mode = #tpu.pipeline_mode<synchronous>, transform_indices = @transform_4, window_bounds = array<i64: 16, 16>}, {pipeline_mode = #tpu.pipeline_mode<synchronous>, transform_indices = @transform_5, window_bounds = array<i64: 144, 16>}, {transform_indices = @transform_6, window_bounds = array<i64: 256, 16>}]} {
    %c0 = arith.constant 0 : index
    %c0_0 = arith.constant 0 : index
    %0 = vector.load %arg2[%c0, %c0_0] : memref<256x144xf32, #tpu.memory_space<vmem>>, vector<256x144xf32>
    %cst = arith.constant 0.000000e+00 : f32
    %1 = vector.broadcast %cst : f32 to vector<256x144xf32>
    %2 = arith.maximumf %0, %1 : vector<256x144xf32>
    %c0_1 = arith.constant 0 : index
    %c0_2 = arith.constant 0 : index
    %3 = vector.load %arg4[%c0_1, %c0_2] : memref<144x16xf32, #tpu.memory_space<vmem>>, vector<144x16xf32>
    %cst_3 = arith.constant dense<0.000000e+00> : vector<256x16xf32>
    %4 = tpu.matmul %2, %3, %cst_3 {dimension_numbers = #tpu.dot_dimension_numbers<[1], [0], [0], [1], [0, 0, 1, 1], [], []>} : vector<256x144xf32>, vector<144x16xf32>, vector<256x16xf32> -> vector<256x16xf32>
    %c0_4 = arith.constant 0 : index
    %c0_5 = arith.constant 0 : index
    %5 = vector.load %arg6[%c0_4, %c0_5] : memref<144x16xf32, #tpu.memory_space<vmem>>, vector<144x16xf32>
    %cst_6 = arith.constant dense<0.000000e+00> : vector<256x16xf32>
    %6 = tpu.matmul %0, %5, %cst_6 {dimension_numbers = #tpu.dot_dimension_numbers<[1], [0], [0], [1], [0, 0, 1, 1], [], []>} : vector<256x144xf32>, vector<144x16xf32>, vector<256x16xf32> -> vector<256x16xf32>
    %c0_7 = arith.constant 0 : index
    %c0_8 = arith.constant 0 : index
    %7 = vector.load %arg3[%c0_7, %c0_8] : memref<256x1xf32, #tpu.memory_space<vmem>>, vector<256x1xf32>
    %8 = vector.broadcast %7 : vector<256x1xf32> to vector<256x16xf32>
    %9 = arith.mulf %6, %8 : vector<256x16xf32>
    %10 = arith.addf %4, %9 : vector<256x16xf32>
    %c0_9 = arith.constant 0 : index
    %c0_10 = arith.constant 0 : index
    %11 = vector.load %arg1[%c0_9, %c0_10] : memref<256x16xf32, #tpu.memory_space<vmem>>, vector<256x16xf32>
    %c0_11 = arith.constant 0 : index
    %c0_12 = arith.constant 0 : index
    %12 = vector.load %arg5[%c0_11, %c0_12] : memref<16x16xf32, #tpu.memory_space<vmem>>, vector<16x16xf32>
    %cst_13 = arith.constant dense<0.000000e+00> : vector<256x16xf32>
    %13 = tpu.matmul %11, %12, %cst_13 {dimension_numbers = #tpu.dot_dimension_numbers<[1], [0], [0], [1], [0, 0, 1, 1], [], []>} : vector<256x16xf32>, vector<16x16xf32>, vector<256x16xf32> -> vector<256x16xf32>
    %14 = arith.addf %10, %13 : vector<256x16xf32>
    %c0_14 = arith.constant 0 : index
    %c0_15 = arith.constant 0 : index
    %15 = vector.load %arg7[%c0_14, %c0_15] : memref<256x16xf32, #tpu.memory_space<vmem>>, vector<256x16xf32>
    tpu.vector_store %arg7[%c0_14, %c0_15], %14 {strides = array<i32>} : memref<256x16xf32, #tpu.memory_space<vmem>>, vector<256x16xf32>,
    return
  }
  func.func @transform_0(%arg0: i32) -> (i32, i32) {
    %c0_i32 = arith.constant 0 : i32
    %c0_i32_0 = arith.constant 0 : i32
    return %arg0, %c0_i32 : i32, i32
  }
  func.func @transform_1(%arg0: i32) -> (i32, i32) {
    %c0_i32 = arith.constant 0 : i32
    %c0_i32_0 = arith.constant 0 : i32
    return %arg0, %c0_i32 : i32, i32
  }
  func.func @transform_2(%arg0: i32) -> (i32, i32) {
    %c0_i32 = arith.constant 0 : i32
    %c0_i32_0 = arith.constant 0 : i32
    return %arg0, %c0_i32 : i32, i32
  }
  func.func @transform_3(%arg0: i32) -> (i32, i32) {
    %c0_i32 = arith.constant 0 : i32
    %c0_i32_0 = arith.constant 0 : i32
    %c0_i32_1 = arith.constant 0 : i32
    return %c0_i32, %c0_i32_0 : i32, i32
  }
  func.func @transform_4(%arg0: i32) -> (i32, i32) {
    %c0_i32 = arith.constant 0 : i32
    %c0_i32_0 = arith.constant 0 : i32
    %c0_i32_1 = arith.constant 0 : i32
    return %c0_i32, %c0_i32_0 : i32, i32
  }
  func.func @transform_5(%arg0: i32) -> (i32, i32) {
    %c0_i32 = arith.constant 0 : i32
    %c0_i32_0 = arith.constant 0 : i32
    %c0_i32_1 = arith.constant 0 : i32
    return %c0_i32, %c0_i32_0 : i32, i32
  }
  func.func @transform_6(%arg0: i32) -> (i32, i32) {
    %c0_i32 = arith.constant 0 : i32
    %c0_i32_0 = arith.constant 0 : i32
    return %arg0, %c0_i32 : i32, i32
  }
}

</mosaic_0001>

<llo_original>
// kernel: nas201_cell_forward.3
$region0: #{nas201_cell_forward.3}
  #allocation0 [shape = 'u32[]', space=smem, size = 0x4, offset = 0x4, fixed_abs, tag = 'smem constant byte address 0x4 - core index']
  #allocation1 [shape = 'u32[72,128]{1,0:T(1,128)}', space=vmem, size = 0x9000, scoped, tag = 'internal scratch']
  %s0 = inlined_call_operand.vmem [shape: f32[512,16], index: 0, kind: input, shape index: {}]
  %s1 = inlined_call_operand.vmem [shape: f32[512,144], index: 1, kind: input, shape index: {}]
  %s2 = inlined_call_operand.vmem [shape: f32[512,1], index: 2, kind: input, shape index: {}]
  %s3 = inlined_call_operand.vmem [shape: f32[144,48], index: 3, kind: input, shape index: {}]
  %s4 = inlined_call_operand.vmem [shape: f32[16,48], index: 4, kind: input, shape index: {}]
  %s5 = inlined_call_operand.vmem [shape: f32[144,48], index: 5, kind: input, shape index: {}]
  %s6 = inlined_call_operand.vmem [shape: f32[512,48], index: 6, kind: output, shape index: {}]
  %s7 = sld [smem:[#allocation0]]
  $region57: #{nas201_cell_forward.3} parent=0
    _
  %s9 = ssub.s32 1, %s7
  %s10 = scalar_select 0, %s9, %s7
  loop: start=0, step=1, limit=4
  $region2: #{nas201_cell_forward.3} parent=0 // loop_pre_header
    _
  $region3: #{nas201_cell_forward.3} parent=0 // loop_header
    %s12 = sphi 0, %s16
    %p13 = scmp.ge.s32.totalorder %s12, 4
    %s22 = sphi 0, %s24
    %s25 = sphi 0, %s22
    %s26 = sphi 0, %s25
    %s42 = sphi 0, %s26
    %s48 = sphi 0, %s50
    %s51 = sphi 0, %s48
    %s52 = sphi 0, %s51
    %s68 = sphi 0, %s52
    %s74 = sphi 0, %s76
    %s77 = sphi 0, %s74
    %s78 = sphi 0, %s77
    %s94 = sphi 0, %s78
    %s98 = sphi 0, %s98
    %s100 = sphi 0, %s98
    %s101 = sphi 0, %s100
    %s115 = sphi 0, %s101
    %s119 = sphi 0, %s119
    %s121 = sphi 0, %s119
    %s122 = sphi 0, %s121
    %s136 = sphi 0, %s122
    %s140 = sphi 0, %s140
    %s142 = sphi 0, %s140
    %s143 = sphi 0, %s142
    %s157 = sphi 0, %s143
    %s163 = sphi 0, %s165
    %s166 = sphi 0, %s163
    %s167 = sphi 0, %s166
    %s183 = sphi 0, %s167
  $region4: #{nas201_cell_forward.3} parent=0 // loop_header_branch
    %15 = sbr.rel (%p13) target = $region8
  $region5: #{nas201_cell_forward.3} parent=0 // loop_body
    %s17 = ssub.s32 %s12, 1
    %s18 = ssub.s32 %s12, 2
    %s19 = sadd.s32 %s12, 1
    %s20 = ssub.s32 %s12, %s19
    %p21 = scmp.eq.s32.totalorder %s20, 0
    %s23 = sadd.s32 %s22, 1
    %s24 = scalar_select %p21, %s22, %s23
    %p27 = pneg %p21
    %p28 = scmp.eq.s32.totalorder %s12, 1
    %p29 = por %p27, %p28
    %p30 = scmp.ne.s32.totalorder %s22, %s25
    %p31 = scmp.eq.s32.totalorder %s12, 0
    %p32 = por %p30, %p31
    %p33 = scmp.ne.s32.totalorder %s22, %s25
    %p34 = scmp.eq.s32.totalorder %s17, 1
    %p35 = por %p33, %p34
    %p36 = scmp.ne.s32.totalorder %s25, %s26
    %p37 = scmp.eq.s32.totalorder %s17, 0
    %p38 = por %p36, %p37
    %p39 = scmp.ne.s32.totalorder %s25, %s26
    %p40 = scmp.eq.s32.totalorder %s18, 1
    %p41 = por %p39, %p40
    %p43 = scmp.ne.s32.totalorder %s26, %s42
    %p44 = scmp.eq.s32.totalorder %s18, 0
    %p45 = por %p43, %p44
    %s46 = ssub.s32 %s12, %s19
    %p47 = scmp.eq.s32.totalorder %s46, 0
    %s49 = sadd.s32 %s48, 1
    %s50 = scalar_select %p47, %s48, %s49
    %p53 = pneg %p47
    %p54 = scmp.eq.s32.totalorder %s12, 1
    %p55 = por %p53, %p54
    %p56 = scmp.ne.s32.totalorder %s48, %s51
    %p57 = scmp.eq.s32.totalorder %s12, 0
    %p58 = por %p56, %p57
    %p59 = scmp.ne.s32.totalorder %s48, %s51
    %p60 = scmp.eq.s32.totalorder %s17, 1
    %p61 = por %p59, %p60
    %p62 = scmp.ne.s32.totalorder %s51, %s52
    %p63 = scmp.eq.s32.totalorder %s17, 0
    %p64 = por %p62, %p63
    %p65 = scmp.ne.s32.totalorder %s51, %s52
    %p66 = scmp.eq.s32.totalorder %s18, 1
    %p67 = por %p65, %p66
    %p69 = scmp.ne.s32.totalorder %s52, %s68
    %p70 = scmp.eq.s32.totalorder %s18, 0
    %p71 = por %p69, %p70
    %s72 = ssub.s32 %s12, %s19
    %p73 = scmp.eq.s32.totalorder %s72, 0
    %s75 = sadd.s32 %s74, 1
    %s76 = scalar_select %p73, %s74, %s75
    %p79 = pneg %p73
    %p80 = scmp.eq.s32.totalorder %s12, 1
    %p81 = por %p79, %p80
    %p82 = scmp.ne.s32.totalorder %s74, %s77
    %p83 = scmp.eq.s32.totalorder %s12, 0
    %p84 = por %p82, %p83
    %p85 = scmp.ne.s32.totalorder %s74, %s77
    %p86 = scmp.eq.s32.totalorder %s17, 1
    %p87 = por %p85, %p86
    %p88 = scmp.ne.s32.totalorder %s77, %s78
    %p89 = scmp.eq.s32.totalorder %s17, 0
    %p90 = por %p88, %p89
    %p91 = scmp.ne.s32.totalorder %s77, %s78
    %p92 = scmp.eq.s32.totalorder %s18, 1
    %p93 = por %p91, %p92
    %p95 = scmp.ne.s32.totalorder %s78, %s94
    %p96 = scmp.eq.s32.totalorder %s18, 0
    %p97 = por %p95, %p96
    %s99 = sadd.s32 %s98, 1
    %p102 = scmp.eq.s32.totalorder %s12, 1
    %p103 = scmp.ne.s32.totalorder %s98, %s100
    %p104 = scmp.eq.s32.totalorder %s12, 0
    %p105 = por %p103, %p104
    %p106 = scmp.ne.s32.totalorder %s98, %s100
    %p107 = scmp.eq.s32.totalorder %s17, 1
    %p108 = por %p106, %p107
    %p109 = scmp.ne.s32.totalorder %s100, %s101
    %p110 = scmp.eq.s32.totalorder %s17, 0
    %p111 = por %p109, %p110
    %p112 = scmp.ne.s32.totalorder %s100, %s101
    %p113 = scmp.eq.s32.totalorder %s18, 1
    %p114 = por %p112, %p113
    %p116 = scmp.ne.s32.totalorder %s101, %s115
    %p117 = scmp.eq.s32.totalorder %s18, 0
    %p118 = por %p116, %p117
    %s120 = sadd.s32 %s119, 1
    %p123 = scmp.eq.s32.totalorder %s12, 1
    %p124 = scmp.ne.s32.totalorder %s119, %s121
    %p125 = scmp.eq.s32.totalorder %s12, 0
    %p126 = por %p124, %p125
    %p127 = scmp.ne.s32.totalorder %s119, %s121
    %p128 = scmp.eq.s32.totalorder %s17, 1
    %p129 = por %p127, %p128
    %p130 = scmp.ne.s32.totalorder %s121, %s122
    %p131 = scmp.eq.s32.totalorder %s17, 0
    %p132 = por %p130, %p131
    %p133 = scmp.ne.s32.totalorder %s121, %s122
    %p134 = scmp.eq.s32.totalorder %s18, 1
    %p135 = por %p133, %p134
    %p137 = scmp.ne.s32.totalorder %s122, %s136
    %p138 = scmp.eq.s32.totalorder %s18, 0
    %p139 = por %p137, %p138
    %s141 = sadd.s32 %s140, 1
    %p144 = scmp.eq.s32.totalorder %s12, 1
    %p145 = scmp.ne.s32.totalorder %s140, %s142
    %p146 = scmp.eq.s32.totalorder %s12, 0
    %p147 = por %p145, %p146
    %p148 = scmp.ne.s32.totalorder %s140, %s142
    %p149 = scmp.eq.s32.totalorder %s17, 1
    %p150 = por %p148, %p149
    %p151 = scmp.ne.s32.totalorder %s142, %s143
    %p152 = scmp.eq.s32.totalorder %s17, 0
    %p153 = por %p151, %p152
    %p154 = scmp.ne.s32.totalorder %s142, %s143
    %p155 = scmp.eq.s32.totalorder %s18, 1
    %p156 = por %p154, %p155
    %p158 = scmp.ne.s32.totalorder %s143, %s157
    %p159 = scmp.eq.s32.totalorder %s18, 0
    %p160 = por %p158, %p159
    %s161 = ssub.s32 %s12, %s19
    %p162 = scmp.eq.s32.totalorder %s161, 0
    %s164 = sadd.s32 %s163, 1
    %s165 = scalar_select %p162, %s163, %s164
    %p168 = pneg %p162
    %p169 = scmp.eq.s32.totalorder %s12, 1
    %p170 = por %p168, %p169
    %p171 = scmp.ne.s32.totalorder %s163, %s166
    %p172 = scmp.eq.s32.totalorder %s12, 0
    %p173 = por %p171, %p172
    %p174 = scmp.ne.s32.totalorder %s163, %s166
    %p175 = scmp.eq.s32.totalorder %s17, 1
    %p176 = por %p174, %p175
    %p177 = scmp.ne.s32.totalorder %s166, %s167
    %p178 = scmp.eq.s32.totalorder %s17, 0
    %p179 = por %p177, %p178
    %p180 = scmp.ne.s32.totalorder %s166, %s167
    %p181 = scmp.eq.s32.totalorder %s18, 1
    %p182 = por %p180, %p181
    %p184 = scmp.ne.s32.totalorder %s167, %s183
    %p185 = scmp.eq.s32.totalorder %s18, 0
    %p186 = por %p184, %p185
    %p187 = scmp.le.s32.totalorder 1, %s12
    %p188 = scmp.lt.s32.totalorder %s12, 3
    %p189 = pnand %p187, %p188
    %p190 = pneg %p189
    // Predicated region
    $region9: #{nas201_cell_forward.3} parent=5 // pred_check
      _
    $region10: #{nas201_cell_forward.3} parent=5 // pred_check_branch
      %192 = sbr.rel (%p189) target = $region12
    $region11: #{nas201_cell_forward.3} parent=5 // pred_region
      %s193 = ssub.s32 %s12, 1
      // Predicated region
      $region13: #{nas201_cell_forward.3} parent=11 // pred_check
        %p194 = pneg %p111
      $region14: #{nas201_cell_forward.3} parent=11 // pred_check_branch
        %196 = sbr.rel (%p194) target = $region16
      $region15: #{nas201_cell_forward.3} parent=11 // pred_region
        _
      $region16: #{nas201_cell_forward.3} parent=11 // pred_fallthru
        _
      // Predicated region
      $region17: #{nas201_cell_forward.3} parent=11 // pred_check
        %p197 = pneg %p132
      $region18: #{nas201_cell_forward.3} parent=11 // pred_check_branch
        %199 = sbr.rel (%p197) target = $region20
      $region19: #{nas201_cell_forward.3} parent=11 // pred_region
        _
      $region20: #{nas201_cell_forward.3} parent=11 // pred_fallthru
        _
      // Predicated region
      $region21: #{nas201_cell_forward.3} parent=11 // pred_check
        %p200 = pneg %p153
      $region22: #{nas201_cell_forward.3} parent=11 // pred_check_branch
        %202 = sbr.rel (%p200) target = $region24
      $region23: #{nas201_cell_forward.3} parent=11 // pred_region
        _
      $region24: #{nas201_cell_forward.3} parent=11 // pred_fallthru
        _
    $region12: #{nas201_cell_forward.3} parent=5 // pred_fallthru
      _
    %p203 = scmp.lt.s32.totalorder %s12, 2
    // Predicated region
    $region25: #{nas201_cell_forward.3} parent=5 // pred_check
      %p204 = pneg %p203
    $region26: #{nas201_cell_forward.3} parent=5 // pred_check_branch
      %206 = sbr.rel (%p204) target = $region28
    $region27: #{nas201_cell_forward.3} parent=5 // pred_region
      // Predicated region
      $region29: #{nas201_cell_forward.3} parent=27 // pred_check
        %p207 = pneg %p32
      $region30: #{nas201_cell_forward.3} parent=27 // pred_check_branch
        %209 = sbr.rel (%p207) target = $region32
      $region31: #{nas201_cell_forward.3} parent=27 // pred_region
        %s210 = smul.u32 32, %s12
        %p211 = scmp.lt.s32.totalorder %s210, 63
        %s212 = scalar_select %p211, %s210, 63
        %s213 = smul.addr %s212, 8
        %s214 = scalar_lea.vmem %s0, %s213
        %s215 = smul.u32 32, %s12
      $region32: #{nas201_cell_forward.3} parent=27 // pred_fallthru
        _
      // Predicated region
      $region33: #{nas201_cell_forward.3} parent=27 // pred_check
        %p216 = pneg %p58
      $region34: #{nas201_cell_forward.3} parent=27 // pred_check_branch
        %218 = sbr.rel (%p216) target = $region36
      $region35: #{nas201_cell_forward.3} parent=27 // pred_region
        %s219 = smul.u32 32, %s12
        %p220 = scmp.lt.s32.totalorder %s219, 63
        %s221 = scalar_select %p220, %s219, 63
        %s222 = smul.addr %s221, 2
        %s223 = smul.addr %s222, 8
        %s224 = scalar_lea.vmem %s1, %s223
        %s225 = smul.u32 32, %s12
      $region36: #{nas201_cell_forward.3} parent=27 // pred_fallthru
        _
      // Predicated region
      $region37: #{nas201_cell_forward.3} parent=27 // pred_check
        %p226 = pneg %p84
      $region38: #{nas201_cell_forward.3} parent=27 // pred_check_branch
        %228 = sbr.rel (%p226) target = $region40
      $region39: #{nas201_cell_forward.3} parent=27 // pred_region
        %s229 = smul.u32 32, %s12
        %p230 = scmp.lt.s32.totalorder %s229, 63
        %s231 = scalar_select %p230, %s229, 63
        %s232 = smul.addr %s231, 8
        %s233 = scalar_lea.vmem %s2, %s232
        %s234 = smul.u32 32, %s12
      $region40: #{nas201_cell_forward.3} parent=27 // pred_fallthru
        _
    $region28: #{nas201_cell_forward.3} parent=5 // pred_fallthru
      _
    %p235 = scmp.le.s32.totalorder 1, %s12
    %p236 = scmp.lt.s32.totalorder %s12, 3
    %p237 = pnand %p235, %p236
    %p238 = pneg %p237
    // Predicated region
    $region41: #{nas201_cell_forward.3} parent=5 // pred_check
      _
    $region42: #{nas201_cell_forward.3} parent=5 // pred_check_branch
      %240 = sbr.rel (%p237) target = $region44
    $region43: #{nas201_cell_forward.3} parent=5 // pred_region
      %s241 = ssub.s32 %s12, 1
      %s242 = smul.u32 32, %s17
      %p243 = scmp.lt.s32.totalorder %s242, 63
      %s244 = scalar_select %p243, %s242, 63
      %s245 = smul.addr %s244, 8
      %s246 = scalar_lea.vmem %s0, %s245
      %p247 = pneg %p38
      %p248 = pneg %p35
      %s249 = smul.u32 32, %s17
      %p250 = scmp.lt.s32.totalorder %s249, 63
      %s251 = scalar_select %p250, %s249, 63
      %s252 = smul.addr %s251, 2
      %s253 = smul.addr %s252, 8
      %s254 = scalar_lea.vmem %s1, %s253
      %p255 = pneg %p64
      %p256 = pneg %p61
      %s257 = smul.u32 32, %s17
      %p258 = scmp.lt.s32.totalorder %s257, 63
      %s259 = scalar_select %p258, %s257, 63
      %s260 = smul.addr %s259, 8
      %s261 = scalar_lea.vmem %s2, %s260
      %p262 = pneg %p90
      %p263 = pneg %p87
      %p264 = pneg %p111
      %p265 = pneg %p108
      %p266 = pneg %p132
      %p267 = pneg %p129
      %p268 = pneg %p153
      %p269 = pneg %p150
      %p270 = pneg %p179
      %p271 = pneg %p176
      %s272 = smul.u32 32, %s17
      %p273 = scmp.lt.s32.totalorder %s272, 63
      %s274 = scalar_select %p273, %s272, 63
      %s275 = smul.addr %s274, 8
      %s276 = scalar_lea.vmem %s6, %s275
      %s277 = smul.u32 32, %s17
      %p278 = scmp.lt.s32.totalorder %s277, 63
      %s279 = scalar_select %p278, %s277, 63
      %s280 = smul.addr %s279, 8
      %s281 = scalar_lea.vmem %s0, %s280
      %s282 = smul.u32 32, %s17
      %s283 = smul.u32 32, %s17
      %p284 = scmp.lt.s32.totalorder %s283, 63
      %s285 = scalar_select %p284, %s283, 63
      %s286 = smul.addr %s285, 2
      %s287 = smul.addr %s286, 8
      %s288 = scalar_lea.vmem %s1, %s287
      %s289 = smul.u32 32, %s17
      %s290 = smul.u32 32, %s17
      %p291 = scmp.lt.s32.totalorder %s290, 63
      %s292 = scalar_select %p291, %s290, 63
      %s293 = smul.addr %s292, 8
      %s294 = scalar_lea.vmem %s2, %s293
      %s295 = smul.u32 32, %s17
      %s296 = smul.u32 32, %s17
      %p297 = scmp.lt.s32.totalorder %s296, 63
      %s298 = scalar_select %p297, %s296, 63
      %s299 = smul.addr %s298, 8
      %s300 = scalar_lea.vmem %s6, %s299
      %s301 = smul.u32 32, %s17
      %v302 = vld [vmem:[%s288] sm:$0xff]
      %v303 = vld [vmem:[%s288 + $0x8] sm:$0xff]
      %v304 = vld [vmem:[%s288 + $0x10] sm:$0xff]
      %v305 = vld [vmem:[%s288 + $0x18] sm:$0xff]
      %v306 = vld [vmem:[%s288 + $0x20] sm:$0xff]
      %v307 = vld [vmem:[%s288 + $0x28] sm:$0xff]
      %v308 = vld [vmem:[%s288 + $0x30] sm:$0xff]
      %v309 = vld [vmem:[%s288 + $0x38] sm:$0xff]
      %v310 = vld [vmem:[%s288 + $0x40] sm:$0xff]
      %v311 = vld [vmem:[%s288 + $0x48] sm:$0xff]
      %v312 = vld [vmem:[%s288 + $0x50] sm:$0xff]
      %v313 = vld [vmem:[%s288 + $0x58] sm:$0xff]
      %v314 = vld [vmem:[%s288 + $0x60] sm:$0xff]
      %v315 = vld [vmem:[%s288 + $0x68] sm:$0xff]
      %v316 = vld [vmem:[%s288 + $0x70] sm:$0xff]
      %v317 = vld [vmem:[%s288 + $0x78] sm:$0xff]
      %v318 = vld [vmem:[%s288 + $0x80] sm:$0xff]
      %v319 = vld [vmem:[%s288 + $0x88] sm:$0xff]
      %v320 = vld [vmem:[%s288 + $0x90] sm:$0xff]
      %v321 = vld [vmem:[%s288 + $0x98] sm:$0xff]
      %v322 = vld [vmem:[%s288 + $0xa0] sm:$0xff]
      %v323 = vld [vmem:[%s288 + $0xa8] sm:$0xff]
      %v324 = vld [vmem:[%s288 + $0xb0] sm:$0xff]
      %v325 = vld [vmem:[%s288 + $0xb8] sm:$0xff]
      %v326 = vld [vmem:[%s288 + $0xc0] sm:$0xff]
      %v327 = vld [vmem:[%s288 + $0xc8] sm:$0xff]
      %v328 = vld [vmem:[%s288 + $0xd0] sm:$0xff]
      %v329 = vld [vmem:[%s288 + $0xd8] sm:$0xff]
      %v330 = vld [vmem:[%s288 + $0xe0] sm:$0xff]
      %v331 = vld [vmem:[%s288 + $0xe8] sm:$0xff]
      %v332 = vld [vmem:[%s288 + $0xf0] sm:$0xff]
      %v333 = vld [vmem:[%s288 + $0xf8] sm:$0xff]
      %v334 = vld [vmem:[%s288 + $0x100] sm:$0xff]
      %v335 = vld [vmem:[%s288 + $0x108] sm:$0xff]
      %v336 = vld [vmem:[%s288 + $0x110] sm:$0xff]
      %v337 = vld [vmem:[%s288 + $0x118] sm:$0xff]
      %v338 = vld [vmem:[%s288 + $0x120] sm:$0xff]
      %v339 = vld [vmem:[%s288 + $0x128] sm:$0xff]
      %v340 = vld [vmem:[%s288 + $0x130] sm:$0xff]
      %v341 = vld [vmem:[%s288 + $0x138] sm:$0xff]
      %v342 = vld [vmem:[%s288 + $0x140] sm:$0xff]
      %v343 = vld [vmem:[%s288 + $0x148] sm:$0xff]
      %v344 = vld [vmem:[%s288 + $0x150] sm:$0xff]
      %v345 = vld [vmem:[%s288 + $0x158] sm:$0xff]
      %v346 = vld [vmem:[%s288 + $0x160] sm:$0xff]
      %v347 = vld [vmem:[%s288 + $0x168] sm:$0xff]
      %v348 = vld [vmem:[%s288 + $0x170] sm:$0xff]
      %v349 = vld [vmem:[%s288 + $0x178] sm:$0xff]
      %v350 = vld [vmem:[%s288 + $0x180] sm:$0xff]
      %v351 = vld [vmem:[%s288 + $0x188] sm:$0xff]
      %v352 = vld [vmem:[%s288 + $0x190] sm:$0xff]
      %v353 = vld [vmem:[%s288 + $0x198] sm:$0xff]
      %v354 = vld [vmem:[%s288 + $0x1a0] sm:$0xff]
      %v355 = vld [vmem:[%s288 + $0x1a8] sm:$0xff]
      %v356 = vld [vmem:[%s288 + $0x1b0] sm:$0xff]
      %v357 = vld [vmem:[%s288 + $0x1b8] sm:$0xff]
      %v358 = vld [vmem:[%s288 + $0x1c0] sm:$0xff]
      %v359 = vld [vmem:[%s288 + $0x1c8] sm:$0xff]
      %v360 = vld [vmem:[%s288 + $0x1d0] sm:$0xff]
      %v361 = vld [vmem:[%s288 + $0x1d8] sm:$0xff]
      %v362 = vld [vmem:[%s288 + $0x1e0] sm:$0xff]
      %v363 = vld [vmem:[%s288 + $0x1e8] sm:$0xff]
      %v364 = vld [vmem:[%s288 + $0x1f0] sm:$0xff]
      %v365 = vld [vmem:[%s288 + $0x1f8] sm:$0xff]
      %v366 = vmax.f32 %v302, 0.0
      %v367 = vmax.f32 %v303, 0.0
      %v368 = vmax.f32 %v304, 0.0
      %v369 = vmax.f32 %v305, 0.0
      %v370 = vmax.f32 %v306, 0.0
      %v371 = vmax.f32 %v307, 0.0
      %v372 = vmax.f32 %v308, 0.0
      %v373 = vmax.f32 %v309, 0.0
      %v374 = vmax.f32 %v310, 0.0
      %v375 = vmax.f32 %v311, 0.0
      %v376 = vmax.f32 %v312, 0.0
      %v377 = vmax.f32 %v313, 0.0
      %v378 = vmax.f32 %v314, 0.0
      %v379 = vmax.f32 %v315, 0.0
      %v380 = vmax.f32 %v316, 0.0
      %v381 = vmax.f32 %v317, 0.0
      %v382 = vmax.f32 %v318, 0.0
      %v383 = vmax.f32 %v319, 0.0
      %v384 = vmax.f32 %v320, 0.0
      %v385 = vmax.f32 %v321, 0.0
      %v386 = vmax.f32 %v322, 0.0
      %v387 = vmax.f32 %v323, 0.0
      %v388 = vmax.f32 %v324, 0.0
      %v389 = vmax.f32 %v325, 0.0
      %v390 = vmax.f32 %v326, 0.0
      %v391 = vmax.f32 %v327, 0.0
      %v392 = vmax.f32 %v328, 0.0
      %v393 = vmax.f32 %v329, 0.0
      %v394 = vmax.f32 %v330, 0.0
      %v395 = vmax.f32 %v331, 0.0
      %v396 = vmax.f32 %v332, 0.0
      %v397 = vmax.f32 %v333, 0.0
      %v398 = vmax.f32 %v334, 0.0
      %v399 = vmax.f32 %v335, 0.0
      %v400 = vmax.f32 %v336, 0.0
      %v401 = vmax.f32 %v337, 0.0
      %v402 = vmax.f32 %v338, 0.0
      %v403 = vmax.f32 %v339, 0.0
      %v404 = vmax.f32 %v340, 0.0
      %v405 = vmax.f32 %v341, 0.0
      %v406 = vmax.f32 %v342, 0.0
      %v407 = vmax.f32 %v343, 0.0
      %v408 = vmax.f32 %v344, 0.0
      %v409 = vmax.f32 %v345, 0.0
      %v410 = vmax.f32 %v346, 0.0
      %v411 = vmax.f32 %v347, 0.0
      %v412 = vmax.f32 %v348, 0.0
      %v413 = vmax.f32 %v349, 0.0
      %v414 = vmax.f32 %v350, 0.0
      %v415 = vmax.f32 %v351, 0.0
      %v416 = vmax.f32 %v352, 0.0
      %v417 = vmax.f32 %v353, 0.0
      %v418 = vmax.f32 %v354, 0.0
      %v419 = vmax.f32 %v355, 0.0
      %v420 = vmax.f32 %v356, 0.0
      %v421 = vmax.f32 %v357, 0.0
      %v422 = vmax.f32 %v358, 0.0
      %v423 = vmax.f32 %v359, 0.0
      %v424 = vmax.f32 %v360, 0.0
      %v425 = vmax.f32 %v361, 0.0
      %v426 = vmax.f32 %v362, 0.0
      %v427 = vmax.f32 %v363, 0.0
      %v428 = vmax.f32 %v364, 0.0
      %v429 = vmax.f32 %v365, 0.0
      %v430 = vld [vmem:[%s3] sm:$0xff]
      %v431 = vld [vmem:[%s3 + $0x8] sm:$0xff]
      %v432 = vld [vmem:[%s3 + $0x10] sm:$0xff]
      %v433 = vld [vmem:[%s3 + $0x18] sm:$0xff]
      %v434 = vld [vmem:[%s3 + $0x20] sm:$0xff]
      %v435 = vld [vmem:[%s3 + $0x28] sm:$0xff]
      %v436 = vld [vmem:[%s3 + $0x30] sm:$0xff]
      %v437 = vld [vmem:[%s3 + $0x38] sm:$0xff]
      %v438 = vld [vmem:[%s3 + $0x40] sm:$0xff]
      %v439 = vld [vmem:[%s3 + $0x48] sm:$0xff]
      %v440 = vld [vmem:[%s3 + $0x50] sm:$0xff]
      %v441 = vld [vmem:[%s3 + $0x58] sm:$0xff]
      %v442 = vld [vmem:[%s3 + $0x60] sm:$0xff]
      %v443 = vld [vmem:[%s3 + $0x68] sm:$0xff]
      %v444 = vld [vmem:[%s3 + $0x70] sm:$0xff]
      %v445 = vld [vmem:[%s3 + $0x78] sm:$0xff]
      %v446 = vld [vmem:[%s3 + $0x80] sm:$0xff]
      %v447 = vld [vmem:[%s3 + $0x88] sm:$0xff]
      %v448 = vld [vmem:[%s5] sm:$0xff]
      %v449 = vld [vmem:[%s5 + $0x8] sm:$0xff]
      %v450 = vld [vmem:[%s5 + $0x10] sm:$0xff]
      %v451 = vld [vmem:[%s5 + $0x18] sm:$0xff]
      %v452 = vld [vmem:[%s5 + $0x20] sm:$0xff]
      %v453 = vld [vmem:[%s5 + $0x28] sm:$0xff]
      %v454 = vld [vmem:[%s5 + $0x30] sm:$0xff]
      %v455 = vld [vmem:[%s5 + $0x38] sm:$0xff]
      %v456 = vld [vmem:[%s5 + $0x40] sm:$0xff]
      %v457 = vld [vmem:[%s5 + $0x48] sm:$0xff]
      %v458 = vld [vmem:[%s5 + $0x50] sm:$0xff]
      %v459 = vld [vmem:[%s5 + $0x58] sm:$0xff]
      %v460 = vld [vmem:[%s5 + $0x60] sm:$0xff]
      %v461 = vld [vmem:[%s5 + $0x68] sm:$0xff]
      %v462 = vld [vmem:[%s5 + $0x70] sm:$0xff]
      %v463 = vld [vmem:[%s5 + $0x78] sm:$0xff]
      %v464 = vld [vmem:[%s5 + $0x80] sm:$0xff]
      %v465 = vld [vmem:[%s5 + $0x88] sm:$0xff]
      %vm466 = vcmask 130048
      %v468 = vsel %vm466, %v303, 0
      %v471 = vsel %vm466, %v305, 0
      %v474 = vsel %vm466, %v307, 0
      %v477 = vsel %vm466, %v309, 0
      %v480 = vsel %vm466, %v311, 0
      %v483 = vsel %vm466, %v313, 0
      %v486 = vsel %vm466, %v315, 0
      %v489 = vsel %vm466, %v317, 0
      %v492 = vsel %vm466, %v319, 0
      %v495 = vsel %vm466, %v321, 0
      %v498 = vsel %vm466, %v323, 0
      %v501 = vsel %vm466, %v325, 0
      %v504 = vsel %vm466, %v327, 0
      %v507 = vsel %vm466, %v329, 0
      %v510 = vsel %vm466, %v331, 0
      %v513 = vsel %vm466, %v333, 0
      %v516 = vsel %vm466, %v335, 0
      %v519 = vsel %vm466, %v337, 0
      %v522 = vsel %vm466, %v339, 0
      %v525 = vsel %vm466, %v341, 0
      %v528 = vsel %vm466, %v343, 0
      %v531 = vsel %vm466, %v345, 0
      %v534 = vsel %vm466, %v347, 0
      %v537 = vsel %vm466, %v349, 0
      %v540 = vsel %vm466, %v351, 0
      %v543 = vsel %vm466, %v353, 0
      %v546 = vsel %vm466, %v355, 0
      %v549 = vsel %vm466, %v357, 0
      %v552 = vsel %vm466, %v359, 0
      %v555 = vsel %vm466, %v361, 0
      %v558 = vsel %vm466, %v363, 0
      %v561 = vsel %vm466, %v365, 0
      %563 = vmatpush.msra.mxu0 %v463
      %564 = vmatpush.msra.mxu0 %v462
      %565 = vmatpush.msra.mxu0 %v461
      %566 = vmatpush.msra.mxu0 %v460
      %567 = vmatpush.msra.mxu0 %v459
      %568 = vmatpush.msra.mxu0 %v458
      %569 = vmatpush.msra.mxu0 %v457
      %570 = vmatpush.msra.mxu0 %v456
      %571 = vmatpush.msra.mxu0 %v455
      %572 = vmatpush.msra.mxu0 %v454
      %573 = vmatpush.msra.mxu0 %v453
      %574 = vmatpush.msra.mxu0 %v452
      %575 = vmatpush.msra.mxu0 %v451
      %576 = vmatpush.msra.mxu0 %v450
      %577 = vmatpush.msra.mxu0 %v449
      %578 = vmatpush.msra.mxu0 %v448
      %579 = vmatmul.f32.gmra.mxu0 %v302
      %v580 = vpop.f32.mrf.mxu0
      %v581 = vadd.f32 0.0, %v580
      %582 = vmatmul.f32.gmra.mxu0 %v304
      %v583 = vpop.f32.mrf.mxu0
      %v584 = vadd.f32 0.0, %v583
      %585 = vmatmul.f32.gmra.mxu0 %v306
      %v586 = vpop.f32.mrf.mxu0
      %v587 = vadd.f32 0.0, %v586
      %588 = vmatmul.f32.gmra.mxu0 %v308
      %v589 = vpop.f32.mrf.mxu0
      %v590 = vadd.f32 0.0, %v589
      %591 = vmatmul.f32.gmra.mxu0 %v310
      %v592 = vpop.f32.mrf.mxu0
      %v593 = vadd.f32 0.0, %v592
      %594 = vmatmul.f32.gmra.mxu0 %v312
      %v595 = vpop.f32.mrf.mxu0
      %v596 = vadd.f32 0.0, %v595
      %597 = vmatmul.f32.gmra.mxu0 %v314
      %v598 = vpop.f32.mrf.mxu0
      %v599 = vadd.f32 0.0, %v598
      %600 = vmatmul.f32.gmra.mxu0 %v316
      %v601 = vpop.f32.mrf.mxu0
      %v602 = vadd.f32 0.0, %v601
      %603 = vmatmul.f32.gmra.mxu0 %v318
      %v604 = vpop.f32.mrf.mxu0
      %v605 = vadd.f32 0.0, %v604
      %606 = vmatmul.f32.gmra.mxu0 %v320
      %v607 = vpop.f32.mrf.mxu0
      %v608 = vadd.f32 0.0, %v607
      %609 = vmatmul.f32.gmra.mxu0 %v322
      %v610 = vpop.f32.mrf.mxu0
      %v611 = vadd.f32 0.0, %v610
      %612 = vmatmul.f32.gmra.mxu0 %v324
      %v613 = vpop.f32.mrf.mxu0
      %v614 = vadd.f32 0.0, %v613
      %615 = vmatmul.f32.gmra.mxu0 %v326
      %v616 = vpop.f32.mrf.mxu0
      %v617 = vadd.f32 0.0, %v616
      %618 = vmatmul.f32.gmra.mxu0 %v328
      %v619 = vpop.f32.mrf.mxu0
      %v620 = vadd.f32 0.0, %v619
      %621 = vmatmul.f32.gmra.mxu0 %v330
      %v622 = vpop.f32.mrf.mxu0
      %v623 = vadd.f32 0.0, %v622
      %624 = vmatmul.f32.gmra.mxu0 %v332
      %v625 = vpop.f32.mrf.mxu0
      %v626 = vadd.f32 0.0, %v625
      %627 = vmatmul.f32.gmra.mxu0 %v334
      %v628 = vpop.f32.mrf.mxu0
      %v629 = vadd.f32 0.0, %v628
      %630 = vmatmul.f32.gmra.mxu0 %v336
      %v631 = vpop.f32.mrf.mxu0
      %v632 = vadd.f32 0.0, %v631
      %633 = vmatmul.f32.gmra.mxu0 %v338
      %v634 = vpop.f32.mrf.mxu0
      %v635 = vadd.f32 0.0, %v634
      %636 = vmatmul.f32.gmra.mxu0 %v340
      %v637 = vpop.f32.mrf.mxu0
      %v638 = vadd.f32 0.0, %v637
      %639 = vmatmul.f32.gmra.mxu0 %v342
      %v640 = vpop.f32.mrf.mxu0
      %v641 = vadd.f32 0.0, %v640
      %642 = vmatmul.f32.gmra.mxu0 %v344
      %v643 = vpop.f32.mrf.mxu0
      %v644 = vadd.f32 0.0, %v643
      %645 = vmatmul.f32.gmra.mxu0 %v346
      %v646 = vpop.f32.mrf.mxu0
      %v647 = vadd.f32 0.0, %v646
      %648 = vmatmul.f32.gmra.mxu0 %v348
      %v649 = vpop.f32.mrf.mxu0
      %v650 = vadd.f32 0.0, %v649
      %651 = vmatmul.f32.gmra.mxu0 %v350
      %v652 = vpop.f32.mrf.mxu0
      %v653 = vadd.f32 0.0, %v652
      %654 = vmatmul.f32.gmra.mxu0 %v352
      %v655 = vpop.f32.mrf.mxu0
      %v656 = vadd.f32 0.0, %v655
      %657 = vmatmul.f32.gmra.mxu0 %v354
      %v658 = vpop.f32.mrf.mxu0
      %v659 = vadd.f32 0.0, %v658
      %660 = vmatmul.f32.gmra.mxu0 %v356
      %v661 = vpop.f32.mrf.mxu0
      %v662 = vadd.f32 0.0, %v661
      %663 = vmatmul.f32.gmra.mxu0 %v358
      %v664 = vpop.f32.mrf.mxu0
      %v665 = vadd.f32 0.0, %v664
      %666 = vmatmul.f32.gmra.mxu0 %v360
      %v667 = vpop.f32.mrf.mxu0
      %v668 = vadd.f32 0.0, %v667
      %669 = vmatmul.f32.gmra.mxu0 %v362
      %v670 = vpop.f32.mrf.mxu0
      %v671 = vadd.f32 0.0, %v670
      %672 = vmatmul.f32.gmra.mxu0 %v364
      %v673 = vpop.f32.mrf.mxu0
      %v674 = vadd.f32 0.0, %v673
      %675 = vdwg.mxu0
      %676 = vmatpush.msra.mxu0 0.0
      %677 = vmatpush.msra.mxu0 0.0
      %678 = vmatpush.msra.mxu0 0.0
      %679 = vmatpush.msra.mxu0 0.0
      %680 = vmatpush.msra.mxu0 0.0
      %681 = vmatpush.msra.mxu0 0.0
      %682 = vmatpush.msra.mxu0 0.0
      %683 = vmatpush.msra.mxu0 0.0
      %684 = vmatpush.msra.mxu0 0.0
      %685 = vmatpush.msra.mxu0 0.0
      %686 = vmatpush.msra.mxu0 0.0
      %687 = vmatpush.msra.mxu0 0.0
      %688 = vmatpush.msra.mxu0 0.0
      %689 = vmatpush.msra.mxu0 0.0
      %690 = vmatpush.msra.mxu0 %v465
      %691 = vmatpush.msra.mxu0 %v464
      %692 = vmatmul.f32.gmra.mxu0 %v468
      %v693 = vpop.f32.mrf.mxu0
      %v694 = vadd.f32 %v581, %v693
      %695 = vmatmul.f32.gmra.mxu0 %v471
      %v696 = vpop.f32.mrf.mxu0
      %v697 = vadd.f32 %v584, %v696
      %698 = vmatmul.f32.gmra.mxu0 %v474
      %v699 = vpop.f32.mrf.mxu0
      %v700 = vadd.f32 %v587, %v699
      %701 = vmatmul.f32.gmra.mxu0 %v477
      %v702 = vpop.f32.mrf.mxu0
      %v703 = vadd.f32 %v590, %v702
      %704 = vmatmul.f32.gmra.mxu0 %v480
      %v705 = vpop.f32.mrf.mxu0
      %v706 = vadd.f32 %v593, %v705
      %707 = vmatmul.f32.gmra.mxu0 %v483
      %v708 = vpop.f32.mrf.mxu0
      %v709 = vadd.f32 %v596, %v708
      %710 = vmatmul.f32.gmra.mxu0 %v486
      %v711 = vpop.f32.mrf.mxu0
      %v712 = vadd.f32 %v599, %v711
      %713 = vmatmul.f32.gmra.mxu0 %v489
      %v714 = vpop.f32.mrf.mxu0
      %v715 = vadd.f32 %v602, %v714
      %716 = vmatmul.f32.gmra.mxu0 %v492
      %v717 = vpop.f32.mrf.mxu0
      %v718 = vadd.f32 %v605, %v717
      %719 = vmatmul.f32.gmra.mxu0 %v495
      %v720 = vpop.f32.mrf.mxu0
      %v721 = vadd.f32 %v608, %v720
      %722 = vmatmul.f32.gmra.mxu0 %v498
      %v723 = vpop.f32.mrf.mxu0
      %v724 = vadd.f32 %v611, %v723
      %725 = vmatmul.f32.gmra.mxu0 %v501
      %v726 = vpop.f32.mrf.mxu0
      %v727 = vadd.f32 %v614, %v726
      %728 = vmatmul.f32.gmra.mxu0 %v504
      %v729 = vpop.f32.mrf.mxu0
      %v730 = vadd.f32 %v617, %v729
      %731 = vmatmul.f32.gmra.mxu0 %v507
      %v732 = vpop.f32.mrf.mxu0
      %v733 = vadd.f32 %v620, %v732
      %734 = vmatmul.f32.gmra.mxu0 %v510
      %v735 = vpop.f32.mrf.mxu0
      %v736 = vadd.f32 %v623, %v735
      %737 = vmatmul.f32.gmra.mxu0 %v513
      %v738 = vpop.f32.mrf.mxu0
      %v739 = vadd.f32 %v626, %v738
      %740 = vmatmul.f32.gmra.mxu0 %v516
      %v741 = vpop.f32.mrf.mxu0
      %v742 = vadd.f32 %v629, %v741
      %743 = vmatmul.f32.gmra.mxu0 %v519
      %v744 = vpop.f32.mrf.mxu0
      %v745 = vadd.f32 %v632, %v744
      %746 = vmatmul.f32.gmra.mxu0 %v522
      %v747 = vpop.f32.mrf.mxu0
      %v748 = vadd.f32 %v635, %v747
      %749 = vmatmul.f32.gmra.mxu0 %v525
      %v750 = vpop.f32.mrf.mxu0
      %v751 = vadd.f32 %v638, %v750
      %752 = vmatmul.f32.gmra.mxu0 %v528
      %v753 = vpop.f32.mrf.mxu0
      %v754 = vadd.f32 %v641, %v753
      %755 = vmatmul.f32.gmra.mxu0 %v531
      %v756 = vpop.f32.mrf.mxu0
      %v757 = vadd.f32 %v644, %v756
      %758 = vmatmul.f32.gmra.mxu0 %v534
      %v759 = vpop.f32.mrf.mxu0
      %v760 = vadd.f32 %v647, %v759
      %761 = vmatmul.f32.gmra.mxu0 %v537
      %v762 = vpop.f32.mrf.mxu0
      %v763 = vadd.f32 %v650, %v762
      %764 = vmatmul.f32.gmra.mxu0 %v540
      %v765 = vpop.f32.mrf.mxu0
      %v766 = vadd.f32 %v653, %v765
      %767 = vmatmul.f32.gmra.mxu0 %v543
      %v768 = vpop.f32.mrf.mxu0
      %v769 = vadd.f32 %v656, %v768
      %770 = vmatmul.f32.gmra.mxu0 %v546
      %v771 = vpop.f32.mrf.mxu0
      %v772 = vadd.f32 %v659, %v771
      %773 = vmatmul.f32.gmra.mxu0 %v549
      %v774 = vpop.f32.mrf.mxu0
      %v775 = vadd.f32 %v662, %v774
      %776 = vmatmul.f32.gmra.mxu0 %v552
      %v777 = vpop.f32.mrf.mxu0
      %v778 = vadd.f32 %v665, %v777
      %779 = vmatmul.f32.gmra.mxu0 %v555
      %v780 = vpop.f32.mrf.mxu0
      %v781 = vadd.f32 %v668, %v780
      %782 = vmatmul.f32.gmra.mxu0 %v558
      %v783 = vpop.f32.mrf.mxu0
      %v784 = vadd.f32 %v671, %v783
      %785 = vmatmul.f32.gmra.mxu0 %v561
      %v786 = vpop.f32.mrf.mxu0
      %v787 = vadd.f32 %v674, %v786
      %788 = vdwg.mxu0
      %v789 = vld [vmem:[%s294] sm:$0xff]
      %v790 = vld [vmem:[%s294 + $0x8] sm:$0xff]
      %v791 = vld [vmem:[%s294 + $0x10] sm:$0xff]
      %v792 = vld [vmem:[%s294 + $0x18] sm:$0xff]
      %v793 = vld [vmem:[%s294 + $0x20] sm:$0xff]
      %v794 = vld [vmem:[%s294 + $0x28] sm:$0xff]
      %v795 = vld [vmem:[%s294 + $0x30] sm:$0xff]
      %v796 = vld [vmem:[%s294 + $0x38] sm:$0xff]
      %v797 = vld [vmem:[%s294 + $0x40] sm:$0xff]
      %v798 = vld [vmem:[%s294 + $0x48] sm:$0xff]
      %v799 = vld [vmem:[%s294 + $0x50] sm:$0xff]
      %v800 = vld [vmem:[%s294 + $0x58] sm:$0xff]
      %v801 = vld [vmem:[%s294 + $0x60] sm:$0xff]
      %v802 = vld [vmem:[%s294 + $0x68] sm:$0xff]
      %v803 = vld [vmem:[%s294 + $0x70] sm:$0xff]
      %v804 = vld [vmem:[%s294 + $0x78] sm:$0xff]
      %v805 = vld [vmem:[%s294 + $0x80] sm:$0xff]
      %v806 = vld [vmem:[%s294 + $0x88] sm:$0xff]
      %v807 = vld [vmem:[%s294 + $0x90] sm:$0xff]
      %v808 = vld [vmem:[%s294 + $0x98] sm:$0xff]
      %v809 = vld [vmem:[%s294 + $0xa0] sm:$0xff]
      %v810 = vld [vmem:[%s294 + $0xa8] sm:$0xff]
      %v811 = vld [vmem:[%s294 + $0xb0] sm:$0xff]
      %v812 = vld [vmem:[%s294 + $0xb8] sm:$0xff]
      %v813 = vld [vmem:[%s294 + $0xc0] sm:$0xff]
      %v814 = vld [vmem:[%s294 + $0xc8] sm:$0xff]
      %v815 = vld [vmem:[%s294 + $0xd0] sm:$0xff]
      %v816 = vld [vmem:[%s294 + $0xd8] sm:$0xff]
      %v817 = vld [vmem:[%s294 + $0xe0] sm:$0xff]
      %v818 = vld [vmem:[%s294 + $0xe8] sm:$0xff]
      %v819 = vld [vmem:[%s294 + $0xf0] sm:$0xff]
      %v820 = vld [vmem:[%s294 + $0xf8] sm:$0xff]
      %822 = vset.pattern.permute.xlu0 0
      %823 = vperm.xlu0 %822, %v789
      %v824 = vpop.permute.xlu0 %823
      %827 = vset.pattern.permute.xlu0 0
      %828 = vperm.xlu0 %827, %v790
      %v829 = vpop.permute.xlu0 %828
      %832 = vset.pattern.permute.xlu0 0
      %833 = vperm.xlu0 %832, %v791
      %v834 = vpop.permute.xlu0 %833
      %837 = vset.pattern.permute.xlu0 0
      %838 = vperm.xlu0 %837, %v792
      %v839 = vpop.permute.xlu0 %838
      %842 = vset.pattern.permute.xlu0 0
      %843 = vperm.xlu0 %842, %v793
      %v844 = vpop.permute.xlu0 %843
      %847 = vset.pattern.permute.xlu0 0
      %848 = vperm.xlu0 %847, %v794
      %v849 = vpop.permute.xlu0 %848
      %852 = vset.pattern.permute.xlu0 0
      %853 = vperm.xlu0 %852, %v795
      %v854 = vpop.permute.xlu0 %853
      %857 = vset.pattern.permute.xlu0 0
      %858 = vperm.xlu0 %857, %v796
      %v859 = vpop.permute.xlu0 %858
      %862 = vset.pattern.permute.xlu0 0
      %863 = vperm.xlu0 %862, %v797
      %v864 = vpop.permute.xlu0 %863
      %867 = vset.pattern.permute.xlu0 0
      %868 = vperm.xlu0 %867, %v798
      %v869 = vpop.permute.xlu0 %868
      %872 = vset.pattern.permute.xlu0 0
      %873 = vperm.xlu0 %872, %v799
      %v874 = vpop.permute.xlu0 %873
      %877 = vset.pattern.permute.xlu0 0
      %878 = vperm.xlu0 %877, %v800
      %v879 = vpop.permute.xlu0 %878
      %882 = vset.pattern.permute.xlu0 0
      %883 = vperm.xlu0 %882, %v801
      %v884 = vpop.permute.xlu0 %883
      %887 = vset.pattern.permute.xlu0 0
      %888 = vperm.xlu0 %887, %v802
      %v889 = vpop.permute.xlu0 %888
      %892 = vset.pattern.permute.xlu0 0
      %893 = vperm.xlu0 %892, %v803
      %v894 = vpop.permute.xlu0 %893
      %897 = vset.pattern.permute.xlu0 0
      %898 = vperm.xlu0 %897, %v804
      %v899 = vpop.permute.xlu0 %898
      %902 = vset.pattern.permute.xlu0 0
      %903 = vperm.xlu0 %902, %v805
      %v904 = vpop.permute.xlu0 %903
      %907 = vset.pattern.permute.xlu0 0
      %908 = vperm.xlu0 %907, %v806
      %v909 = vpop.permute.xlu0 %908
      %912 = vset.pattern.permute.xlu0 0
      %913 = vperm.xlu0 %912, %v807
      %v914 = vpop.permute.xlu0 %913
      %917 = vset.pattern.permute.xlu0 0
      %918 = vperm.xlu0 %917, %v808
      %v919 = vpop.permute.xlu0 %918
      %922 = vset.pattern.permute.xlu0 0
      %923 = vperm.xlu0 %922, %v809
      %v924 = vpop.permute.xlu0 %923
      %927 = vset.pattern.permute.xlu0 0
      %928 = vperm.xlu0 %927, %v810
      %v929 = vpop.permute.xlu0 %928
      %932 = vset.pattern.permute.xlu0 0
      %933 = vperm.xlu0 %932, %v811
      %v934 = vpop.permute.xlu0 %933
      %937 = vset.pattern.permute.xlu0 0
      %938 = vperm.xlu0 %937, %v812
      %v939 = vpop.permute.xlu0 %938
      %942 = vset.pattern.permute.xlu0 0
      %943 = vperm.xlu0 %942, %v813
      %v944 = vpop.permute.xlu0 %943
      %947 = vset.pattern.permute.xlu0 0
      %948 = vperm.xlu0 %947, %v814
      %v949 = vpop.permute.xlu0 %948
      %952 = vset.pattern.permute.xlu0 0
      %953 = vperm.xlu0 %952, %v815
      %v954 = vpop.permute.xlu0 %953
      %957 = vset.pattern.permute.xlu0 0
      %958 = vperm.xlu0 %957, %v816
      %v959 = vpop.permute.xlu0 %958
      %962 = vset.pattern.permute.xlu0 0
      %963 = vperm.xlu0 %962, %v817
      %v964 = vpop.permute.xlu0 %963
      %967 = vset.pattern.permute.xlu0 0
      %968 = vperm.xlu0 %967, %v818
      %v969 = vpop.permute.xlu0 %968
      %972 = vset.pattern.permute.xlu0 0
      %973 = vperm.xlu0 %972, %v819
      %v974 = vpop.permute.xlu0 %973
      %977 = vset.pattern.permute.xlu0 0
      %978 = vperm.xlu0 %977, %v820
      %v979 = vpop.permute.xlu0 %978
      %v981 = vmul.f32 %v694, %v824
      %v982 = vmul.f32 %v697, %v829
      %v983 = vmul.f32 %v700, %v834
      %v984 = vmul.f32 %v703, %v839
      %v985 = vmul.f32 %v706, %v844
      %v986 = vmul.f32 %v709, %v849
      %v987 = vmul.f32 %v712, %v854
      %v988 = vmul.f32 %v715, %v859
      %v989 = vmul.f32 %v718, %v864
      %v990 = vmul.f32 %v721, %v869
      %v991 = vmul.f32 %v724, %v874
      %v992 = vmul.f32 %v727, %v879
      %v993 = vmul.f32 %v730, %v884
      %v994 = vmul.f32 %v733, %v889
      %v995 = vmul.f32 %v736, %v894
      %v996 = vmul.f32 %v739, %v899
      %v997 = vmul.f32 %v742, %v904
      %v998 = vmul.f32 %v745, %v909
      %v999 = vmul.f32 %v748, %v914
      %v1000 = vmul.f32 %v751, %v919
      %v1001 = vmul.f32 %v754, %v924
      %v1002 = vmul.f32 %v757, %v929
      %v1003 = vmul.f32 %v760, %v934
      %v1004 = vmul.f32 %v763, %v939
      %v1005 = vmul.f32 %v766, %v944
      %v1006 = vmul.f32 %v769, %v949
      %v1007 = vmul.f32 %v772, %v954
      %v1008 = vmul.f32 %v775, %v959
      %v1009 = vmul.f32 %v778, %v964
      %v1010 = vmul.f32 %v781, %v969
      %v1011 = vmul.f32 %v784, %v974
      %v1012 = vmul.f32 %v787, %v979
      %v1014 = vsel %vm466, %v367, 0
      %v1017 = vsel %vm466, %v369, 0
      %v1020 = vsel %vm466, %v371, 0
      %v1023 = vsel %vm466, %v373, 0
      %v1026 = vsel %vm466, %v375, 0
      %v1029 = vsel %vm466, %v377, 0
      %v1032 = vsel %vm466, %v379, 0
      %v1035 = vsel %vm466, %v381, 0
      %v1038 = vsel %vm466, %v383, 0
      %v1041 = vsel %vm466, %v385, 0
      %v1044 = vsel %vm466, %v387, 0
      %v1047 = vsel %vm466, %v389, 0
      %v1050 = vsel %vm466, %v391, 0
      %v1053 = vsel %vm466, %v393, 0
      %v1056 = vsel %vm466, %v395, 0
      %v1059 = vsel %vm466, %v397, 0
      %v1062 = vsel %vm466, %v399, 0
      %v1065 = vsel %vm466, %v401, 0
      %v1068 = vsel %vm466, %v403, 0
      %v1071 = vsel %vm466, %v405, 0
      %v1074 = vsel %vm466, %v407, 0
      %v1077 = vsel %vm466, %v409, 0
      %v1080 = vsel %vm466, %v411, 0
      %v1083 = vsel %vm466, %v413, 0
      %v1086 = vsel %vm466, %v415, 0
      %v1089 = vsel %vm466, %v417, 0
      %v1092 = vsel %vm466, %v419, 0
      %v1095 = vsel %vm466, %v421, 0
      %v1098 = vsel %vm466, %v423, 0
      %v1101 = vsel %vm466, %v425, 0
      %v1104 = vsel %vm466, %v427, 0
      %v1107 = vsel %vm466, %v429, 0
      %1109 = vmatpush.msra.mxu0 %v445
      %1110 = vmatpush.msra.mxu0 %v444
      %1111 = vmatpush.msra.mxu0 %v443
      %1112 = vmatpush.msra.mxu0 %v442
      %1113 = vmatpush.msra.mxu0 %v441
      %1114 = vmatpush.msra.mxu0 %v440
      %1115 = vmatpush.msra.mxu0 %v439
      %1116 = vmatpush.msra.mxu0 %v438
      %1117 = vmatpush.msra.mxu0 %v437
      %1118 = vmatpush.msra.mxu0 %v436
      %1119 = vmatpush.msra.mxu0 %v435
      %1120 = vmatpush.msra.mxu0 %v434
      %1121 = vmatpush.msra.mxu0 %v433
      %1122 = vmatpush.msra.mxu0 %v432
      %1123 = vmatpush.msra.mxu0 %v431
      %1124 = vmatpush.msra.mxu0 %v430
      %1125 = vmatmul.f32.gmra.mxu0 %v366
      %v1126 = vpop.f32.mrf.mxu0
      %v1127 = vadd.f32 %v981, %v1126
      %1128 = vmatmul.f32.gmra.mxu0 %v368
      %v1129 = vpop.f32.mrf.mxu0
      %v1130 = vadd.f32 %v982, %v1129
      %1131 = vmatmul.f32.gmra.mxu0 %v370
      %v1132 = vpop.f32.mrf.mxu0
      %v1133 = vadd.f32 %v983, %v1132
      %1134 = vmatmul.f32.gmra.mxu0 %v372
      %v1135 = vpop.f32.mrf.mxu0
      %v1136 = vadd.f32 %v984, %v1135
      %1137 = vmatmul.f32.gmra.mxu0 %v374
      %v1138 = vpop.f32.mrf.mxu0
      %v1139 = vadd.f32 %v985, %v1138
      %1140 = vmatmul.f32.gmra.mxu0 %v376
      %v1141 = vpop.f32.mrf.mxu0
      %v1142 = vadd.f32 %v986, %v1141
      %1143 = vmatmul.f32.gmra.mxu0 %v378
      %v1144 = vpop.f32.mrf.mxu0
      %v1145 = vadd.f32 %v987, %v1144
      %1146 = vmatmul.f32.gmra.mxu0 %v380
      %v1147 = vpop.f32.mrf.mxu0
      %v1148 = vadd.f32 %v988, %v1147
      %1149 = vmatmul.f32.gmra.mxu0 %v382
      %v1150 = vpop.f32.mrf.mxu0
      %v1151 = vadd.f32 %v989, %v1150
      %1152 = vmatmul.f32.gmra.mxu0 %v384
      %v1153 = vpop.f32.mrf.mxu0
      %v1154 = vadd.f32 %v990, %v1153
      %1155 = vmatmul.f32.gmra.mxu0 %v386
      %v1156 = vpop.f32.mrf.mxu0
      %v1157 = vadd.f32 %v991, %v1156
      %1158 = vmatmul.f32.gmra.mxu0 %v388
      %v1159 = vpop.f32.mrf.mxu0
      %v1160 = vadd.f32 %v992, %v1159
      %1161 = vmatmul.f32.gmra.mxu0 %v390
      %v1162 = vpop.f32.mrf.mxu0
      %v1163 = vadd.f32 %v993, %v1162
      %1164 = vmatmul.f32.gmra.mxu0 %v392
      %v1165 = vpop.f32.mrf.mxu0
      %v1166 = vadd.f32 %v994, %v1165
      %1167 = vmatmul.f32.gmra.mxu0 %v394
      %v1168 = vpop.f32.mrf.mxu0
      %v1169 = vadd.f32 %v995, %v1168
      %1170 = vmatmul.f32.gmra.mxu0 %v396
      %v1171 = vpop.f32.mrf.mxu0
      %v1172 = vadd.f32 %v996, %v1171
      %1173 = vmatmul.f32.gmra.mxu0 %v398
      %v1174 = vpop.f32.mrf.mxu0
      %v1175 = vadd.f32 %v997, %v1174
      %1176 = vmatmul.f32.gmra.mxu0 %v400
      %v1177 = vpop.f32.mrf.mxu0
      %v1178 = vadd.f32 %v998, %v1177
      %1179 = vmatmul.f32.gmra.mxu0 %v402
      %v1180 = vpop.f32.mrf.mxu0
      %v1181 = vadd.f32 %v999, %v1180
      %1182 = vmatmul.f32.gmra.mxu0 %v404
      %v1183 = vpop.f32.mrf.mxu0
      %v1184 = vadd.f32 %v1000, %v1183
      %1185 = vmatmul.f32.gmra.mxu0 %v406
      %v1186 = vpop.f32.mrf.mxu0
      %v1187 = vadd.f32 %v1001, %v1186
      %1188 = vmatmul.f32.gmra.mxu0 %v408
      %v1189 = vpop.f32.mrf.mxu0
      %v1190 = vadd.f32 %v1002, %v1189
      %1191 = vmatmul.f32.gmra.mxu0 %v410
      %v1192 = vpop.f32.mrf.mxu0
      %v1193 = vadd.f32 %v1003, %v1192
      %1194 = vmatmul.f32.gmra.mxu0 %v412
      %v1195 = vpop.f32.mrf.mxu0
      %v1196 = vadd.f32 %v1004, %v1195
      %1197 = vmatmul.f32.gmra.mxu0 %v414
      %v1198 = vpop.f32.mrf.mxu0
      %v1199 = vadd.f32 %v1005, %v1198
      %1200 = vmatmul.f32.gmra.mxu0 %v416
      %v1201 = vpop.f32.mrf.mxu0
      %v1202 = vadd.f32 %v1006, %v1201
      %1203 = vmatmul.f32.gmra.mxu0 %v418
      %v1204 = vpop.f32.mrf.mxu0
      %v1205 = vadd.f32 %v1007, %v1204
      %1206 = vmatmul.f32.gmra.mxu0 %v420
      %v1207 = vpop.f32.mrf.mxu0
      %v1208 = vadd.f32 %v1008, %v1207
      %1209 = vmatmul.f32.gmra.mxu0 %v422
      %v1210 = vpop.f32.mrf.mxu0
      %v1211 = vadd.f32 %v1009, %v1210
      %1212 = vmatmul.f32.gmra.mxu0 %v424
      %v1213 = vpop.f32.mrf.mxu0
      %v1214 = vadd.f32 %v1010, %v1213
      %1215 = vmatmul.f32.gmra.mxu0 %v426
      %v1216 = vpop.f32.mrf.mxu0
      %v1217 = vadd.f32 %v1011, %v1216
      %1218 = vmatmul.f32.gmra.mxu0 %v428
      %v1219 = vpop.f32.mrf.mxu0
      %v1220 = vadd.f32 %v1012, %v1219
      %1221 = vdwg.mxu0
      %1222 = vmatpush.msra.mxu0 0.0
      %1223 = vmatpush.msra.mxu0 0.0
      %1224 = vmatpush.msra.mxu0 0.0
      %1225 = vmatpush.msra.mxu0 0.0
      %1226 = vmatpush.msra.mxu0 0.0
      %1227 = vmatpush.msra.mxu0 0.0
      %1228 = vmatpush.msra.mxu0 0.0
      %1229 = vmatpush.msra.mxu0 0.0
      %1230 = vmatpush.msra.mxu0 0.0
      %1231 = vmatpush.msra.mxu0 0.0
      %1232 = vmatpush.msra.mxu0 0.0
      %1233 = vmatpush.msra.mxu0 0.0
      %1234 = vmatpush.msra.mxu0 0.0
      %1235 = vmatpush.msra.mxu0 0.0
      %1236 = vmatpush.msra.mxu0 %v447
      %1237 = vmatpush.msra.mxu0 %v446
      %1238 = vmatmul.f32.gmra.mxu0 %v1014
      %v1239 = vpop.f32.mrf.mxu0
      %v1240 = vadd.f32 %v1127, %v1239
      %1241 = vmatmul.f32.gmra.mxu0 %v1017
      %v1242 = vpop.f32.mrf.mxu0
      %v1243 = vadd.f32 %v1130, %v1242
      %1244 = vmatmul.f32.gmra.mxu0 %v1020
      %v1245 = vpop.f32.mrf.mxu0
      %v1246 = vadd.f32 %v1133, %v1245
      %1247 = vmatmul.f32.gmra.mxu0 %v1023
      %v1248 = vpop.f32.mrf.mxu0
      %v1249 = vadd.f32 %v1136, %v1248
      %1250 = vmatmul.f32.gmra.mxu0 %v1026
      %v1251 = vpop.f32.mrf.mxu0
      %v1252 = vadd.f32 %v1139, %v1251
      %1253 = vmatmul.f32.gmra.mxu0 %v1029
      %v1254 = vpop.f32.mrf.mxu0
      %v1255 = vadd.f32 %v1142, %v1254
      %1256 = vmatmul.f32.gmra.mxu0 %v1032
      %v1257 = vpop.f32.mrf.mxu0
      %v1258 = vadd.f32 %v1145, %v1257
      %1259 = vmatmul.f32.gmra.mxu0 %v1035
      %v1260 = vpop.f32.mrf.mxu0
      %v1261 = vadd.f32 %v1148, %v1260
      %1262 = vmatmul.f32.gmra.mxu0 %v1038
      %v1263 = vpop.f32.mrf.mxu0
      %v1264 = vadd.f32 %v1151, %v1263
      %1265 = vmatmul.f32.gmra.mxu0 %v1041
      %v1266 = vpop.f32.mrf.mxu0
      %v1267 = vadd.f32 %v1154, %v1266
      %1268 = vmatmul.f32.gmra.mxu0 %v1044
      %v1269 = vpop.f32.mrf.mxu0
      %v1270 = vadd.f32 %v1157, %v1269
      %1271 = vmatmul.f32.gmra.mxu0 %v1047
      %v1272 = vpop.f32.mrf.mxu0
      %v1273 = vadd.f32 %v1160, %v1272
      %1274 = vmatmul.f32.gmra.mxu0 %v1050
      %v1275 = vpop.f32.mrf.mxu0
      %v1276 = vadd.f32 %v1163, %v1275
      %1277 = vmatmul.f32.gmra.mxu0 %v1053
      %v1278 = vpop.f32.mrf.mxu0
      %v1279 = vadd.f32 %v1166, %v1278
      %1280 = vmatmul.f32.gmra.mxu0 %v1056
      %v1281 = vpop.f32.mrf.mxu0
      %v1282 = vadd.f32 %v1169, %v1281
      %1283 = vmatmul.f32.gmra.mxu0 %v1059
      %v1284 = vpop.f32.mrf.mxu0
      %v1285 = vadd.f32 %v1172, %v1284
      %1286 = vmatmul.f32.gmra.mxu0 %v1062
      %v1287 = vpop.f32.mrf.mxu0
      %v1288 = vadd.f32 %v1175, %v1287
      %1289 = vmatmul.f32.gmra.mxu0 %v1065
      %v1290 = vpop.f32.mrf.mxu0
      %v1291 = vadd.f32 %v1178, %v1290
      %1292 = vmatmul.f32.gmra.mxu0 %v1068
      %v1293 = vpop.f32.mrf.mxu0
      %v1294 = vadd.f32 %v1181, %v1293
      %1295 = vmatmul.f32.gmra.mxu0 %v1071
      %v1296 = vpop.f32.mrf.mxu0
      %v1297 = vadd.f32 %v1184, %v1296
      %1298 = vmatmul.f32.gmra.mxu0 %v1074
      %v1299 = vpop.f32.mrf.mxu0
      %v1300 = vadd.f32 %v1187, %v1299
      %1301 = vmatmul.f32.gmra.mxu0 %v1077
      %v1302 = vpop.f32.mrf.mxu0
      %v1303 = vadd.f32 %v1190, %v1302
      %1304 = vmatmul.f32.gmra.mxu0 %v1080
      %v1305 = vpop.f32.mrf.mxu0
      %v1306 = vadd.f32 %v1193, %v1305
      %1307 = vmatmul.f32.gmra.mxu0 %v1083
      %v1308 = vpop.f32.mrf.mxu0
      %v1309 = vadd.f32 %v1196, %v1308
      %1310 = vmatmul.f32.gmra.mxu0 %v1086
      %v1311 = vpop.f32.mrf.mxu0
      %v1312 = vadd.f32 %v1199, %v1311
      %1313 = vmatmul.f32.gmra.mxu0 %v1089
      %v1314 = vpop.f32.mrf.mxu0
      %v1315 = vadd.f32 %v1202, %v1314
      %1316 = vmatmul.f32.gmra.mxu0 %v1092
      %v1317 = vpop.f32.mrf.mxu0
      %v1318 = vadd.f32 %v1205, %v1317
      %1319 = vmatmul.f32.gmra.mxu0 %v1095
      %v1320 = vpop.f32.mrf.mxu0
      %v1321 = vadd.f32 %v1208, %v1320
      %1322 = vmatmul.f32.gmra.mxu0 %v1098
      %v1323 = vpop.f32.mrf.mxu0
      %v1324 = vadd.f32 %v1211, %v1323
      %1325 = vmatmul.f32.gmra.mxu0 %v1101
      %v1326 = vpop.f32.mrf.mxu0
      %v1327 = vadd.f32 %v1214, %v1326
      %1328 = vmatmul.f32.gmra.mxu0 %v1104
      %v1329 = vpop.f32.mrf.mxu0
      %v1330 = vadd.f32 %v1217, %v1329
      %1331 = vmatmul.f32.gmra.mxu0 %v1107
      %v1332 = vpop.f32.mrf.mxu0
      %v1333 = vadd.f32 %v1220, %v1332
      %1334 = vdwg.mxu0
      %v1335 = vld [vmem:[%s281] sm:$0xff]
      %v1336 = vld [vmem:[%s281 + $0x8] sm:$0xff]
      %v1337 = vld [vmem:[%s281 + $0x10] sm:$0xff]
      %v1338 = vld [vmem:[%s281 + $0x18] sm:$0xff]
      %v1339 = vld [vmem:[%s281 + $0x20] sm:$0xff]
      %v1340 = vld [vmem:[%s281 + $0x28] sm:$0xff]
      %v1341 = vld [vmem:[%s281 + $0x30] sm:$0xff]
      %v1342 = vld [vmem:[%s281 + $0x38] sm:$0xff]
      %v1343 = vld [vmem:[%s281 + $0x40] sm:$0xff]
      %v1344 = vld [vmem:[%s281 + $0x48] sm:$0xff]
      %v1345 = vld [vmem:[%s281 + $0x50] sm:$0xff]
      %v1346 = vld [vmem:[%s281 + $0x58] sm:$0xff]
      %v1347 = vld [vmem:[%s281 + $0x60] sm:$0xff]
      %v1348 = vld [vmem:[%s281 + $0x68] sm:$0xff]
      %v1349 = vld [vmem:[%s281 + $0x70] sm:$0xff]
      %v1350 = vld [vmem:[%s281 + $0x78] sm:$0xff]
      %v1351 = vld [vmem:[%s281 + $0x80] sm:$0xff]
      %v1352 = vld [vmem:[%s281 + $0x88] sm:$0xff]
      %v1353 = vld [vmem:[%s281 + $0x90] sm:$0xff]
      %v1354 = vld [vmem:[%s281 + $0x98] sm:$0xff]
      %v1355 = vld [vmem:[%s281 + $0xa0] sm:$0xff]
      %v1356 = vld [vmem:[%s281 + $0xa8] sm:$0xff]
      %v1357 = vld [vmem:[%s281 + $0xb0] sm:$0xff]
      %v1358 = vld [vmem:[%s281 + $0xb8] sm:$0xff]
      %v1359 = vld [vmem:[%s281 + $0xc0] sm:$0xff]
      %v1360 = vld [vmem:[%s281 + $0xc8] sm:$0xff]
      %v1361 = vld [vmem:[%s281 + $0xd0] sm:$0xff]
      %v1362 = vld [vmem:[%s281 + $0xd8] sm:$0xff]
      %v1363 = vld [vmem:[%s281 + $0xe0] sm:$0xff]
      %v1364 = vld [vmem:[%s281 + $0xe8] sm:$0xff]
      %v1365 = vld [vmem:[%s281 + $0xf0] sm:$0xff]
      %v1366 = vld [vmem:[%s281 + $0xf8] sm:$0xff]
      %v1367 = vld [vmem:[%s4] sm:$0xff]
      %v1368 = vld [vmem:[%s4 + $0x8] sm:$0xff]
      %v1370 = vsel %vm466, %v1335, 0
      %v1373 = vsel %vm466, %v1336, 0
      %v1376 = vsel %vm466, %v1337, 0
      %v1379 = vsel %vm466, %v1338, 0
      %v1382 = vsel %vm466, %v1339, 0
      %v1385 = vsel %vm466, %v1340, 0
      %v1388 = vsel %vm466, %v1341, 0
      %v1391 = vsel %vm466, %v1342, 0
      %v1394 = vsel %vm466, %v1343, 0
      %v1397 = vsel %vm466, %v1344, 0
      %v1400 = vsel %vm466, %v1345, 0
      %v1403 = vsel %vm466, %v1346, 0
      %v1406 = vsel %vm466, %v1347, 0
      %v1409 = vsel %vm466, %v1348, 0
      %v1412 = vsel %vm466, %v1349, 0
      %v1415 = vsel %vm466, %v1350, 0
      %v1418 = vsel %vm466, %v1351, 0
      %v1421 = vsel %vm466, %v1352, 0
      %v1424 = vsel %vm466, %v1353, 0
      %v1427 = vsel %vm466, %v1354, 0
      %v1430 = vsel %vm466, %v1355, 0
      %v1433 = vsel %vm466, %v1356, 0
      %v1436 = vsel %vm466, %v1357, 0
      %v1439 = vsel %vm466, %v1358, 0
      %v1442 = vsel %vm466, %v1359, 0
      %v1445 = vsel %vm466, %v1360, 0
      %v1448 = vsel %vm466, %v1361, 0
      %v1451 = vsel %vm466, %v1362, 0
      %v1454 = vsel %vm466, %v1363, 0
      %v1457 = vsel %vm466, %v1364, 0
      %v1460 = vsel %vm466, %v1365, 0
      %v1463 = vsel %vm466, %v1366, 0
      %1465 = vmatpush.msra.mxu0 0.0
      %1466 = vmatpush.msra.mxu0 0.0
      %1467 = vmatpush.msra.mxu0 0.0
      %1468 = vmatpush.msra.mxu0 0.0
      %1469 = vmatpush.msra.mxu0 0.0
      %1470 = vmatpush.msra.mxu0 0.0
      %1471 = vmatpush.msra.mxu0 0.0
      %1472 = vmatpush.msra.mxu0 0.0
      %1473 = vmatpush.msra.mxu0 0.0
      %1474 = vmatpush.msra.mxu0 0.0
      %1475 = vmatpush.msra.mxu0 0.0
      %1476 = vmatpush.msra.mxu0 0.0
      %1477 = vmatpush.msra.mxu0 0.0
      %1478 = vmatpush.msra.mxu0 0.0
      %1479 = vmatpush.msra.mxu0 %v1368
      %1480 = vmatpush.msra.mxu0 %v1367
      %1481 = vmatmul.f32.gmra.mxu0 %v1370
      %v1482 = vpop.f32.mrf.mxu0
      %v1483 = vadd.f32 0.0, %v1482
      %1484 = vmatmul.f32.gmra.mxu0 %v1373
      %v1485 = vpop.f32.mrf.mxu0
      %v1486 = vadd.f32 0.0, %v1485
      %1487 = vmatmul.f32.gmra.mxu0 %v1376
      %v1488 = vpop.f32.mrf.mxu0
      %v1489 = vadd.f32 0.0, %v1488
      %1490 = vmatmul.f32.gmra.mxu0 %v1379
      %v1491 = vpop.f32.mrf.mxu0
      %v1492 = vadd.f32 0.0, %v1491
      %1493 = vmatmul.f32.gmra.mxu0 %v1382
      %v1494 = vpop.f32.mrf.mxu0
      %v1495 = vadd.f32 0.0, %v1494
      %1496 = vmatmul.f32.gmra.mxu0 %v1385
      %v1497 = vpop.f32.mrf.mxu0
      %v1498 = vadd.f32 0.0, %v1497
      %1499 = vmatmul.f32.gmra.mxu0 %v1388
      %v1500 = vpop.f32.mrf.mxu0
      %v1501 = vadd.f32 0.0, %v1500
      %1502 = vmatmul.f32.gmra.mxu0 %v1391
      %v1503 = vpop.f32.mrf.mxu0
      %v1504 = vadd.f32 0.0, %v1503
      %1505 = vmatmul.f32.gmra.mxu0 %v1394
      %v1506 = vpop.f32.mrf.mxu0
      %v1507 = vadd.f32 0.0, %v1506
      %1508 = vmatmul.f32.gmra.mxu0 %v1397
      %v1509 = vpop.f32.mrf.mxu0
      %v1510 = vadd.f32 0.0, %v1509
      %1511 = vmatmul.f32.gmra.mxu0 %v1400
      %v1512 = vpop.f32.mrf.mxu0
      %v1513 = vadd.f32 0.0, %v1512
      %1514 = vmatmul.f32.gmra.mxu0 %v1403
      %v1515 = vpop.f32.mrf.mxu0
      %v1516 = vadd.f32 0.0, %v1515
      %1517 = vmatmul.f32.gmra.mxu0 %v1406
      %v1518 = vpop.f32.mrf.mxu0
      %v1519 = vadd.f32 0.0, %v1518
      %1520 = vmatmul.f32.gmra.mxu0 %v1409
      %v1521 = vpop.f32.mrf.mxu0
      %v1522 = vadd.f32 0.0, %v1521
      %1523 = vmatmul.f32.gmra.mxu0 %v1412
      %v1524 = vpop.f32.mrf.mxu0
      %v1525 = vadd.f32 0.0, %v1524
      %1526 = vmatmul.f32.gmra.mxu0 %v1415
      %v1527 = vpop.f32.mrf.mxu0
      %v1528 = vadd.f32 0.0, %v1527
      %1529 = vmatmul.f32.gmra.mxu0 %v1418
      %v1530 = vpop.f32.mrf.mxu0
      %v1531 = vadd.f32 0.0, %v1530
      %1532 = vmatmul.f32.gmra.mxu0 %v1421
      %v1533 = vpop.f32.mrf.mxu0
      %v1534 = vadd.f32 0.0, %v1533
      %1535 = vmatmul.f32.gmra.mxu0 %v1424
      %v1536 = vpop.f32.mrf.mxu0
      %v1537 = vadd.f32 0.0, %v1536
      %1538 = vmatmul.f32.gmra.mxu0 %v1427
      %v1539 = vpop.f32.mrf.mxu0
      %v1540 = vadd.f32 0.0, %v1539
      %1541 = vmatmul.f32.gmra.mxu0 %v1430
      %v1542 = vpop.f32.mrf.mxu0
      %v1543 = vadd.f32 0.0, %v1542
      %1544 = vmatmul.f32.gmra.mxu0 %v1433
      %v1545 = vpop.f32.mrf.mxu0
      %v1546 = vadd.f32 0.0, %v1545
      %1547 = vmatmul.f32.gmra.mxu0 %v1436
      %v1548 = vpop.f32.mrf.mxu0
      %v1549 = vadd.f32 0.0, %v1548
      %1550 = vmatmul.f32.gmra.mxu0 %v1439
      %v1551 = vpop.f32.mrf.mxu0
      %v1552 = vadd.f32 0.0, %v1551
      %1553 = vmatmul.f32.gmra.mxu0 %v1442
      %v1554 = vpop.f32.mrf.mxu0
      %v1555 = vadd.f32 0.0, %v1554
      %1556 = vmatmul.f32.gmra.mxu0 %v1445
      %v1557 = vpop.f32.mrf.mxu0
      %v1558 = vadd.f32 0.0, %v1557
      %1559 = vmatmul.f32.gmra.mxu0 %v1448
      %v1560 = vpop.f32.mrf.mxu0
      %v1561 = vadd.f32 0.0, %v1560
      %1562 = vmatmul.f32.gmra.mxu0 %v1451
      %v1563 = vpop.f32.mrf.mxu0
      %v1564 = vadd.f32 0.0, %v1563
      %1565 = vmatmul.f32.gmra.mxu0 %v1454
      %v1566 = vpop.f32.mrf.mxu0
      %v1567 = vadd.f32 0.0, %v1566
      %1568 = vmatmul.f32.gmra.mxu0 %v1457
      %v1569 = vpop.f32.mrf.mxu0
      %v1570 = vadd.f32 0.0, %v1569
      %1571 = vmatmul.f32.gmra.mxu0 %v1460
      %v1572 = vpop.f32.mrf.mxu0
      %v1573 = vadd.f32 0.0, %v1572
      %1574 = vmatmul.f32.gmra.mxu0 %v1463
      %v1575 = vpop.f32.mrf.mxu0
      %v1576 = vadd.f32 0.0, %v1575
      %1577 = vdwg.mxu0
      %v1578 = vadd.f32 %v1240, %v1483
      %v1579 = vadd.f32 %v1243, %v1486
      %v1580 = vadd.f32 %v1246, %v1489
      %v1581 = vadd.f32 %v1249, %v1492
      %v1582 = vadd.f32 %v1252, %v1495
      %v1583 = vadd.f32 %v1255, %v1498
      %v1584 = vadd.f32 %v1258, %v1501
      %v1585 = vadd.f32 %v1261, %v1504
      %v1586 = vadd.f32 %v1264, %v1507
      %v1587 = vadd.f32 %v1267, %v1510
      %v1588 = vadd.f32 %v1270, %v1513
      %v1589 = vadd.f32 %v1273, %v1516
      %v1590 = vadd.f32 %v1276, %v1519
      %v1591 = vadd.f32 %v1279, %v1522
      %v1592 = vadd.f32 %v1282, %v1525
      %v1593 = vadd.f32 %v1285, %v1528
      %v1594 = vadd.f32 %v1288, %v1531
      %v1595 = vadd.f32 %v1291, %v1534
      %v1596 = vadd.f32 %v1294, %v1537
      %v1597 = vadd.f32 %v1297, %v1540
      %v1598 = vadd.f32 %v1300, %v1543
      %v1599 = vadd.f32 %v1303, %v1546
      %v1600 = vadd.f32 %v1306, %v1549
      %v1601 = vadd.f32 %v1309, %v1552
      %v1602 = vadd.f32 %v1312, %v1555
      %v1603 = vadd.f32 %v1315, %v1558
      %v1604 = vadd.f32 %v1318, %v1561
      %v1605 = vadd.f32 %v1321, %v1564
      %v1606 = vadd.f32 %v1324, %v1567
      %v1607 = vadd.f32 %v1327, %v1570
      %v1608 = vadd.f32 %v1330, %v1573
      %v1609 = vadd.f32 %v1333, %v1576
      %vm1610 = vcmask 392192
      %1611 = vst.msk [vmem:[%s300] sm:$0xff] %vm1610, %v1578
      %1612 = vst.msk [vmem:[%s300 + $0x8] sm:$0xff] %vm1610, %v1579
      %1613 = vst.msk [vmem:[%s300 + $0x10] sm:$0xff] %vm1610, %v1580
      %1614 = vst.msk [vmem:[%s300 + $0x18] sm:$0xff] %vm1610, %v1581
      %1615 = vst.msk [vmem:[%s300 + $0x20] sm:$0xff] %vm1610, %v1582
      %1616 = vst.msk [vmem:[%s300 + $0x28] sm:$0xff] %vm1610, %v1583
      %1617 = vst.msk [vmem:[%s300 + $0x30] sm:$0xff] %vm1610, %v1584
      %1618 = vst.msk [vmem:[%s300 + $0x38] sm:$0xff] %vm1610, %v1585
      %1619 = vst.msk [vmem:[%s300 + $0x40] sm:$0xff] %vm1610, %v1586
      %1620 = vst.msk [vmem:[%s300 + $0x48] sm:$0xff] %vm1610, %v1587
      %1621 = vst.msk [vmem:[%s300 + $0x50] sm:$0xff] %vm1610, %v1588
      %1622 = vst.msk [vmem:[%s300 + $0x58] sm:$0xff] %vm1610, %v1589
      %1623 = vst.msk [vmem:[%s300 + $0x60] sm:$0xff] %vm1610, %v1590
      %1624 = vst.msk [vmem:[%s300 + $0x68] sm:$0xff] %vm1610, %v1591
      %1625 = vst.msk [vmem:[%s300 + $0x70] sm:$0xff] %vm1610, %v1592
      %1626 = vst.msk [vmem:[%s300 + $0x78] sm:$0xff] %vm1610, %v1593
      %1627 = vst.msk [vmem:[%s300 + $0x80] sm:$0xff] %vm1610, %v1594
      %1628 = vst.msk [vmem:[%s300 + $0x88] sm:$0xff] %vm1610, %v1595
      %1629 = vst.msk [vmem:[%s300 + $0x90] sm:$0xff] %vm1610, %v1596
      %1630 = vst.msk [vmem:[%s300 + $0x98] sm:$0xff] %vm1610, %v1597
      %1631 = vst.msk [vmem:[%s300 + $0xa0] sm:$0xff] %vm1610, %v1598
      %1632 = vst.msk [vmem:[%s300 + $0xa8] sm:$0xff] %vm1610, %v1599
      %1633 = vst.msk [vmem:[%s300 + $0xb0] sm:$0xff] %vm1610, %v1600
      %1634 = vst.msk [vmem:[%s300 + $0xb8] sm:$0xff] %vm1610, %v1601
      %1635 = vst.msk [vmem:[%s300 + $0xc0] sm:$0xff] %vm1610, %v1602
      %1636 = vst.msk [vmem:[%s300 + $0xc8] sm:$0xff] %vm1610, %v1603
      %1637 = vst.msk [vmem:[%s300 + $0xd0] sm:$0xff] %vm1610, %v1604
      %1638 = vst.msk [vmem:[%s300 + $0xd8] sm:$0xff] %vm1610, %v1605
      %1639 = vst.msk [vmem:[%s300 + $0xe0] sm:$0xff] %vm1610, %v1606
      %1640 = vst.msk [vmem:[%s300 + $0xe8] sm:$0xff] %vm1610, %v1607
      %1641 = vst.msk [vmem:[%s300 + $0xf0] sm:$0xff] %vm1610, %v1608
      %1642 = vst.msk [vmem:[%s300 + $0xf8] sm:$0xff] %vm1610, %v1609
      %s1643 = smul.u32 32, %s17
      %p1644 = scmp.lt.s32.totalorder %s1643, 63
      %s1645 = scalar_select %p1644, %s1643, 63
      %s1646 = smul.addr %s1645, 8
      %s1647 = scalar_lea.vmem %s6, %s1646
      // Predicated region
      $region45: #{nas201_cell_forward.3} parent=43 // pred_check
        %p1648 = pneg %p176
      $region46: #{nas201_cell_forward.3} parent=43 // pred_check_branch
        %1650 = sbr.rel (%p1648) target = $region48
      $region47: #{nas201_cell_forward.3} parent=43 // pred_region
        %s1651 = smul.u32 32, %s17
      $region48: #{nas201_cell_forward.3} parent=43 // pred_fallthru
        _
    $region44: #{nas201_cell_forward.3} parent=5 // pred_fallthru
      _
    %p1652 = scmp.le.s32.totalorder 2, %s12
    // Predicated region
    $region49: #{nas201_cell_forward.3} parent=5 // pred_check
      %p1653 = pneg %p1652
    $region50: #{nas201_cell_forward.3} parent=5 // pred_check_branch
      %1655 = sbr.rel (%p1653) target = $region52
    $region51: #{nas201_cell_forward.3} parent=5 // pred_region
      %s1656 = ssub.s32 %s12, 2
      // Predicated region
      $region53: #{nas201_cell_forward.3} parent=51 // pred_check
        %p1657 = pneg %p182
      $region54: #{nas201_cell_forward.3} parent=51 // pred_check_branch
        %1659 = sbr.rel (%p1657) target = $region56
      $region55: #{nas201_cell_forward.3} parent=51 // pred_region
        %s1660 = smul.u32 32, %s18
        %p1661 = scmp.lt.s32.totalorder %s1660, 63
        %s1662 = scalar_select %p1661, %s1660, 63
        %s1663 = smul.addr %s1662, 8
        %s1664 = scalar_lea.vmem %s6, %s1663
      $region56: #{nas201_cell_forward.3} parent=51 // pred_fallthru
        _
    $region52: #{nas201_cell_forward.3} parent=5 // pred_fallthru
      _
  $region6: #{nas201_cell_forward.3} parent=0 // loop_footer
    %s16 = sadd.s32 1, %s12
  $region7: #{nas201_cell_forward.3} parent=0 // loop_footer_branch
    %11 = sbr.rel target = $region3
  $region8: #{nas201_cell_forward.3} parent=0 // loop_exit
    _

// kernel: nas201_cell_forward.4
$region0: #{nas201_cell_forward.4}
  #allocation0 [shape = 'u32[]', space=smem, size = 0x4, offset = 0x4, fixed_abs, tag = 'smem constant byte address 0x4 - core index']
  #allocation1 [shape = 'u32[72,128]{1,0:T(1,128)}', space=vmem, size = 0x9000, scoped, tag = 'internal scratch']
  %s0 = inlined_call_operand.vmem [shape: f32[512,16], index: 0, kind: input, shape index: {}]
  %s1 = inlined_call_operand.vmem [shape: f32[512,144], index: 1, kind: input, shape index: {}]
  %s2 = inlined_call_operand.vmem [shape: f32[512,1], index: 2, kind: input, shape index: {}]
  %s3 = inlined_call_operand.vmem [shape: f32[144,32], index: 3, kind: input, shape index: {}]
  %s4 = inlined_call_operand.vmem [shape: f32[16,32], index: 4, kind: input, shape index: {}]
  %s5 = inlined_call_operand.vmem [shape: f32[144,32], index: 5, kind: input, shape index: {}]
  %s6 = inlined_call_operand.vmem [shape: f32[512,32], index: 6, kind: output, shape index: {}]
  %s7 = sld [smem:[#allocation0]]
  $region57: #{nas201_cell_forward.4} parent=0
    _
  %s9 = ssub.s32 1, %s7
  %s10 = scalar_select 0, %s9, %s7
  loop: start=0, step=1, limit=4
  $region2: #{nas201_cell_forward.4} parent=0 // loop_pre_header
    _
  $region3: #{nas201_cell_forward.4} parent=0 // loop_header
    %s12 = sphi 0, %s16
    %p13 = scmp.ge.s32.totalorder %s12, 4
    %s22 = sphi 0, %s24
    %s25 = sphi 0, %s22
    %s26 = sphi 0, %s25
    %s42 = sphi 0, %s26
    %s48 = sphi 0, %s50
    %s51 = sphi 0, %s48
    %s52 = sphi 0, %s51
    %s68 = sphi 0, %s52
    %s74 = sphi 0, %s76
    %s77 = sphi 0, %s74
    %s78 = sphi 0, %s77
    %s94 = sphi 0, %s78
    %s98 = sphi 0, %s98
    %s100 = sphi 0, %s98
    %s101 = sphi 0, %s100
    %s115 = sphi 0, %s101
    %s119 = sphi 0, %s119
    %s121 = sphi 0, %s119
    %s122 = sphi 0, %s121
    %s136 = sphi 0, %s122
    %s140 = sphi 0, %s140
    %s142 = sphi 0, %s140
    %s143 = sphi 0, %s142
    %s157 = sphi 0, %s143
    %s163 = sphi 0, %s165
    %s166 = sphi 0, %s163
    %s167 = sphi 0, %s166
    %s183 = sphi 0, %s167
  $region4: #{nas201_cell_forward.4} parent=0 // loop_header_branch
    %15 = sbr.rel (%p13) target = $region8
  $region5: #{nas201_cell_forward.4} parent=0 // loop_body
    %s17 = ssub.s32 %s12, 1
    %s18 = ssub.s32 %s12, 2
    %s19 = sadd.s32 %s12, 1
    %s20 = ssub.s32 %s12, %s19
    %p21 = scmp.eq.s32.totalorder %s20, 0
    %s23 = sadd.s32 %s22, 1
    %s24 = scalar_select %p21, %s22, %s23
    %p27 = pneg %p21
    %p28 = scmp.eq.s32.totalorder %s12, 1
    %p29 = por %p27, %p28
    %p30 = scmp.ne.s32.totalorder %s22, %s25
    %p31 = scmp.eq.s32.totalorder %s12, 0
    %p32 = por %p30, %p31
    %p33 = scmp.ne.s32.totalorder %s22, %s25
    %p34 = scmp.eq.s32.totalorder %s17, 1
    %p35 = por %p33, %p34
    %p36 = scmp.ne.s32.totalorder %s25, %s26
    %p37 = scmp.eq.s32.totalorder %s17, 0
    %p38 = por %p36, %p37
    %p39 = scmp.ne.s32.totalorder %s25, %s26
    %p40 = scmp.eq.s32.totalorder %s18, 1
    %p41 = por %p39, %p40
    %p43 = scmp.ne.s32.totalorder %s26, %s42
    %p44 = scmp.eq.s32.totalorder %s18, 0
    %p45 = por %p43, %p44
    %s46 = ssub.s32 %s12, %s19
    %p47 = scmp.eq.s32.totalorder %s46, 0
    %s49 = sadd.s32 %s48, 1
    %s50 = scalar_select %p47, %s48, %s49
    %p53 = pneg %p47
    %p54 = scmp.eq.s32.totalorder %s12, 1
    %p55 = por %p53, %p54
    %p56 = scmp.ne.s32.totalorder %s48, %s51
    %p57 = scmp.eq.s32.totalorder %s12, 0
    %p58 = por %p56, %p57
    %p59 = scmp.ne.s32.totalorder %s48, %s51
    %p60 = scmp.eq.s32.totalorder %s17, 1
    %p61 = por %p59, %p60
    %p62 = scmp.ne.s32.totalorder %s51, %s52
    %p63 = scmp.eq.s32.totalorder %s17, 0
    %p64 = por %p62, %p63
    %p65 = scmp.ne.s32.totalorder %s51, %s52
    %p66 = scmp.eq.s32.totalorder %s18, 1
    %p67 = por %p65, %p66
    %p69 = scmp.ne.s32.totalorder %s52, %s68
    %p70 = scmp.eq.s32.totalorder %s18, 0
    %p71 = por %p69, %p70
    %s72 = ssub.s32 %s12, %s19
    %p73 = scmp.eq.s32.totalorder %s72, 0
    %s75 = sadd.s32 %s74, 1
    %s76 = scalar_select %p73, %s74, %s75
    %p79 = pneg %p73
    %p80 = scmp.eq.s32.totalorder %s12, 1
    %p81 = por %p79, %p80
    %p82 = scmp.ne.s32.totalorder %s74, %s77
    %p83 = scmp.eq.s32.totalorder %s12, 0
    %p84 = por %p82, %p83
    %p85 = scmp.ne.s32.totalorder %s74, %s77
    %p86 = scmp.eq.s32.totalorder %s17, 1
    %p87 = por %p85, %p86
    %p88 = scmp.ne.s32.totalorder %s77, %s78
    %p89 = scmp.eq.s32.totalorder %s17, 0
    %p90 = por %p88, %p89
    %p91 = scmp.ne.s32.totalorder %s77, %s78
    %p92 = scmp.eq.s32.totalorder %s18, 1
    %p93 = por %p91, %p92
    %p95 = scmp.ne.s32.totalorder %s78, %s94
    %p96 = scmp.eq.s32.totalorder %s18, 0
    %p97 = por %p95, %p96
    %s99 = sadd.s32 %s98, 1
    %p102 = scmp.eq.s32.totalorder %s12, 1
    %p103 = scmp.ne.s32.totalorder %s98, %s100
    %p104 = scmp.eq.s32.totalorder %s12, 0
    %p105 = por %p103, %p104
    %p106 = scmp.ne.s32.totalorder %s98, %s100
    %p107 = scmp.eq.s32.totalorder %s17, 1
    %p108 = por %p106, %p107
    %p109 = scmp.ne.s32.totalorder %s100, %s101
    %p110 = scmp.eq.s32.totalorder %s17, 0
    %p111 = por %p109, %p110
    %p112 = scmp.ne.s32.totalorder %s100, %s101
    %p113 = scmp.eq.s32.totalorder %s18, 1
    %p114 = por %p112, %p113
    %p116 = scmp.ne.s32.totalorder %s101, %s115
    %p117 = scmp.eq.s32.totalorder %s18, 0
    %p118 = por %p116, %p117
    %s120 = sadd.s32 %s119, 1
    %p123 = scmp.eq.s32.totalorder %s12, 1
    %p124 = scmp.ne.s32.totalorder %s119, %s121
    %p125 = scmp.eq.s32.totalorder %s12, 0
    %p126 = por %p124, %p125
    %p127 = scmp.ne.s32.totalorder %s119, %s121
    %p128 = scmp.eq.s32.totalorder %s17, 1
    %p129 = por %p127, %p128
    %p130 = scmp.ne.s32.totalorder %s121, %s122
    %p131 = scmp.eq.s32.totalorder %s17, 0
    %p132 = por %p130, %p131
    %p133 = scmp.ne.s32.totalorder %s121, %s122
    %p134 = scmp.eq.s32.totalorder %s18, 1
    %p135 = por %p133, %p134
    %p137 = scmp.ne.s32.totalorder %s122, %s136
    %p138 = scmp.eq.s32.totalorder %s18, 0
    %p139 = por %p137, %p138
    %s141 = sadd.s32 %s140, 1
    %p144 = scmp.eq.s32.totalorder %s12, 1
    %p145 = scmp.ne.s32.totalorder %s140, %s142
    %p146 = scmp.eq.s32.totalorder %s12, 0
    %p147 = por %p145, %p146
    %p148 = scmp.ne.s32.totalorder %s140, %s142
    %p149 = scmp.eq.s32.totalorder %s17, 1
    %p150 = por %p148, %p149
    %p151 = scmp.ne.s32.totalorder %s142, %s143
    %p152 = scmp.eq.s32.totalorder %s17, 0
    %p153 = por %p151, %p152
    %p154 = scmp.ne.s32.totalorder %s142, %s143
    %p155 = scmp.eq.s32.totalorder %s18, 1
    %p156 = por %p154, %p155
    %p158 = scmp.ne.s32.totalorder %s143, %s157
    %p159 = scmp.eq.s32.totalorder %s18, 0
    %p160 = por %p158, %p159
    %s161 = ssub.s32 %s12, %s19
    %p162 = scmp.eq.s32.totalorder %s161, 0
    %s164 = sadd.s32 %s163, 1
    %s165 = scalar_select %p162, %s163, %s164
    %p168 = pneg %p162
    %p169 = scmp.eq.s32.totalorder %s12, 1
    %p170 = por %p168, %p169
    %p171 = scmp.ne.s32.totalorder %s163, %s166
    %p172 = scmp.eq.s32.totalorder %s12, 0
    %p173 = por %p171, %p172
    %p174 = scmp.ne.s32.totalorder %s163, %s166
    %p175 = scmp.eq.s32.totalorder %s17, 1
    %p176 = por %p174, %p175
    %p177 = scmp.ne.s32.totalorder %s166, %s167
    %p178 = scmp.eq.s32.totalorder %s17, 0
    %p179 = por %p177, %p178
    %p180 = scmp.ne.s32.totalorder %s166, %s167
    %p181 = scmp.eq.s32.totalorder %s18, 1
    %p182 = por %p180, %p181
    %p184 = scmp.ne.s32.totalorder %s167, %s183
    %p185 = scmp.eq.s32.totalorder %s18, 0
    %p186 = por %p184, %p185
    %p187 = scmp.le.s32.totalorder 1, %s12
    %p188 = scmp.lt.s32.totalorder %s12, 3
    %p189 = pnand %p187, %p188
    %p190 = pneg %p189
    // Predicated region
    $region9: #{nas201_cell_forward.4} parent=5 // pred_check
      _
    $region10: #{nas201_cell_forward.4} parent=5 // pred_check_branch
      %192 = sbr.rel (%p189) target = $region12
    $region11: #{nas201_cell_forward.4} parent=5 // pred_region
      %s193 = ssub.s32 %s12, 1
      // Predicated region
      $region13: #{nas201_cell_forward.4} parent=11 // pred_check
        %p194 = pneg %p111
      $region14: #{nas201_cell_forward.4} parent=11 // pred_check_branch
        %196 = sbr.rel (%p194) target = $region16
      $region15: #{nas201_cell_forward.4} parent=11 // pred_region
        _
      $region16: #{nas201_cell_forward.4} parent=11 // pred_fallthru
        _
      // Predicated region
      $region17: #{nas201_cell_forward.4} parent=11 // pred_check
        %p197 = pneg %p132
      $region18: #{nas201_cell_forward.4} parent=11 // pred_check_branch
        %199 = sbr.rel (%p197) target = $region20
      $region19: #{nas201_cell_forward.4} parent=11 // pred_region
        _
      $region20: #{nas201_cell_forward.4} parent=11 // pred_fallthru
        _
      // Predicated region
      $region21: #{nas201_cell_forward.4} parent=11 // pred_check
        %p200 = pneg %p153
      $region22: #{nas201_cell_forward.4} parent=11 // pred_check_branch
        %202 = sbr.rel (%p200) target = $region24
      $region23: #{nas201_cell_forward.4} parent=11 // pred_region
        _
      $region24: #{nas201_cell_forward.4} parent=11 // pred_fallthru
        _
    $region12: #{nas201_cell_forward.4} parent=5 // pred_fallthru
      _
    %p203 = scmp.lt.s32.totalorder %s12, 2
    // Predicated region
    $region25: #{nas201_cell_forward.4} parent=5 // pred_check
      %p204 = pneg %p203
    $region26: #{nas201_cell_forward.4} parent=5 // pred_check_branch
      %206 = sbr.rel (%p204) target = $region28
    $region27: #{nas201_cell_forward.4} parent=5 // pred_region
      // Predicated region
      $region29: #{nas201_cell_forward.4} parent=27 // pred_check
        %p207 = pneg %p32
      $region30: #{nas201_cell_forward.4} parent=27 // pred_check_branch
        %209 = sbr.rel (%p207) target = $region32
      $region31: #{nas201_cell_forward.4} parent=27 // pred_region
        %s210 = smul.u32 32, %s12
        %p211 = scmp.lt.s32.totalorder %s210, 63
        %s212 = scalar_select %p211, %s210, 63
        %s213 = smul.addr %s212, 8
        %s214 = scalar_lea.vmem %s0, %s213
        %s215 = smul.u32 32, %s12
      $region32: #{nas201_cell_forward.4} parent=27 // pred_fallthru
        _
      // Predicated region
      $region33: #{nas201_cell_forward.4} parent=27 // pred_check
        %p216 = pneg %p58
      $region34: #{nas201_cell_forward.4} parent=27 // pred_check_branch
        %218 = sbr.rel (%p216) target = $region36
      $region35: #{nas201_cell_forward.4} parent=27 // pred_region
        %s219 = smul.u32 32, %s12
        %p220 = scmp.lt.s32.totalorder %s219, 63
        %s221 = scalar_select %p220, %s219, 63
        %s222 = smul.addr %s221, 2
        %s223 = smul.addr %s222, 8
        %s224 = scalar_lea.vmem %s1, %s223
        %s225 = smul.u32 32, %s12
      $region36: #{nas201_cell_forward.4} parent=27 // pred_fallthru
        _
      // Predicated region
      $region37: #{nas201_cell_forward.4} parent=27 // pred_check
        %p226 = pneg %p84
      $region38: #{nas201_cell_forward.4} parent=27 // pred_check_branch
        %228 = sbr.rel (%p226) target = $region40
      $region39: #{nas201_cell_forward.4} parent=27 // pred_region
        %s229 = smul.u32 32, %s12
        %p230 = scmp.lt.s32.totalorder %s229, 63
        %s231 = scalar_select %p230, %s229, 63
        %s232 = smul.addr %s231, 8
        %s233 = scalar_lea.vmem %s2, %s232
        %s234 = smul.u32 32, %s12
      $region40: #{nas201_cell_forward.4} parent=27 // pred_fallthru
        _
    $region28: #{nas201_cell_forward.4} parent=5 // pred_fallthru
      _
    %p235 = scmp.le.s32.totalorder 1, %s12
    %p236 = scmp.lt.s32.totalorder %s12, 3
    %p237 = pnand %p235, %p236
    %p238 = pneg %p237
    // Predicated region
    $region41: #{nas201_cell_forward.4} parent=5 // pred_check
      _
    $region42: #{nas201_cell_forward.4} parent=5 // pred_check_branch
      %240 = sbr.rel (%p237) target = $region44
    $region43: #{nas201_cell_forward.4} parent=5 // pred_region
      %s241 = ssub.s32 %s12, 1
      %s242 = smul.u32 32, %s17
      %p243 = scmp.lt.s32.totalorder %s242, 63
      %s244 = scalar_select %p243, %s242, 63
      %s245 = smul.addr %s244, 8
      %s246 = scalar_lea.vmem %s0, %s245
      %p247 = pneg %p38
      %p248 = pneg %p35
      %s249 = smul.u32 32, %s17
      %p250 = scmp.lt.s32.totalorder %s249, 63
      %s251 = scalar_select %p250, %s249, 63
      %s252 = smul.addr %s251, 2
      %s253 = smul.addr %s252, 8
      %s254 = scalar_lea.vmem %s1, %s253
      %p255 = pneg %p64
      %p256 = pneg %p61
      %s257 = smul.u32 32, %s17
      %p258 = scmp.lt.s32.totalorder %s257, 63
      %s259 = scalar_select %p258, %s257, 63
      %s260 = smul.addr %s259, 8
      %s261 = scalar_lea.vmem %s2, %s260
      %p262 = pneg %p90
      %p263 = pneg %p87
      %p264 = pneg %p111
      %p265 = pneg %p108
      %p266 = pneg %p132
      %p267 = pneg %p129
      %p268 = pneg %p153
      %p269 = pneg %p150
      %p270 = pneg %p179
      %p271 = pneg %p176
      %s272 = smul.u32 32, %s17
      %p273 = scmp.lt.s32.totalorder %s272, 63
      %s274 = scalar_select %p273, %s272, 63
      %s275 = smul.addr %s274, 8
      %s276 = scalar_lea.vmem %s6, %s275
      %s277 = smul.u32 32, %s17
      %p278 = scmp.lt.s32.totalorder %s277, 63
      %s279 = scalar_select %p278, %s277, 63
      %s280 = smul.addr %s279, 8
      %s281 = scalar_lea.vmem %s0, %s280
      %s282 = smul.u32 32, %s17
      %s283 = smul.u32 32, %s17
      %p284 = scmp.lt.s32.totalorder %s283, 63
      %s285 = scalar_select %p284, %s283, 63
      %s286 = smul.addr %s285, 2
      %s287 = smul.addr %s286, 8
      %s288 = scalar_lea.vmem %s1, %s287
      %s289 = smul.u32 32, %s17
      %s290 = smul.u32 32, %s17
      %p291 = scmp.lt.s32.totalorder %s290, 63
      %s292 = scalar_select %p291, %s290, 63
      %s293 = smul.addr %s292, 8
      %s294 = scalar_lea.vmem %s2, %s293
      %s295 = smul.u32 32, %s17
      %s296 = smul.u32 32, %s17
      %p297 = scmp.lt.s32.totalorder %s296, 63
      %s298 = scalar_select %p297, %s296, 63
      %s299 = smul.addr %s298, 8
      %s300 = scalar_lea.vmem %s6, %s299
      %s301 = smul.u32 32, %s17
      %v302 = vld [vmem:[%s288] sm:$0xff]
      %v303 = vld [vmem:[%s288 + $0x8] sm:$0xff]
      %v304 = vld [vmem:[%s288 + $0x10] sm:$0xff]
      %v305 = vld [vmem:[%s288 + $0x18] sm:$0xff]
      %v306 = vld [vmem:[%s288 + $0x20] sm:$0xff]
      %v307 = vld [vmem:[%s288 + $0x28] sm:$0xff]
      %v308 = vld [vmem:[%s288 + $0x30] sm:$0xff]
      %v309 = vld [vmem:[%s288 + $0x38] sm:$0xff]
      %v310 = vld [vmem:[%s288 + $0x40] sm:$0xff]
      %v311 = vld [vmem:[%s288 + $0x48] sm:$0xff]
      %v312 = vld [vmem:[%s288 + $0x50] sm:$0xff]
      %v313 = vld [vmem:[%s288 + $0x58] sm:$0xff]
      %v314 = vld [vmem:[%s288 + $0x60] sm:$0xff]
      %v315 = vld [vmem:[%s288 + $0x68] sm:$0xff]
      %v316 = vld [vmem:[%s288 + $0x70] sm:$0xff]
      %v317 = vld [vmem:[%s288 + $0x78] sm:$0xff]
      %v318 = vld [vmem:[%s288 + $0x80] sm:$0xff]
      %v319 = vld [vmem:[%s288 + $0x88] sm:$0xff]
      %v320 = vld [vmem:[%s288 + $0x90] sm:$0xff]
      %v321 = vld [vmem:[%s288 + $0x98] sm:$0xff]
      %v322 = vld [vmem:[%s288 + $0xa0] sm:$0xff]
      %v323 = vld [vmem:[%s288 + $0xa8] sm:$0xff]
      %v324 = vld [vmem:[%s288 + $0xb0] sm:$0xff]
      %v325 = vld [vmem:[%s288 + $0xb8] sm:$0xff]
      %v326 = vld [vmem:[%s288 + $0xc0] sm:$0xff]
      %v327 = vld [vmem:[%s288 + $0xc8] sm:$0xff]
      %v328 = vld [vmem:[%s288 + $0xd0] sm:$0xff]
      %v329 = vld [vmem:[%s288 + $0xd8] sm:$0xff]
      %v330 = vld [vmem:[%s288 + $0xe0] sm:$0xff]
      %v331 = vld [vmem:[%s288 + $0xe8] sm:$0xff]
      %v332 = vld [vmem:[%s288 + $0xf0] sm:$0xff]
      %v333 = vld [vmem:[%s288 + $0xf8] sm:$0xff]
      %v334 = vld [vmem:[%s288 + $0x100] sm:$0xff]
      %v335 = vld [vmem:[%s288 + $0x108] sm:$0xff]
      %v336 = vld [vmem:[%s288 + $0x110] sm:$0xff]
      %v337 = vld [vmem:[%s288 + $0x118] sm:$0xff]
      %v338 = vld [vmem:[%s288 + $0x120] sm:$0xff]
      %v339 = vld [vmem:[%s288 + $0x128] sm:$0xff]
      %v340 = vld [vmem:[%s288 + $0x130] sm:$0xff]
      %v341 = vld [vmem:[%s288 + $0x138] sm:$0xff]
      %v342 = vld [vmem:[%s288 + $0x140] sm:$0xff]
      %v343 = vld [vmem:[%s288 + $0x148] sm:$0xff]
      %v344 = vld [vmem:[%s288 + $0x150] sm:$0xff]
      %v345 = vld [vmem:[%s288 + $0x158] sm:$0xff]
      %v346 = vld [vmem:[%s288 + $0x160] sm:$0xff]
      %v347 = vld [vmem:[%s288 + $0x168] sm:$0xff]
      %v348 = vld [vmem:[%s288 + $0x170] sm:$0xff]
      %v349 = vld [vmem:[%s288 + $0x178] sm:$0xff]
      %v350 = vld [vmem:[%s288 + $0x180] sm:$0xff]
      %v351 = vld [vmem:[%s288 + $0x188] sm:$0xff]
      %v352 = vld [vmem:[%s288 + $0x190] sm:$0xff]
      %v353 = vld [vmem:[%s288 + $0x198] sm:$0xff]
      %v354 = vld [vmem:[%s288 + $0x1a0] sm:$0xff]
      %v355 = vld [vmem:[%s288 + $0x1a8] sm:$0xff]
      %v356 = vld [vmem:[%s288 + $0x1b0] sm:$0xff]
      %v357 = vld [vmem:[%s288 + $0x1b8] sm:$0xff]
      %v358 = vld [vmem:[%s288 + $0x1c0] sm:$0xff]
      %v359 = vld [vmem:[%s288 + $0x1c8] sm:$0xff]
      %v360 = vld [vmem:[%s288 + $0x1d0] sm:$0xff]
      %v361 = vld [vmem:[%s288 + $0x1d8] sm:$0xff]
      %v362 = vld [vmem:[%s288 + $0x1e0] sm:$0xff]
      %v363 = vld [vmem:[%s288 + $0x1e8] sm:$0xff]
      %v364 = vld [vmem:[%s288 + $0x1f0] sm:$0xff]
      %v365 = vld [vmem:[%s288 + $0x1f8] sm:$0xff]
      %v366 = vmax.f32 %v302, 0.0
      %v367 = vmax.f32 %v303, 0.0
      %v368 = vmax.f32 %v304, 0.0
      %v369 = vmax.f32 %v305, 0.0
      %v370 = vmax.f32 %v306, 0.0
      %v371 = vmax.f32 %v307, 0.0
      %v372 = vmax.f32 %v308, 0.0
      %v373 = vmax.f32 %v309, 0.0
      %v374 = vmax.f32 %v310, 0.0
      %v375 = vmax.f32 %v311, 0.0
      %v376 = vmax.f32 %v312, 0.0
      %v377 = vmax.f32 %v313, 0.0
      %v378 = vmax.f32 %v314, 0.0
      %v379 = vmax.f32 %v315, 0.0
      %v380 = vmax.f32 %v316, 0.0
      %v381 = vmax.f32 %v317, 0.0
      %v382 = vmax.f32 %v318, 0.0
      %v383 = vmax.f32 %v319, 0.0
      %v384 = vmax.f32 %v320, 0.0
      %v385 = vmax.f32 %v321, 0.0
      %v386 = vmax.f32 %v322, 0.0
      %v387 = vmax.f32 %v323, 0.0
      %v388 = vmax.f32 %v324, 0.0
      %v389 = vmax.f32 %v325, 0.0
      %v390 = vmax.f32 %v326, 0.0
      %v391 = vmax.f32 %v327, 0.0
      %v392 = vmax.f32 %v328, 0.0
      %v393 = vmax.f32 %v329, 0.0
      %v394 = vmax.f32 %v330, 0.0
      %v395 = vmax.f32 %v331, 0.0
      %v396 = vmax.f32 %v332, 0.0
      %v397 = vmax.f32 %v333, 0.0
      %v398 = vmax.f32 %v334, 0.0
      %v399 = vmax.f32 %v335, 0.0
      %v400 = vmax.f32 %v336, 0.0
      %v401 = vmax.f32 %v337, 0.0
      %v402 = vmax.f32 %v338, 0.0
      %v403 = vmax.f32 %v339, 0.0
      %v404 = vmax.f32 %v340, 0.0
      %v405 = vmax.f32 %v341, 0.0
      %v406 = vmax.f32 %v342, 0.0
      %v407 = vmax.f32 %v343, 0.0
      %v408 = vmax.f32 %v344, 0.0
      %v409 = vmax.f32 %v345, 0.0
      %v410 = vmax.f32 %v346, 0.0
      %v411 = vmax.f32 %v347, 0.0
      %v412 = vmax.f32 %v348, 0.0
      %v413 = vmax.f32 %v349, 0.0
      %v414 = vmax.f32 %v350, 0.0
      %v415 = vmax.f32 %v351, 0.0
      %v416 = vmax.f32 %v352, 0.0
      %v417 = vmax.f32 %v353, 0.0
      %v418 = vmax.f32 %v354, 0.0
      %v419 = vmax.f32 %v355, 0.0
      %v420 = vmax.f32 %v356, 0.0
      %v421 = vmax.f32 %v357, 0.0
      %v422 = vmax.f32 %v358, 0.0
      %v423 = vmax.f32 %v359, 0.0
      %v424 = vmax.f32 %v360, 0.0
      %v425 = vmax.f32 %v361, 0.0
      %v426 = vmax.f32 %v362, 0.0
      %v427 = vmax.f32 %v363, 0.0
      %v428 = vmax.f32 %v364, 0.0
      %v429 = vmax.f32 %v365, 0.0
      %v430 = vld [vmem:[%s3] sm:$0xff]
      %v431 = vld [vmem:[%s3 + $0x8] sm:$0xff]
      %v432 = vld [vmem:[%s3 + $0x10] sm:$0xff]
      %v433 = vld [vmem:[%s3 + $0x18] sm:$0xff]
      %v434 = vld [vmem:[%s3 + $0x20] sm:$0xff]
      %v435 = vld [vmem:[%s3 + $0x28] sm:$0xff]
      %v436 = vld [vmem:[%s3 + $0x30] sm:$0xff]
      %v437 = vld [vmem:[%s3 + $0x38] sm:$0xff]
      %v438 = vld [vmem:[%s3 + $0x40] sm:$0xff]
      %v439 = vld [vmem:[%s3 + $0x48] sm:$0xff]
      %v440 = vld [vmem:[%s3 + $0x50] sm:$0xff]
      %v441 = vld [vmem:[%s3 + $0x58] sm:$0xff]
      %v442 = vld [vmem:[%s3 + $0x60] sm:$0xff]
      %v443 = vld [vmem:[%s3 + $0x68] sm:$0xff]
      %v444 = vld [vmem:[%s3 + $0x70] sm:$0xff]
      %v445 = vld [vmem:[%s3 + $0x78] sm:$0xff]
      %v446 = vld [vmem:[%s3 + $0x80] sm:$0xff]
      %v447 = vld [vmem:[%s3 + $0x88] sm:$0xff]
      %v448 = vld [vmem:[%s5] sm:$0xff]
      %v449 = vld [vmem:[%s5 + $0x8] sm:$0xff]
      %v450 = vld [vmem:[%s5 + $0x10] sm:$0xff]
      %v451 = vld [vmem:[%s5 + $0x18] sm:$0xff]
      %v452 = vld [vmem:[%s5 + $0x20] sm:$0xff]
      %v453 = vld [vmem:[%s5 + $0x28] sm:$0xff]
      %v454 = vld [vmem:[%s5 + $0x30] sm:$0xff]
      %v455 = vld [vmem:[%s5 + $0x38] sm:$0xff]
      %v456 = vld [vmem:[%s5 + $0x40] sm:$0xff]
      %v457 = vld [vmem:[%s5 + $0x48] sm:$0xff]
      %v458 = vld [vmem:[%s5 + $0x50] sm:$0xff]
      %v459 = vld [vmem:[%s5 + $0x58] sm:$0xff]
      %v460 = vld [vmem:[%s5 + $0x60] sm:$0xff]
      %v461 = vld [vmem:[%s5 + $0x68] sm:$0xff]
      %v462 = vld [vmem:[%s5 + $0x70] sm:$0xff]
      %v463 = vld [vmem:[%s5 + $0x78] sm:$0xff]
      %v464 = vld [vmem:[%s5 + $0x80] sm:$0xff]
      %v465 = vld [vmem:[%s5 + $0x88] sm:$0xff]
      %vm466 = vcmask 130048
      %v468 = vsel %vm466, %v303, 0
      %v471 = vsel %vm466, %v305, 0
      %v474 = vsel %vm466, %v307, 0
      %v477 = vsel %vm466, %v309, 0
      %v480 = vsel %vm466, %v311, 0
      %v483 = vsel %vm466, %v313, 0
      %v486 = vsel %vm466, %v315, 0
      %v489 = vsel %vm466, %v317, 0
      %v492 = vsel %vm466, %v319, 0
      %v495 = vsel %vm466, %v321, 0
      %v498 = vsel %vm466, %v323, 0
      %v501 = vsel %vm466, %v325, 0
      %v504 = vsel %vm466, %v327, 0
      %v507 = vsel %vm466, %v329, 0
      %v510 = vsel %vm466, %v331, 0
      %v513 = vsel %vm466, %v333, 0
      %v516 = vsel %vm466, %v335, 0
      %v519 = vsel %vm466, %v337, 0
      %v522 = vsel %vm466, %v339, 0
      %v525 = vsel %vm466, %v341, 0
      %v528 = vsel %vm466, %v343, 0
      %v531 = vsel %vm466, %v345, 0
      %v534 = vsel %vm466, %v347, 0
      %v537 = vsel %vm466, %v349, 0
      %v540 = vsel %vm466, %v351, 0
      %v543 = vsel %vm466, %v353, 0
      %v546 = vsel %vm466, %v355, 0
      %v549 = vsel %vm466, %v357, 0
      %v552 = vsel %vm466, %v359, 0
      %v555 = vsel %vm466, %v361, 0
      %v558 = vsel %vm466, %v363, 0
      %v561 = vsel %vm466, %v365, 0
      %563 = vmatpush.msra.mxu0 %v463
      %564 = vmatpush.msra.mxu0 %v462
      %565 = vmatpush.msra.mxu0 %v461
      %566 = vmatpush.msra.mxu0 %v460
      %567 = vmatpush.msra.mxu0 %v459
      %568 = vmatpush.msra.mxu0 %v458
      %569 = vmatpush.msra.mxu0 %v457
      %570 = vmatpush.msra.mxu0 %v456
      %571 = vmatpush.msra.mxu0 %v455
      %572 = vmatpush.msra.mxu0 %v454
      %573 = vmatpush.msra.mxu0 %v453
      %574 = vmatpush.msra.mxu0 %v452
      %575 = vmatpush.msra.mxu0 %v451
      %576 = vmatpush.msra.mxu0 %v450
      %577 = vmatpush.msra.mxu0 %v449
      %578 = vmatpush.msra.mxu0 %v448
      %579 = vmatmul.f32.gmra.mxu0 %v302
      %v580 = vpop.f32.mrf.mxu0
      %v581 = vadd.f32 0.0, %v580
      %582 = vmatmul.f32.gmra.mxu0 %v304
      %v583 = vpop.f32.mrf.mxu0
      %v584 = vadd.f32 0.0, %v583
      %585 = vmatmul.f32.gmra.mxu0 %v306
      %v586 = vpop.f32.mrf.mxu0
      %v587 = vadd.f32 0.0, %v586
      %588 = vmatmul.f32.gmra.mxu0 %v308
      %v589 = vpop.f32.mrf.mxu0
      %v590 = vadd.f32 0.0, %v589
      %591 = vmatmul.f32.gmra.mxu0 %v310
      %v592 = vpop.f32.mrf.mxu0
      %v593 = vadd.f32 0.0, %v592
      %594 = vmatmul.f32.gmra.mxu0 %v312
      %v595 = vpop.f32.mrf.mxu0
      %v596 = vadd.f32 0.0, %v595
      %597 = vmatmul.f32.gmra.mxu0 %v314
      %v598 = vpop.f32.mrf.mxu0
      %v599 = vadd.f32 0.0, %v598
      %600 = vmatmul.f32.gmra.mxu0 %v316
      %v601 = vpop.f32.mrf.mxu0
      %v602 = vadd.f32 0.0, %v601
      %603 = vmatmul.f32.gmra.mxu0 %v318
      %v604 = vpop.f32.mrf.mxu0
      %v605 = vadd.f32 0.0, %v604
      %606 = vmatmul.f32.gmra.mxu0 %v320
      %v607 = vpop.f32.mrf.mxu0
      %v608 = vadd.f32 0.0, %v607
      %609 = vmatmul.f32.gmra.mxu0 %v322
      %v610 = vpop.f32.mrf.mxu0
      %v611 = vadd.f32 0.0, %v610
      %612 = vmatmul.f32.gmra.mxu0 %v324
      %v613 = vpop.f32.mrf.mxu0
      %v614 = vadd.f32 0.0, %v613
      %615 = vmatmul.f32.gmra.mxu0 %v326
      %v616 = vpop.f32.mrf.mxu0
      %v617 = vadd.f32 0.0, %v616
      %618 = vmatmul.f32.gmra.mxu0 %v328
      %v619 = vpop.f32.mrf.mxu0
      %v620 = vadd.f32 0.0, %v619
      %621 = vmatmul.f32.gmra.mxu0 %v330
      %v622 = vpop.f32.mrf.mxu0
      %v623 = vadd.f32 0.0, %v622
      %624 = vmatmul.f32.gmra.mxu0 %v332
      %v625 = vpop.f32.mrf.mxu0
      %v626 = vadd.f32 0.0, %v625
      %627 = vmatmul.f32.gmra.mxu0 %v334
      %v628 = vpop.f32.mrf.mxu0
      %v629 = vadd.f32 0.0, %v628
      %630 = vmatmul.f32.gmra.mxu0 %v336
      %v631 = vpop.f32.mrf.mxu0
      %v632 = vadd.f32 0.0, %v631
      %633 = vmatmul.f32.gmra.mxu0 %v338
      %v634 = vpop.f32.mrf.mxu0
      %v635 = vadd.f32 0.0, %v634
      %636 = vmatmul.f32.gmra.mxu0 %v340
      %v637 = vpop.f32.mrf.mxu0
      %v638 = vadd.f32 0.0, %v637
      %639 = vmatmul.f32.gmra.mxu0 %v342
      %v640 = vpop.f32.mrf.mxu0
      %v641 = vadd.f32 0.0, %v640
      %642 = vmatmul.f32.gmra.mxu0 %v344
      %v643 = vpop.f32.mrf.mxu0
      %v644 = vadd.f32 0.0, %v643
      %645 = vmatmul.f32.gmra.mxu0 %v346
      %v646 = vpop.f32.mrf.mxu0
      %v647 = vadd.f32 0.0, %v646
      %648 = vmatmul.f32.gmra.mxu0 %v348
      %v649 = vpop.f32.mrf.mxu0
      %v650 = vadd.f32 0.0, %v649
      %651 = vmatmul.f32.gmra.mxu0 %v350
      %v652 = vpop.f32.mrf.mxu0
      %v653 = vadd.f32 0.0, %v652
      %654 = vmatmul.f32.gmra.mxu0 %v352
      %v655 = vpop.f32.mrf.mxu0
      %v656 = vadd.f32 0.0, %v655
      %657 = vmatmul.f32.gmra.mxu0 %v354
      %v658 = vpop.f32.mrf.mxu0
      %v659 = vadd.f32 0.0, %v658
      %660 = vmatmul.f32.gmra.mxu0 %v356
      %v661 = vpop.f32.mrf.mxu0
      %v662 = vadd.f32 0.0, %v661
      %663 = vmatmul.f32.gmra.mxu0 %v358
      %v664 = vpop.f32.mrf.mxu0
      %v665 = vadd.f32 0.0, %v664
      %666 = vmatmul.f32.gmra.mxu0 %v360
      %v667 = vpop.f32.mrf.mxu0
      %v668 = vadd.f32 0.0, %v667
      %669 = vmatmul.f32.gmra.mxu0 %v362
      %v670 = vpop.f32.mrf.mxu0
      %v671 = vadd.f32 0.0, %v670
      %672 = vmatmul.f32.gmra.mxu0 %v364
      %v673 = vpop.f32.mrf.mxu0
      %v674 = vadd.f32 0.0, %v673
      %675 = vdwg.mxu0
      %676 = vmatpush.msra.mxu0 0.0
      %677 = vmatpush.msra.mxu0 0.0
      %678 = vmatpush.msra.mxu0 0.0
      %679 = vmatpush.msra.mxu0 0.0
      %680 = vmatpush.msra.mxu0 0.0
      %681 = vmatpush.msra.mxu0 0.0
      %682 = vmatpush.msra.mxu0 0.0
      %683 = vmatpush.msra.mxu0 0.0
      %684 = vmatpush.msra.mxu0 0.0
      %685 = vmatpush.msra.mxu0 0.0
      %686 = vmatpush.msra.mxu0 0.0
      %687 = vmatpush.msra.mxu0 0.0
      %688 = vmatpush.msra.mxu0 0.0
      %689 = vmatpush.msra.mxu0 0.0
      %690 = vmatpush.msra.mxu0 %v465
      %691 = vmatpush.msra.mxu0 %v464
      %692 = vmatmul.f32.gmra.mxu0 %v468
      %v693 = vpop.f32.mrf.mxu0
      %v694 = vadd.f32 %v581, %v693
      %695 = vmatmul.f32.gmra.mxu0 %v471
      %v696 = vpop.f32.mrf.mxu0
      %v697 = vadd.f32 %v584, %v696
      %698 = vmatmul.f32.gmra.mxu0 %v474
      %v699 = vpop.f32.mrf.mxu0
      %v700 = vadd.f32 %v587, %v699
      %701 = vmatmul.f32.gmra.mxu0 %v477
      %v702 = vpop.f32.mrf.mxu0
      %v703 = vadd.f32 %v590, %v702
      %704 = vmatmul.f32.gmra.mxu0 %v480
      %v705 = vpop.f32.mrf.mxu0
      %v706 = vadd.f32 %v593, %v705
      %707 = vmatmul.f32.gmra.mxu0 %v483
      %v708 = vpop.f32.mrf.mxu0
      %v709 = vadd.f32 %v596, %v708
      %710 = vmatmul.f32.gmra.mxu0 %v486
      %v711 = vpop.f32.mrf.mxu0
      %v712 = vadd.f32 %v599, %v711
      %713 = vmatmul.f32.gmra.mxu0 %v489
      %v714 = vpop.f32.mrf.mxu0
      %v715 = vadd.f32 %v602, %v714
      %716 = vmatmul.f32.gmra.mxu0 %v492
      %v717 = vpop.f32.mrf.mxu0
      %v718 = vadd.f32 %v605, %v717
      %719 = vmatmul.f32.gmra.mxu0 %v495
      %v720 = vpop.f32.mrf.mxu0
      %v721 = vadd.f32 %v608, %v720
      %722 = vmatmul.f32.gmra.mxu0 %v498
      %v723 = vpop.f32.mrf.mxu0
      %v724 = vadd.f32 %v611, %v723
      %725 = vmatmul.f32.gmra.mxu0 %v501
      %v726 = vpop.f32.mrf.mxu0
      %v727 = vadd.f32 %v614, %v726
      %728 = vmatmul.f32.gmra.mxu0 %v504
      %v729 = vpop.f32.mrf.mxu0
      %v730 = vadd.f32 %v617, %v729
      %731 = vmatmul.f32.gmra.mxu0 %v507
      %v732 = vpop.f32.mrf.mxu0
      %v733 = vadd.f32 %v620, %v732
      %734 = vmatmul.f32.gmra.mxu0 %v510
      %v735 = vpop.f32.mrf.mxu0
      %v736 = vadd.f32 %v623, %v735
      %737 = vmatmul.f32.gmra.mxu0 %v513
      %v738 = vpop.f32.mrf.mxu0
      %v739 = vadd.f32 %v626, %v738
      %740 = vmatmul.f32.gmra.mxu0 %v516
      %v741 = vpop.f32.mrf.mxu0
      %v742 = vadd.f32 %v629, %v741
      %743 = vmatmul.f32.gmra.mxu0 %v519
      %v744 = vpop.f32.mrf.mxu0
      %v745 = vadd.f32 %v632, %v744
      %746 = vmatmul.f32.gmra.mxu0 %v522
      %v747 = vpop.f32.mrf.mxu0
      %v748 = vadd.f32 %v635, %v747
      %749 = vmatmul.f32.gmra.mxu0 %v525
      %v750 = vpop.f32.mrf.mxu0
      %v751 = vadd.f32 %v638, %v750
      %752 = vmatmul.f32.gmra.mxu0 %v528
      %v753 = vpop.f32.mrf.mxu0
      %v754 = vadd.f32 %v641, %v753
      %755 = vmatmul.f32.gmra.mxu0 %v531
      %v756 = vpop.f32.mrf.mxu0
      %v757 = vadd.f32 %v644, %v756
      %758 = vmatmul.f32.gmra.mxu0 %v534
      %v759 = vpop.f32.mrf.mxu0
      %v760 = vadd.f32 %v647, %v759
      %761 = vmatmul.f32.gmra.mxu0 %v537
      %v762 = vpop.f32.mrf.mxu0
      %v763 = vadd.f32 %v650, %v762
      %764 = vmatmul.f32.gmra.mxu0 %v540
      %v765 = vpop.f32.mrf.mxu0
      %v766 = vadd.f32 %v653, %v765
      %767 = vmatmul.f32.gmra.mxu0 %v543
      %v768 = vpop.f32.mrf.mxu0
      %v769 = vadd.f32 %v656, %v768
      %770 = vmatmul.f32.gmra.mxu0 %v546
      %v771 = vpop.f32.mrf.mxu0
      %v772 = vadd.f32 %v659, %v771
      %773 = vmatmul.f32.gmra.mxu0 %v549
      %v774 = vpop.f32.mrf.mxu0
      %v775 = vadd.f32 %v662, %v774
      %776 = vmatmul.f32.gmra.mxu0 %v552
      %v777 = vpop.f32.mrf.mxu0
      %v778 = vadd.f32 %v665, %v777
      %779 = vmatmul.f32.gmra.mxu0 %v555
      %v780 = vpop.f32.mrf.mxu0
      %v781 = vadd.f32 %v668, %v780
      %782 = vmatmul.f32.gmra.mxu0 %v558
      %v783 = vpop.f32.mrf.mxu0
      %v784 = vadd.f32 %v671, %v783
      %785 = vmatmul.f32.gmra.mxu0 %v561
      %v786 = vpop.f32.mrf.mxu0
      %v787 = vadd.f32 %v674, %v786
      %788 = vdwg.mxu0
      %v789 = vld [vmem:[%s294] sm:$0xff]
      %v790 = vld [vmem:[%s294 + $0x8] sm:$0xff]
      %v791 = vld [vmem:[%s294 + $0x10] sm:$0xff]
      %v792 = vld [vmem:[%s294 + $0x18] sm:$0xff]
      %v793 = vld [vmem:[%s294 + $0x20] sm:$0xff]
      %v794 = vld [vmem:[%s294 + $0x28] sm:$0xff]
      %v795 = vld [vmem:[%s294 + $0x30] sm:$0xff]
      %v796 = vld [vmem:[%s294 + $0x38] sm:$0xff]
      %v797 = vld [vmem:[%s294 + $0x40] sm:$0xff]
      %v798 = vld [vmem:[%s294 + $0x48] sm:$0xff]
      %v799 = vld [vmem:[%s294 + $0x50] sm:$0xff]
      %v800 = vld [vmem:[%s294 + $0x58] sm:$0xff]
      %v801 = vld [vmem:[%s294 + $0x60] sm:$0xff]
      %v802 = vld [vmem:[%s294 + $0x68] sm:$0xff]
      %v803 = vld [vmem:[%s294 + $0x70] sm:$0xff]
      %v804 = vld [vmem:[%s294 + $0x78] sm:$0xff]
      %v805 = vld [vmem:[%s294 + $0x80] sm:$0xff]
      %v806 = vld [vmem:[%s294 + $0x88] sm:$0xff]
      %v807 = vld [vmem:[%s294 + $0x90] sm:$0xff]
      %v808 = vld [vmem:[%s294 + $0x98] sm:$0xff]
      %v809 = vld [vmem:[%s294 + $0xa0] sm:$0xff]
      %v810 = vld [vmem:[%s294 + $0xa8] sm:$0xff]
      %v811 = vld [vmem:[%s294 + $0xb0] sm:$0xff]
      %v812 = vld [vmem:[%s294 + $0xb8] sm:$0xff]
      %v813 = vld [vmem:[%s294 + $0xc0] sm:$0xff]
      %v814 = vld [vmem:[%s294 + $0xc8] sm:$0xff]
      %v815 = vld [vmem:[%s294 + $0xd0] sm:$0xff]
      %v816 = vld [vmem:[%s294 + $0xd8] sm:$0xff]
      %v817 = vld [vmem:[%s294 + $0xe0] sm:$0xff]
      %v818 = vld [vmem:[%s294 + $0xe8] sm:$0xff]
      %v819 = vld [vmem:[%s294 + $0xf0] sm:$0xff]
      %v820 = vld [vmem:[%s294 + $0xf8] sm:$0xff]
      %822 = vset.pattern.permute.xlu0 0
      %823 = vperm.xlu0 %822, %v789
      %v824 = vpop.permute.xlu0 %823
      %827 = vset.pattern.permute.xlu0 0
      %828 = vperm.xlu0 %827, %v790
      %v829 = vpop.permute.xlu0 %828
      %832 = vset.pattern.permute.xlu0 0
      %833 = vperm.xlu0 %832, %v791
      %v834 = vpop.permute.xlu0 %833
      %837 = vset.pattern.permute.xlu0 0
      %838 = vperm.xlu0 %837, %v792
      %v839 = vpop.permute.xlu0 %838
      %842 = vset.pattern.permute.xlu0 0
      %843 = vperm.xlu0 %842, %v793
      %v844 = vpop.permute.xlu0 %843
      %847 = vset.pattern.permute.xlu0 0
      %848 = vperm.xlu0 %847, %v794
      %v849 = vpop.permute.xlu0 %848
      %852 = vset.pattern.permute.xlu0 0
      %853 = vperm.xlu0 %852, %v795
      %v854 = vpop.permute.xlu0 %853
      %857 = vset.pattern.permute.xlu0 0
      %858 = vperm.xlu0 %857, %v796
      %v859 = vpop.permute.xlu0 %858
      %862 = vset.pattern.permute.xlu0 0
      %863 = vperm.xlu0 %862, %v797
      %v864 = vpop.permute.xlu0 %863
      %867 = vset.pattern.permute.xlu0 0
      %868 = vperm.xlu0 %867, %v798
      %v869 = vpop.permute.xlu0 %868
      %872 = vset.pattern.permute.xlu0 0
      %873 = vperm.xlu0 %872, %v799
      %v874 = vpop.permute.xlu0 %873
      %877 = vset.pattern.permute.xlu0 0
      %878 = vperm.xlu0 %877, %v800
      %v879 = vpop.permute.xlu0 %878
      %882 = vset.pattern.permute.xlu0 0
      %883 = vperm.xlu0 %882, %v801
      %v884 = vpop.permute.xlu0 %883
      %887 = vset.pattern.permute.xlu0 0
      %888 = vperm.xlu0 %887, %v802
      %v889 = vpop.permute.xlu0 %888
      %892 = vset.pattern.permute.xlu0 0
      %893 = vperm.xlu0 %892, %v803
      %v894 = vpop.permute.xlu0 %893
      %897 = vset.pattern.permute.xlu0 0
      %898 = vperm.xlu0 %897, %v804
      %v899 = vpop.permute.xlu0 %898
      %902 = vset.pattern.permute.xlu0 0
      %903 = vperm.xlu0 %902, %v805
      %v904 = vpop.permute.xlu0 %903
      %907 = vset.pattern.permute.xlu0 0
      %908 = vperm.xlu0 %907, %v806
      %v909 = vpop.permute.xlu0 %908
      %912 = vset.pattern.permute.xlu0 0
      %913 = vperm.xlu0 %912, %v807
      %v914 = vpop.permute.xlu0 %913
      %917 = vset.pattern.permute.xlu0 0
      %918 = vperm.xlu0 %917, %v808
      %v919 = vpop.permute.xlu0 %918
      %922 = vset.pattern.permute.xlu0 0
      %923 = vperm.xlu0 %922, %v809
      %v924 = vpop.permute.xlu0 %923
      %927 = vset.pattern.permute.xlu0 0
      %928 = vperm.xlu0 %927, %v810
      %v929 = vpop.permute.xlu0 %928
      %932 = vset.pattern.permute.xlu0 0
      %933 = vperm.xlu0 %932, %v811
      %v934 = vpop.permute.xlu0 %933
      %937 = vset.pattern.permute.xlu0 0
      %938 = vperm.xlu0 %937, %v812
      %v939 = vpop.permute.xlu0 %938
      %942 = vset.pattern.permute.xlu0 0
      %943 = vperm.xlu0 %942, %v813
      %v944 = vpop.permute.xlu0 %943
      %947 = vset.pattern.permute.xlu0 0
      %948 = vperm.xlu0 %947, %v814
      %v949 = vpop.permute.xlu0 %948
      %952 = vset.pattern.permute.xlu0 0
      %953 = vperm.xlu0 %952, %v815
      %v954 = vpop.permute.xlu0 %953
      %957 = vset.pattern.permute.xlu0 0
      %958 = vperm.xlu0 %957, %v816
      %v959 = vpop.permute.xlu0 %958
      %962 = vset.pattern.permute.xlu0 0
      %963 = vperm.xlu0 %962, %v817
      %v964 = vpop.permute.xlu0 %963
      %967 = vset.pattern.permute.xlu0 0
      %968 = vperm.xlu0 %967, %v818
      %v969 = vpop.permute.xlu0 %968
      %972 = vset.pattern.permute.xlu0 0
      %973 = vperm.xlu0 %972, %v819
      %v974 = vpop.permute.xlu0 %973
      %977 = vset.pattern.permute.xlu0 0
      %978 = vperm.xlu0 %977, %v820
      %v979 = vpop.permute.xlu0 %978
      %v981 = vmul.f32 %v694, %v824
      %v982 = vmul.f32 %v697, %v829
      %v983 = vmul.f32 %v700, %v834
      %v984 = vmul.f32 %v703, %v839
      %v985 = vmul.f32 %v706, %v844
      %v986 = vmul.f32 %v709, %v849
      %v987 = vmul.f32 %v712, %v854
      %v988 = vmul.f32 %v715, %v859
      %v989 = vmul.f32 %v718, %v864
      %v990 = vmul.f32 %v721, %v869
      %v991 = vmul.f32 %v724, %v874
      %v992 = vmul.f32 %v727, %v879
      %v993 = vmul.f32 %v730, %v884
      %v994 = vmul.f32 %v733, %v889
      %v995 = vmul.f32 %v736, %v894
      %v996 = vmul.f32 %v739, %v899
      %v997 = vmul.f32 %v742, %v904
      %v998 = vmul.f32 %v745, %v909
      %v999 = vmul.f32 %v748, %v914
      %v1000 = vmul.f32 %v751, %v919
      %v1001 = vmul.f32 %v754, %v924
      %v1002 = vmul.f32 %v757, %v929
      %v1003 = vmul.f32 %v760, %v934
      %v1004 = vmul.f32 %v763, %v939
      %v1005 = vmul.f32 %v766, %v944
      %v1006 = vmul.f32 %v769, %v949
      %v1007 = vmul.f32 %v772, %v954
      %v1008 = vmul.f32 %v775, %v959
      %v1009 = vmul.f32 %v778, %v964
      %v1010 = vmul.f32 %v781, %v969
      %v1011 = vmul.f32 %v784, %v974
      %v1012 = vmul.f32 %v787, %v979
      %v1014 = vsel %vm466, %v367, 0
      %v1017 = vsel %vm466, %v369, 0
      %v1020 = vsel %vm466, %v371, 0
      %v1023 = vsel %vm466, %v373, 0
      %v1026 = vsel %vm466, %v375, 0
      %v1029 = vsel %vm466, %v377, 0
      %v1032 = vsel %vm466, %v379, 0
      %v1035 = vsel %vm466, %v381, 0
      %v1038 = vsel %vm466, %v383, 0
      %v1041 = vsel %vm466, %v385, 0
      %v1044 = vsel %vm466, %v387, 0
      %v1047 = vsel %vm466, %v389, 0
      %v1050 = vsel %vm466, %v391, 0
      %v1053 = vsel %vm466, %v393, 0
      %v1056 = vsel %vm466, %v395, 0
      %v1059 = vsel %vm466, %v397, 0
      %v1062 = vsel %vm466, %v399, 0
      %v1065 = vsel %vm466, %v401, 0
      %v1068 = vsel %vm466, %v403, 0
      %v1071 = vsel %vm466, %v405, 0
      %v1074 = vsel %vm466, %v407, 0
      %v1077 = vsel %vm466, %v409, 0
      %v1080 = vsel %vm466, %v411, 0
      %v1083 = vsel %vm466, %v413, 0
      %v1086 = vsel %vm466, %v415, 0
      %v1089 = vsel %vm466, %v417, 0
      %v1092 = vsel %vm466, %v419, 0
      %v1095 = vsel %vm466, %v421, 0
      %v1098 = vsel %vm466, %v423, 0
      %v1101 = vsel %vm466, %v425, 0
      %v1104 = vsel %vm466, %v427, 0
      %v1107 = vsel %vm466, %v429, 0
      %1109 = vmatpush.msra.mxu0 %v445
      %1110 = vmatpush.msra.mxu0 %v444
      %1111 = vmatpush.msra.mxu0 %v443
      %1112 = vmatpush.msra.mxu0 %v442
      %1113 = vmatpush.msra.mxu0 %v441
      %1114 = vmatpush.msra.mxu0 %v440
      %1115 = vmatpush.msra.mxu0 %v439
      %1116 = vmatpush.msra.mxu0 %v438
      %1117 = vmatpush.msra.mxu0 %v437
      %1118 = vmatpush.msra.mxu0 %v436
      %1119 = vmatpush.msra.mxu0 %v435
      %1120 = vmatpush.msra.mxu0 %v434
      %1121 = vmatpush.msra.mxu0 %v433
      %1122 = vmatpush.msra.mxu0 %v432
      %1123 = vmatpush.msra.mxu0 %v431
      %1124 = vmatpush.msra.mxu0 %v430
      %1125 = vmatmul.f32.gmra.mxu0 %v366
      %v1126 = vpop.f32.mrf.mxu0
      %v1127 = vadd.f32 %v981, %v1126
      %1128 = vmatmul.f32.gmra.mxu0 %v368
      %v1129 = vpop.f32.mrf.mxu0
      %v1130 = vadd.f32 %v982, %v1129
      %1131 = vmatmul.f32.gmra.mxu0 %v370
      %v1132 = vpop.f32.mrf.mxu0
      %v1133 = vadd.f32 %v983, %v1132
      %1134 = vmatmul.f32.gmra.mxu0 %v372
      %v1135 = vpop.f32.mrf.mxu0
      %v1136 = vadd.f32 %v984, %v1135
      %1137 = vmatmul.f32.gmra.mxu0 %v374
      %v1138 = vpop.f32.mrf.mxu0
      %v1139 = vadd.f32 %v985, %v1138
      %1140 = vmatmul.f32.gmra.mxu0 %v376
      %v1141 = vpop.f32.mrf.mxu0
      %v1142 = vadd.f32 %v986, %v1141
      %1143 = vmatmul.f32.gmra.mxu0 %v378
      %v1144 = vpop.f32.mrf.mxu0
      %v1145 = vadd.f32 %v987, %v1144
      %1146 = vmatmul.f32.gmra.mxu0 %v380
      %v1147 = vpop.f32.mrf.mxu0
      %v1148 = vadd.f32 %v988, %v1147
      %1149 = vmatmul.f32.gmra.mxu0 %v382
      %v1150 = vpop.f32.mrf.mxu0
      %v1151 = vadd.f32 %v989, %v1150
      %1152 = vmatmul.f32.gmra.mxu0 %v384
      %v1153 = vpop.f32.mrf.mxu0
      %v1154 = vadd.f32 %v990, %v1153
      %1155 = vmatmul.f32.gmra.mxu0 %v386
      %v1156 = vpop.f32.mrf.mxu0
      %v1157 = vadd.f32 %v991, %v1156
      %1158 = vmatmul.f32.gmra.mxu0 %v388
      %v1159 = vpop.f32.mrf.mxu0
      %v1160 = vadd.f32 %v992, %v1159
      %1161 = vmatmul.f32.gmra.mxu0 %v390
      %v1162 = vpop.f32.mrf.mxu0
      %v1163 = vadd.f32 %v993, %v1162
      %1164 = vmatmul.f32.gmra.mxu0 %v392
      %v1165 = vpop.f32.mrf.mxu0
      %v1166 = vadd.f32 %v994, %v1165
      %1167 = vmatmul.f32.gmra.mxu0 %v394
      %v1168 = vpop.f32.mrf.mxu0
      %v1169 = vadd.f32 %v995, %v1168
      %1170 = vmatmul.f32.gmra.mxu0 %v396
      %v1171 = vpop.f32.mrf.mxu0
      %v1172 = vadd.f32 %v996, %v1171
      %1173 = vmatmul.f32.gmra.mxu0 %v398
      %v1174 = vpop.f32.mrf.mxu0
      %v1175 = vadd.f32 %v997, %v1174
      %1176 = vmatmul.f32.gmra.mxu0 %v400
      %v1177 = vpop.f32.mrf.mxu0
      %v1178 = vadd.f32 %v998, %v1177
      %1179 = vmatmul.f32.gmra.mxu0 %v402
      %v1180 = vpop.f32.mrf.mxu0
      %v1181 = vadd.f32 %v999, %v1180
      %1182 = vmatmul.f32.gmra.mxu0 %v404
      %v1183 = vpop.f32.mrf.mxu0
      %v1184 = vadd.f32 %v1000, %v1183
      %1185 = vmatmul.f32.gmra.mxu0 %v406
      %v1186 = vpop.f32.mrf.mxu0
      %v1187 = vadd.f32 %v1001, %v1186
      %1188 = vmatmul.f32.gmra.mxu0 %v408
      %v1189 = vpop.f32.mrf.mxu0
      %v1190 = vadd.f32 %v1002, %v1189
      %1191 = vmatmul.f32.gmra.mxu0 %v410
      %v1192 = vpop.f32.mrf.mxu0
      %v1193 = vadd.f32 %v1003, %v1192
      %1194 = vmatmul.f32.gmra.mxu0 %v412
      %v1195 = vpop.f32.mrf.mxu0
      %v1196 = vadd.f32 %v1004, %v1195
      %1197 = vmatmul.f32.gmra.mxu0 %v414
      %v1198 = vpop.f32.mrf.mxu0
      %v1199 = vadd.f32 %v1005, %v1198
      %1200 = vmatmul.f32.gmra.mxu0 %v416
      %v1201 = vpop.f32.mrf.mxu0
      %v1202 = vadd.f32 %v1006, %v1201
      %1203 = vmatmul.f32.gmra.mxu0 %v418
      %v1204 = vpop.f32.mrf.mxu0
      %v1205 = vadd.f32 %v1007, %v1204
      %1206 = vmatmul.f32.gmra.mxu0 %v420
      %v1207 = vpop.f32.mrf.mxu0
      %v1208 = vadd.f32 %v1008, %v1207
      %1209 = vmatmul.f32.gmra.mxu0 %v422
      %v1210 = vpop.f32.mrf.mxu0
      %v1211 = vadd.f32 %v1009, %v1210
      %1212 = vmatmul.f32.gmra.mxu0 %v424
      %v1213 = vpop.f32.mrf.mxu0
      %v1214 = vadd.f32 %v1010, %v1213
      %1215 = vmatmul.f32.gmra.mxu0 %v426
      %v1216 = vpop.f32.mrf.mxu0
      %v1217 = vadd.f32 %v1011, %v1216
      %1218 = vmatmul.f32.gmra.mxu0 %v428
      %v1219 = vpop.f32.mrf.mxu0
      %v1220 = vadd.f32 %v1012, %v1219
      %1221 = vdwg.mxu0
      %1222 = vmatpush.msra.mxu0 0.0
      %1223 = vmatpush.msra.mxu0 0.0
      %1224 = vmatpush.msra.mxu0 0.0
      %1225 = vmatpush.msra.mxu0 0.0
      %1226 = vmatpush.msra.mxu0 0.0
      %1227 = vmatpush.msra.mxu0 0.0
      %1228 = vmatpush.msra.mxu0 0.0
      %1229 = vmatpush.msra.mxu0 0.0
      %1230 = vmatpush.msra.mxu0 0.0
      %1231 = vmatpush.msra.mxu0 0.0
      %1232 = vmatpush.msra.mxu0 0.0
      %1233 = vmatpush.msra.mxu0 0.0
      %1234 = vmatpush.msra.mxu0 0.0
      %1235 = vmatpush.msra.mxu0 0.0
      %1236 = vmatpush.msra.mxu0 %v447
      %1237 = vmatpush.msra.mxu0 %v446
      %1238 = vmatmul.f32.gmra.mxu0 %v1014
      %v1239 = vpop.f32.mrf.mxu0
      %v1240 = vadd.f32 %v1127, %v1239
      %1241 = vmatmul.f32.gmra.mxu0 %v1017
      %v1242 = vpop.f32.mrf.mxu0
      %v1243 = vadd.f32 %v1130, %v1242
      %1244 = vmatmul.f32.gmra.mxu0 %v1020
      %v1245 = vpop.f32.mrf.mxu0
      %v1246 = vadd.f32 %v1133, %v1245
      %1247 = vmatmul.f32.gmra.mxu0 %v1023
      %v1248 = vpop.f32.mrf.mxu0
      %v1249 = vadd.f32 %v1136, %v1248
      %1250 = vmatmul.f32.gmra.mxu0 %v1026
      %v1251 = vpop.f32.mrf.mxu0
      %v1252 = vadd.f32 %v1139, %v1251
      %1253 = vmatmul.f32.gmra.mxu0 %v1029
      %v1254 = vpop.f32.mrf.mxu0
      %v1255 = vadd.f32 %v1142, %v1254
      %1256 = vmatmul.f32.gmra.mxu0 %v1032
      %v1257 = vpop.f32.mrf.mxu0
      %v1258 = vadd.f32 %v1145, %v1257
      %1259 = vmatmul.f32.gmra.mxu0 %v1035
      %v1260 = vpop.f32.mrf.mxu0
      %v1261 = vadd.f32 %v1148, %v1260
      %1262 = vmatmul.f32.gmra.mxu0 %v1038
      %v1263 = vpop.f32.mrf.mxu0
      %v1264 = vadd.f32 %v1151, %v1263
      %1265 = vmatmul.f32.gmra.mxu0 %v1041
      %v1266 = vpop.f32.mrf.mxu0
      %v1267 = vadd.f32 %v1154, %v1266
      %1268 = vmatmul.f32.gmra.mxu0 %v1044
      %v1269 = vpop.f32.mrf.mxu0
      %v1270 = vadd.f32 %v1157, %v1269
      %1271 = vmatmul.f32.gmra.mxu0 %v1047
      %v1272 = vpop.f32.mrf.mxu0
      %v1273 = vadd.f32 %v1160, %v1272
      %1274 = vmatmul.f32.gmra.mxu0 %v1050
      %v1275 = vpop.f32.mrf.mxu0
      %v1276 = vadd.f32 %v1163, %v1275
      %1277 = vmatmul.f32.gmra.mxu0 %v1053
      %v1278 = vpop.f32.mrf.mxu0
      %v1279 = vadd.f32 %v1166, %v1278
      %1280 = vmatmul.f32.gmra.mxu0 %v1056
      %v1281 = vpop.f32.mrf.mxu0
      %v1282 = vadd.f32 %v1169, %v1281
      %1283 = vmatmul.f32.gmra.mxu0 %v1059
      %v1284 = vpop.f32.mrf.mxu0
      %v1285 = vadd.f32 %v1172, %v1284
      %1286 = vmatmul.f32.gmra.mxu0 %v1062
      %v1287 = vpop.f32.mrf.mxu0
      %v1288 = vadd.f32 %v1175, %v1287
      %1289 = vmatmul.f32.gmra.mxu0 %v1065
      %v1290 = vpop.f32.mrf.mxu0
      %v1291 = vadd.f32 %v1178, %v1290
      %1292 = vmatmul.f32.gmra.mxu0 %v1068
      %v1293 = vpop.f32.mrf.mxu0
      %v1294 = vadd.f32 %v1181, %v1293
      %1295 = vmatmul.f32.gmra.mxu0 %v1071
      %v1296 = vpop.f32.mrf.mxu0
      %v1297 = vadd.f32 %v1184, %v1296
      %1298 = vmatmul.f32.gmra.mxu0 %v1074
      %v1299 = vpop.f32.mrf.mxu0
      %v1300 = vadd.f32 %v1187, %v1299
      %1301 = vmatmul.f32.gmra.mxu0 %v1077
      %v1302 = vpop.f32.mrf.mxu0
      %v1303 = vadd.f32 %v1190, %v1302
      %1304 = vmatmul.f32.gmra.mxu0 %v1080
      %v1305 = vpop.f32.mrf.mxu0
      %v1306 = vadd.f32 %v1193, %v1305
      %1307 = vmatmul.f32.gmra.mxu0 %v1083
      %v1308 = vpop.f32.mrf.mxu0
      %v1309 = vadd.f32 %v1196, %v1308
      %1310 = vmatmul.f32.gmra.mxu0 %v1086
      %v1311 = vpop.f32.mrf.mxu0
      %v1312 = vadd.f32 %v1199, %v1311
      %1313 = vmatmul.f32.gmra.mxu0 %v1089
      %v1314 = vpop.f32.mrf.mxu0
      %v1315 = vadd.f32 %v1202, %v1314
      %1316 = vmatmul.f32.gmra.mxu0 %v1092
      %v1317 = vpop.f32.mrf.mxu0
      %v1318 = vadd.f32 %v1205, %v1317
      %1319 = vmatmul.f32.gmra.mxu0 %v1095
      %v1320 = vpop.f32.mrf.mxu0
      %v1321 = vadd.f32 %v1208, %v1320
      %1322 = vmatmul.f32.gmra.mxu0 %v1098
      %v1323 = vpop.f32.mrf.mxu0
      %v1324 = vadd.f32 %v1211, %v1323
      %1325 = vmatmul.f32.gmra.mxu0 %v1101
      %v1326 = vpop.f32.mrf.mxu0
      %v1327 = vadd.f32 %v1214, %v1326
      %1328 = vmatmul.f32.gmra.mxu0 %v1104
      %v1329 = vpop.f32.mrf.mxu0
      %v1330 = vadd.f32 %v1217, %v1329
      %1331 = vmatmul.f32.gmra.mxu0 %v1107
      %v1332 = vpop.f32.mrf.mxu0
      %v1333 = vadd.f32 %v1220, %v1332
      %1334 = vdwg.mxu0
      %v1335 = vld [vmem:[%s281] sm:$0xff]
      %v1336 = vld [vmem:[%s281 + $0x8] sm:$0xff]
      %v1337 = vld [vmem:[%s281 + $0x10] sm:$0xff]
      %v1338 = vld [vmem:[%s281 + $0x18] sm:$0xff]
      %v1339 = vld [vmem:[%s281 + $0x20] sm:$0xff]
      %v1340 = vld [vmem:[%s281 + $0x28] sm:$0xff]
      %v1341 = vld [vmem:[%s281 + $0x30] sm:$0xff]
      %v1342 = vld [vmem:[%s281 + $0x38] sm:$0xff]
      %v1343 = vld [vmem:[%s281 + $0x40] sm:$0xff]
      %v1344 = vld [vmem:[%s281 + $0x48] sm:$0xff]
      %v1345 = vld [vmem:[%s281 + $0x50] sm:$0xff]
      %v1346 = vld [vmem:[%s281 + $0x58] sm:$0xff]
      %v1347 = vld [vmem:[%s281 + $0x60] sm:$0xff]
      %v1348 = vld [vmem:[%s281 + $0x68] sm:$0xff]
      %v1349 = vld [vmem:[%s281 + $0x70] sm:$0xff]
      %v1350 = vld [vmem:[%s281 + $0x78] sm:$0xff]
      %v1351 = vld [vmem:[%s281 + $0x80] sm:$0xff]
      %v1352 = vld [vmem:[%s281 + $0x88] sm:$0xff]
      %v1353 = vld [vmem:[%s281 + $0x90] sm:$0xff]
      %v1354 = vld [vmem:[%s281 + $0x98] sm:$0xff]
      %v1355 = vld [vmem:[%s281 + $0xa0] sm:$0xff]
      %v1356 = vld [vmem:[%s281 + $0xa8] sm:$0xff]
      %v1357 = vld [vmem:[%s281 + $0xb0] sm:$0xff]
      %v1358 = vld [vmem:[%s281 + $0xb8] sm:$0xff]
      %v1359 = vld [vmem:[%s281 + $0xc0] sm:$0xff]
      %v1360 = vld [vmem:[%s281 + $0xc8] sm:$0xff]
      %v1361 = vld [vmem:[%s281 + $0xd0] sm:$0xff]
      %v1362 = vld [vmem:[%s281 + $0xd8] sm:$0xff]
      %v1363 = vld [vmem:[%s281 + $0xe0] sm:$0xff]
      %v1364 = vld [vmem:[%s281 + $0xe8] sm:$0xff]
      %v1365 = vld [vmem:[%s281 + $0xf0] sm:$0xff]
      %v1366 = vld [vmem:[%s281 + $0xf8] sm:$0xff]
      %v1367 = vld [vmem:[%s4] sm:$0xff]
      %v1368 = vld [vmem:[%s4 + $0x8] sm:$0xff]
      %v1370 = vsel %vm466, %v1335, 0
      %v1373 = vsel %vm466, %v1336, 0
      %v1376 = vsel %vm466, %v1337, 0
      %v1379 = vsel %vm466, %v1338, 0
      %v1382 = vsel %vm466, %v1339, 0
      %v1385 = vsel %vm466, %v1340, 0
      %v1388 = vsel %vm466, %v1341, 0
      %v1391 = vsel %vm466, %v1342, 0
      %v1394 = vsel %vm466, %v1343, 0
      %v1397 = vsel %vm466, %v1344, 0
      %v1400 = vsel %vm466, %v1345, 0
      %v1403 = vsel %vm466, %v1346, 0
      %v1406 = vsel %vm466, %v1347, 0
      %v1409 = vsel %vm466, %v1348, 0
      %v1412 = vsel %vm466, %v1349, 0
      %v1415 = vsel %vm466, %v1350, 0
      %v1418 = vsel %vm466, %v1351, 0
      %v1421 = vsel %vm466, %v1352, 0
      %v1424 = vsel %vm466, %v1353, 0
      %v1427 = vsel %vm466, %v1354, 0
      %v1430 = vsel %vm466, %v1355, 0
      %v1433 = vsel %vm466, %v1356, 0
      %v1436 = vsel %vm466, %v1357, 0
      %v1439 = vsel %vm466, %v1358, 0
      %v1442 = vsel %vm466, %v1359, 0
      %v1445 = vsel %vm466, %v1360, 0
      %v1448 = vsel %vm466, %v1361, 0
      %v1451 = vsel %vm466, %v1362, 0
      %v1454 = vsel %vm466, %v1363, 0
      %v1457 = vsel %vm466, %v1364, 0
      %v1460 = vsel %vm466, %v1365, 0
      %v1463 = vsel %vm466, %v1366, 0
      %1465 = vmatpush.msra.mxu0 0.0
      %1466 = vmatpush.msra.mxu0 0.0
      %1467 = vmatpush.msra.mxu0 0.0
      %1468 = vmatpush.msra.mxu0 0.0
      %1469 = vmatpush.msra.mxu0 0.0
      %1470 = vmatpush.msra.mxu0 0.0
      %1471 = vmatpush.msra.mxu0 0.0
      %1472 = vmatpush.msra.mxu0 0.0
      %1473 = vmatpush.msra.mxu0 0.0
      %1474 = vmatpush.msra.mxu0 0.0
      %1475 = vmatpush.msra.mxu0 0.0
      %1476 = vmatpush.msra.mxu0 0.0
      %1477 = vmatpush.msra.mxu0 0.0
      %1478 = vmatpush.msra.mxu0 0.0
      %1479 = vmatpush.msra.mxu0 %v1368
      %1480 = vmatpush.msra.mxu0 %v1367
      %1481 = vmatmul.f32.gmra.mxu0 %v1370
      %v1482 = vpop.f32.mrf.mxu0
      %v1483 = vadd.f32 0.0, %v1482
      %1484 = vmatmul.f32.gmra.mxu0 %v1373
      %v1485 = vpop.f32.mrf.mxu0
      %v1486 = vadd.f32 0.0, %v1485
      %1487 = vmatmul.f32.gmra.mxu0 %v1376
      %v1488 = vpop.f32.mrf.mxu0
      %v1489 = vadd.f32 0.0, %v1488
      %1490 = vmatmul.f32.gmra.mxu0 %v1379
      %v1491 = vpop.f32.mrf.mxu0
      %v1492 = vadd.f32 0.0, %v1491
      %1493 = vmatmul.f32.gmra.mxu0 %v1382
      %v1494 = vpop.f32.mrf.mxu0
      %v1495 = vadd.f32 0.0, %v1494
      %1496 = vmatmul.f32.gmra.mxu0 %v1385
      %v1497 = vpop.f32.mrf.mxu0
      %v1498 = vadd.f32 0.0, %v1497
      %1499 = vmatmul.f32.gmra.mxu0 %v1388
      %v1500 = vpop.f32.mrf.mxu0
      %v1501 = vadd.f32 0.0, %v1500
      %1502 = vmatmul.f32.gmra.mxu0 %v1391
      %v1503 = vpop.f32.mrf.mxu0
      %v1504 = vadd.f32 0.0, %v1503
      %1505 = vmatmul.f32.gmra.mxu0 %v1394
      %v1506 = vpop.f32.mrf.mxu0
      %v1507 = vadd.f32 0.0, %v1506
      %1508 = vmatmul.f32.gmra.mxu0 %v1397
      %v1509 = vpop.f32.mrf.mxu0
      %v1510 = vadd.f32 0.0, %v1509
      %1511 = vmatmul.f32.gmra.mxu0 %v1400
      %v1512 = vpop.f32.mrf.mxu0
      %v1513 = vadd.f32 0.0, %v1512
      %1514 = vmatmul.f32.gmra.mxu0 %v1403
      %v1515 = vpop.f32.mrf.mxu0
      %v1516 = vadd.f32 0.0, %v1515
      %1517 = vmatmul.f32.gmra.mxu0 %v1406
      %v1518 = vpop.f32.mrf.mxu0
      %v1519 = vadd.f32 0.0, %v1518
      %1520 = vmatmul.f32.gmra.mxu0 %v1409
      %v1521 = vpop.f32.mrf.mxu0
      %v1522 = vadd.f32 0.0, %v1521
      %1523 = vmatmul.f32.gmra.mxu0 %v1412
      %v1524 = vpop.f32.mrf.mxu0
      %v1525 = vadd.f32 0.0, %v1524
      %1526 = vmatmul.f32.gmra.mxu0 %v1415
      %v1527 = vpop.f32.mrf.mxu0
      %v1528 = vadd.f32 0.0, %v1527
      %1529 = vmatmul.f32.gmra.mxu0 %v1418
      %v1530 = vpop.f32.mrf.mxu0
      %v1531 = vadd.f32 0.0, %v1530
      %1532 = vmatmul.f32.gmra.mxu0 %v1421
      %v1533 = vpop.f32.mrf.mxu0
      %v1534 = vadd.f32 0.0, %v1533
      %1535 = vmatmul.f32.gmra.mxu0 %v1424
      %v1536 = vpop.f32.mrf.mxu0
      %v1537 = vadd.f32 0.0, %v1536
      %1538 = vmatmul.f32.gmra.mxu0 %v1427
      %v1539 = vpop.f32.mrf.mxu0
      %v1540 = vadd.f32 0.0, %v1539
      %1541 = vmatmul.f32.gmra.mxu0 %v1430
      %v1542 = vpop.f32.mrf.mxu0
      %v1543 = vadd.f32 0.0, %v1542
      %1544 = vmatmul.f32.gmra.mxu0 %v1433
      %v1545 = vpop.f32.mrf.mxu0
      %v1546 = vadd.f32 0.0, %v1545
      %1547 = vmatmul.f32.gmra.mxu0 %v1436
      %v1548 = vpop.f32.mrf.mxu0
      %v1549 = vadd.f32 0.0, %v1548
      %1550 = vmatmul.f32.gmra.mxu0 %v1439
      %v1551 = vpop.f32.mrf.mxu0
      %v1552 = vadd.f32 0.0, %v1551
      %1553 = vmatmul.f32.gmra.mxu0 %v1442
      %v1554 = vpop.f32.mrf.mxu0
      %v1555 = vadd.f32 0.0, %v1554
      %1556 = vmatmul.f32.gmra.mxu0 %v1445
      %v1557 = vpop.f32.mrf.mxu0
      %v1558 = vadd.f32 0.0, %v1557
      %1559 = vmatmul.f32.gmra.mxu0 %v1448
      %v1560 = vpop.f32.mrf.mxu0
      %v1561 = vadd.f32 0.0, %v1560
      %1562 = vmatmul.f32.gmra.mxu0 %v1451
      %v1563 = vpop.f32.mrf.mxu0
      %v1564 = vadd.f32 0.0, %v1563
      %1565 = vmatmul.f32.gmra.mxu0 %v1454
      %v1566 = vpop.f32.mrf.mxu0
      %v1567 = vadd.f32 0.0, %v1566
      %1568 = vmatmul.f32.gmra.mxu0 %v1457
      %v1569 = vpop.f32.mrf.mxu0
      %v1570 = vadd.f32 0.0, %v1569
      %1571 = vmatmul.f32.gmra.mxu0 %v1460
      %v1572 = vpop.f32.mrf.mxu0
      %v1573 = vadd.f32 0.0, %v1572
      %1574 = vmatmul.f32.gmra.mxu0 %v1463
      %v1575 = vpop.f32.mrf.mxu0
      %v1576 = vadd.f32 0.0, %v1575
      %1577 = vdwg.mxu0
      %v1578 = vadd.f32 %v1240, %v1483
      %v1579 = vadd.f32 %v1243, %v1486
      %v1580 = vadd.f32 %v1246, %v1489
      %v1581 = vadd.f32 %v1249, %v1492
      %v1582 = vadd.f32 %v1252, %v1495
      %v1583 = vadd.f32 %v1255, %v1498
      %v1584 = vadd.f32 %v1258, %v1501
      %v1585 = vadd.f32 %v1261, %v1504
      %v1586 = vadd.f32 %v1264, %v1507
      %v1587 = vadd.f32 %v1267, %v1510
      %v1588 = vadd.f32 %v1270, %v1513
      %v1589 = vadd.f32 %v1273, %v1516
      %v1590 = vadd.f32 %v1276, %v1519
      %v1591 = vadd.f32 %v1279, %v1522
      %v1592 = vadd.f32 %v1282, %v1525
      %v1593 = vadd.f32 %v1285, %v1528
      %v1594 = vadd.f32 %v1288, %v1531
      %v1595 = vadd.f32 %v1291, %v1534
      %v1596 = vadd.f32 %v1294, %v1537
      %v1597 = vadd.f32 %v1297, %v1540
      %v1598 = vadd.f32 %v1300, %v1543
      %v1599 = vadd.f32 %v1303, %v1546
      %v1600 = vadd.f32 %v1306, %v1549
      %v1601 = vadd.f32 %v1309, %v1552
      %v1602 = vadd.f32 %v1312, %v1555
      %v1603 = vadd.f32 %v1315, %v1558
      %v1604 = vadd.f32 %v1318, %v1561
      %v1605 = vadd.f32 %v1321, %v1564
      %v1606 = vadd.f32 %v1324, %v1567
      %v1607 = vadd.f32 %v1327, %v1570
      %v1608 = vadd.f32 %v1330, %v1573
      %v1609 = vadd.f32 %v1333, %v1576
      %vm1610 = vcmask 261120
      %1611 = vst.msk [vmem:[%s300] sm:$0xff] %vm1610, %v1578
      %1612 = vst.msk [vmem:[%s300 + $0x8] sm:$0xff] %vm1610, %v1579
      %1613 = vst.msk [vmem:[%s300 + $0x10] sm:$0xff] %vm1610, %v1580
      %1614 = vst.msk [vmem:[%s300 + $0x18] sm:$0xff] %vm1610, %v1581
      %1615 = vst.msk [vmem:[%s300 + $0x20] sm:$0xff] %vm1610, %v1582
      %1616 = vst.msk [vmem:[%s300 + $0x28] sm:$0xff] %vm1610, %v1583
      %1617 = vst.msk [vmem:[%s300 + $0x30] sm:$0xff] %vm1610, %v1584
      %1618 = vst.msk [vmem:[%s300 + $0x38] sm:$0xff] %vm1610, %v1585
      %1619 = vst.msk [vmem:[%s300 + $0x40] sm:$0xff] %vm1610, %v1586
      %1620 = vst.msk [vmem:[%s300 + $0x48] sm:$0xff] %vm1610, %v1587
      %1621 = vst.msk [vmem:[%s300 + $0x50] sm:$0xff] %vm1610, %v1588
      %1622 = vst.msk [vmem:[%s300 + $0x58] sm:$0xff] %vm1610, %v1589
      %1623 = vst.msk [vmem:[%s300 + $0x60] sm:$0xff] %vm1610, %v1590
      %1624 = vst.msk [vmem:[%s300 + $0x68] sm:$0xff] %vm1610, %v1591
      %1625 = vst.msk [vmem:[%s300 + $0x70] sm:$0xff] %vm1610, %v1592
      %1626 = vst.msk [vmem:[%s300 + $0x78] sm:$0xff] %vm1610, %v1593
      %1627 = vst.msk [vmem:[%s300 + $0x80] sm:$0xff] %vm1610, %v1594
      %1628 = vst.msk [vmem:[%s300 + $0x88] sm:$0xff] %vm1610, %v1595
      %1629 = vst.msk [vmem:[%s300 + $0x90] sm:$0xff] %vm1610, %v1596
      %1630 = vst.msk [vmem:[%s300 + $0x98] sm:$0xff] %vm1610, %v1597
      %1631 = vst.msk [vmem:[%s300 + $0xa0] sm:$0xff] %vm1610, %v1598
      %1632 = vst.msk [vmem:[%s300 + $0xa8] sm:$0xff] %vm1610, %v1599
      %1633 = vst.msk [vmem:[%s300 + $0xb0] sm:$0xff] %vm1610, %v1600
      %1634 = vst.msk [vmem:[%s300 + $0xb8] sm:$0xff] %vm1610, %v1601
      %1635 = vst.msk [vmem:[%s300 + $0xc0] sm:$0xff] %vm1610, %v1602
      %1636 = vst.msk [vmem:[%s300 + $0xc8] sm:$0xff] %vm1610, %v1603
      %1637 = vst.msk [vmem:[%s300 + $0xd0] sm:$0xff] %vm1610, %v1604
      %1638 = vst.msk [vmem:[%s300 + $0xd8] sm:$0xff] %vm1610, %v1605
      %1639 = vst.msk [vmem:[%s300 + $0xe0] sm:$0xff] %vm1610, %v1606
      %1640 = vst.msk [vmem:[%s300 + $0xe8] sm:$0xff] %vm1610, %v1607
      %1641 = vst.msk [vmem:[%s300 + $0xf0] sm:$0xff] %vm1610, %v1608
      %1642 = vst.msk [vmem:[%s300 + $0xf8] sm:$0xff] %vm1610, %v1609
      %s1643 = smul.u32 32, %s17
      %p1644 = scmp.lt.s32.totalorder %s1643, 63
      %s1645 = scalar_select %p1644, %s1643, 63
      %s1646 = smul.addr %s1645, 8
      %s1647 = scalar_lea.vmem %s6, %s1646
      // Predicated region
      $region45: #{nas201_cell_forward.4} parent=43 // pred_check
        %p1648 = pneg %p176
      $region46: #{nas201_cell_forward.4} parent=43 // pred_check_branch
        %1650 = sbr.rel (%p1648) target = $region48
      $region47: #{nas201_cell_forward.4} parent=43 // pred_region
        %s1651 = smul.u32 32, %s17
      $region48: #{nas201_cell_forward.4} parent=43 // pred_fallthru
        _
    $region44: #{nas201_cell_forward.4} parent=5 // pred_fallthru
      _
    %p1652 = scmp.le.s32.totalorder 2, %s12
    // Predicated region
    $region49: #{nas201_cell_forward.4} parent=5 // pred_check
      %p1653 = pneg %p1652
    $region50: #{nas201_cell_forward.4} parent=5 // pred_check_branch
      %1655 = sbr.rel (%p1653) target = $region52
    $region51: #{nas201_cell_forward.4} parent=5 // pred_region
      %s1656 = ssub.s32 %s12, 2
      // Predicated region
      $region53: #{nas201_cell_forward.4} parent=51 // pred_check
        %p1657 = pneg %p182
      $region54: #{nas201_cell_forward.4} parent=51 // pred_check_branch
        %1659 = sbr.rel (%p1657) target = $region56
      $region55: #{nas201_cell_forward.4} parent=51 // pred_region
        %s1660 = smul.u32 32, %s18
        %p1661 = scmp.lt.s32.totalorder %s1660, 63
        %s1662 = scalar_select %p1661, %s1660, 63
        %s1663 = smul.addr %s1662, 8
        %s1664 = scalar_lea.vmem %s6, %s1663
      $region56: #{nas201_cell_forward.4} parent=51 // pred_fallthru
        _
    $region52: #{nas201_cell_forward.4} parent=5 // pred_fallthru
      _
  $region6: #{nas201_cell_forward.4} parent=0 // loop_footer
    %s16 = sadd.s32 1, %s12
  $region7: #{nas201_cell_forward.4} parent=0 // loop_footer_branch
    %11 = sbr.rel target = $region3
  $region8: #{nas201_cell_forward.4} parent=0 // loop_exit
    _

// kernel: nas201_cell_forward.5
$region0: #{nas201_cell_forward.5}
  #allocation0 [shape = 'u32[]', space=smem, size = 0x4, offset = 0x4, fixed_abs, tag = 'smem constant byte address 0x4 - core index']
  #allocation1 [shape = 'u32[72,128]{1,0:T(1,128)}', space=vmem, size = 0x9000, scoped, tag = 'internal scratch']
  %s0 = inlined_call_operand.vmem [shape: f32[512,16], index: 0, kind: input, shape index: {}]
  %s1 = inlined_call_operand.vmem [shape: f32[512,144], index: 1, kind: input, shape index: {}]
  %s2 = inlined_call_operand.vmem [shape: f32[512,1], index: 2, kind: input, shape index: {}]
  %s3 = inlined_call_operand.vmem [shape: f32[144,16], index: 3, kind: input, shape index: {}]
  %s4 = inlined_call_operand.vmem [shape: f32[16,16], index: 4, kind: input, shape index: {}]
  %s5 = inlined_call_operand.vmem [shape: f32[144,16], index: 5, kind: input, shape index: {}]
  %s6 = inlined_call_operand.vmem [shape: f32[512,16], index: 6, kind: output, shape index: {}]
  %s7 = sld [smem:[#allocation0]]
  $region57: #{nas201_cell_forward.5} parent=0
    _
  %s9 = ssub.s32 1, %s7
  %s10 = scalar_select 0, %s9, %s7
  loop: start=0, step=1, limit=4
  $region2: #{nas201_cell_forward.5} parent=0 // loop_pre_header
    _
  $region3: #{nas201_cell_forward.5} parent=0 // loop_header
    %s12 = sphi 0, %s16
    %p13 = scmp.ge.s32.totalorder %s12, 4
    %s22 = sphi 0, %s24
    %s25 = sphi 0, %s22
    %s26 = sphi 0, %s25
    %s42 = sphi 0, %s26
    %s48 = sphi 0, %s50
    %s51 = sphi 0, %s48
    %s52 = sphi 0, %s51
    %s68 = sphi 0, %s52
    %s74 = sphi 0, %s76
    %s77 = sphi 0, %s74
    %s78 = sphi 0, %s77
    %s94 = sphi 0, %s78
    %s98 = sphi 0, %s98
    %s100 = sphi 0, %s98
    %s101 = sphi 0, %s100
    %s115 = sphi 0, %s101
    %s119 = sphi 0, %s119
    %s121 = sphi 0, %s119
    %s122 = sphi 0, %s121
    %s136 = sphi 0, %s122
    %s140 = sphi 0, %s140
    %s142 = sphi 0, %s140
    %s143 = sphi 0, %s142
    %s157 = sphi 0, %s143
    %s163 = sphi 0, %s165
    %s166 = sphi 0, %s163
    %s167 = sphi 0, %s166
    %s183 = sphi 0, %s167
  $region4: #{nas201_cell_forward.5} parent=0 // loop_header_branch
    %15 = sbr.rel (%p13) target = $region8
  $region5: #{nas201_cell_forward.5} parent=0 // loop_body
    %s17 = ssub.s32 %s12, 1
    %s18 = ssub.s32 %s12, 2
    %s19 = sadd.s32 %s12, 1
    %s20 = ssub.s32 %s12, %s19
    %p21 = scmp.eq.s32.totalorder %s20, 0
    %s23 = sadd.s32 %s22, 1
    %s24 = scalar_select %p21, %s22, %s23
    %p27 = pneg %p21
    %p28 = scmp.eq.s32.totalorder %s12, 1
    %p29 = por %p27, %p28
    %p30 = scmp.ne.s32.totalorder %s22, %s25
    %p31 = scmp.eq.s32.totalorder %s12, 0
    %p32 = por %p30, %p31
    %p33 = scmp.ne.s32.totalorder %s22, %s25
    %p34 = scmp.eq.s32.totalorder %s17, 1
    %p35 = por %p33, %p34
    %p36 = scmp.ne.s32.totalorder %s25, %s26
    %p37 = scmp.eq.s32.totalorder %s17, 0
    %p38 = por %p36, %p37
    %p39 = scmp.ne.s32.totalorder %s25, %s26
    %p40 = scmp.eq.s32.totalorder %s18, 1
    %p41 = por %p39, %p40
    %p43 = scmp.ne.s32.totalorder %s26, %s42
    %p44 = scmp.eq.s32.totalorder %s18, 0
    %p45 = por %p43, %p44
    %s46 = ssub.s32 %s12, %s19
    %p47 = scmp.eq.s32.totalorder %s46, 0
    %s49 = sadd.s32 %s48, 1
    %s50 = scalar_select %p47, %s48, %s49
    %p53 = pneg %p47
    %p54 = scmp.eq.s32.totalorder %s12, 1
    %p55 = por %p53, %p54
    %p56 = scmp.ne.s32.totalorder %s48, %s51
    %p57 = scmp.eq.s32.totalorder %s12, 0
    %p58 = por %p56, %p57
    %p59 = scmp.ne.s32.totalorder %s48, %s51
    %p60 = scmp.eq.s32.totalorder %s17, 1
    %p61 = por %p59, %p60
    %p62 = scmp.ne.s32.totalorder %s51, %s52
    %p63 = scmp.eq.s32.totalorder %s17, 0
    %p64 = por %p62, %p63
    %p65 = scmp.ne.s32.totalorder %s51, %s52
    %p66 = scmp.eq.s32.totalorder %s18, 1
    %p67 = por %p65, %p66
    %p69 = scmp.ne.s32.totalorder %s52, %s68
    %p70 = scmp.eq.s32.totalorder %s18, 0
    %p71 = por %p69, %p70
    %s72 = ssub.s32 %s12, %s19
    %p73 = scmp.eq.s32.totalorder %s72, 0
    %s75 = sadd.s32 %s74, 1
    %s76 = scalar_select %p73, %s74, %s75
    %p79 = pneg %p73
    %p80 = scmp.eq.s32.totalorder %s12, 1
    %p81 = por %p79, %p80
    %p82 = scmp.ne.s32.totalorder %s74, %s77
    %p83 = scmp.eq.s32.totalorder %s12, 0
    %p84 = por %p82, %p83
    %p85 = scmp.ne.s32.totalorder %s74, %s77
    %p86 = scmp.eq.s32.totalorder %s17, 1
    %p87 = por %p85, %p86
    %p88 = scmp.ne.s32.totalorder %s77, %s78
    %p89 = scmp.eq.s32.totalorder %s17, 0
    %p90 = por %p88, %p89
    %p91 = scmp.ne.s32.totalorder %s77, %s78
    %p92 = scmp.eq.s32.totalorder %s18, 1
    %p93 = por %p91, %p92
    %p95 = scmp.ne.s32.totalorder %s78, %s94
    %p96 = scmp.eq.s32.totalorder %s18, 0
    %p97 = por %p95, %p96
    %s99 = sadd.s32 %s98, 1
    %p102 = scmp.eq.s32.totalorder %s12, 1
    %p103 = scmp.ne.s32.totalorder %s98, %s100
    %p104 = scmp.eq.s32.totalorder %s12, 0
    %p105 = por %p103, %p104
    %p106 = scmp.ne.s32.totalorder %s98, %s100
    %p107 = scmp.eq.s32.totalorder %s17, 1
    %p108 = por %p106, %p107
    %p109 = scmp.ne.s32.totalorder %s100, %s101
    %p110 = scmp.eq.s32.totalorder %s17, 0
    %p111 = por %p109, %p110
    %p112 = scmp.ne.s32.totalorder %s100, %s101
    %p113 = scmp.eq.s32.totalorder %s18, 1
    %p114 = por %p112, %p113
    %p116 = scmp.ne.s32.totalorder %s101, %s115
    %p117 = scmp.eq.s32.totalorder %s18, 0
    %p118 = por %p116, %p117
    %s120 = sadd.s32 %s119, 1
    %p123 = scmp.eq.s32.totalorder %s12, 1
    %p124 = scmp.ne.s32.totalorder %s119, %s121
    %p125 = scmp.eq.s32.totalorder %s12, 0
    %p126 = por %p124, %p125
    %p127 = scmp.ne.s32.totalorder %s119, %s121
    %p128 = scmp.eq.s32.totalorder %s17, 1
    %p129 = por %p127, %p128
    %p130 = scmp.ne.s32.totalorder %s121, %s122
    %p131 = scmp.eq.s32.totalorder %s17, 0
    %p132 = por %p130, %p131
    %p133 = scmp.ne.s32.totalorder %s121, %s122
    %p134 = scmp.eq.s32.totalorder %s18, 1
    %p135 = por %p133, %p134
    %p137 = scmp.ne.s32.totalorder %s122, %s136
    %p138 = scmp.eq.s32.totalorder %s18, 0
    %p139 = por %p137, %p138
    %s141 = sadd.s32 %s140, 1
    %p144 = scmp.eq.s32.totalorder %s12, 1
    %p145 = scmp.ne.s32.totalorder %s140, %s142
    %p146 = scmp.eq.s32.totalorder %s12, 0
    %p147 = por %p145, %p146
    %p148 = scmp.ne.s32.totalorder %s140, %s142
    %p149 = scmp.eq.s32.totalorder %s17, 1
    %p150 = por %p148, %p149
    %p151 = scmp.ne.s32.totalorder %s142, %s143
    %p152 = scmp.eq.s32.totalorder %s17, 0
    %p153 = por %p151, %p152
    %p154 = scmp.ne.s32.totalorder %s142, %s143
    %p155 = scmp.eq.s32.totalorder %s18, 1
    %p156 = por %p154, %p155
    %p158 = scmp.ne.s32.totalorder %s143, %s157
    %p159 = scmp.eq.s32.totalorder %s18, 0
    %p160 = por %p158, %p159
    %s161 = ssub.s32 %s12, %s19
    %p162 = scmp.eq.s32.totalorder %s161, 0
    %s164 = sadd.s32 %s163, 1
    %s165 = scalar_select %p162, %s163, %s164
    %p168 = pneg %p162
    %p169 = scmp.eq.s32.totalorder %s12, 1
    %p170 = por %p168, %p169
    %p171 = scmp.ne.s32.totalorder %s163, %s166
    %p172 = scmp.eq.s32.totalorder %s12, 0
    %p173 = por %p171, %p172
    %p174 = scmp.ne.s32.totalorder %s163, %s166
    %p175 = scmp.eq.s32.totalorder %s17, 1
    %p176 = por %p174, %p175
    %p177 = scmp.ne.s32.totalorder %s166, %s167
    %p178 = scmp.eq.s32.totalorder %s17, 0
    %p179 = por %p177, %p178
    %p180 = scmp.ne.s32.totalorder %s166, %s167
    %p181 = scmp.eq.s32.totalorder %s18, 1
    %p182 = por %p180, %p181
    %p184 = scmp.ne.s32.totalorder %s167, %s183
    %p185 = scmp.eq.s32.totalorder %s18, 0
    %p186 = por %p184, %p185
    %p187 = scmp.le.s32.totalorder 1, %s12
    %p188 = scmp.lt.s32.totalorder %s12, 3
    %p189 = pnand %p187, %p188
    %p190 = pneg %p189
    // Predicated region
    $region9: #{nas201_cell_forward.5} parent=5 // pred_check
      _
    $region10: #{nas201_cell_forward.5} parent=5 // pred_check_branch
      %192 = sbr.rel (%p189) target = $region12
    $region11: #{nas201_cell_forward.5} parent=5 // pred_region
      %s193 = ssub.s32 %s12, 1
      // Predicated region
      $region13: #{nas201_cell_forward.5} parent=11 // pred_check
        %p194 = pneg %p111
      $region14: #{nas201_cell_forward.5} parent=11 // pred_check_branch
        %196 = sbr.rel (%p194) target = $region16
      $region15: #{nas201_cell_forward.5} parent=11 // pred_region
        _
      $region16: #{nas201_cell_forward.5} parent=11 // pred_fallthru
        _
      // Predicated region
      $region17: #{nas201_cell_forward.5} parent=11 // pred_check
        %p197 = pneg %p132
      $region18: #{nas201_cell_forward.5} parent=11 // pred_check_branch
        %199 = sbr.rel (%p197) target = $region20
      $region19: #{nas201_cell_forward.5} parent=11 // pred_region
        _
      $region20: #{nas201_cell_forward.5} parent=11 // pred_fallthru
        _
      // Predicated region
      $region21: #{nas201_cell_forward.5} parent=11 // pred_check
        %p200 = pneg %p153
      $region22: #{nas201_cell_forward.5} parent=11 // pred_check_branch
        %202 = sbr.rel (%p200) target = $region24
      $region23: #{nas201_cell_forward.5} parent=11 // pred_region
        _
      $region24: #{nas201_cell_forward.5} parent=11 // pred_fallthru
        _
    $region12: #{nas201_cell_forward.5} parent=5 // pred_fallthru
      _
    %p203 = scmp.lt.s32.totalorder %s12, 2
    // Predicated region
    $region25: #{nas201_cell_forward.5} parent=5 // pred_check
      %p204 = pneg %p203
    $region26: #{nas201_cell_forward.5} parent=5 // pred_check_branch
      %206 = sbr.rel (%p204) target = $region28
    $region27: #{nas201_cell_forward.5} parent=5 // pred_region
      // Predicated region
      $region29: #{nas201_cell_forward.5} parent=27 // pred_check
        %p207 = pneg %p32
      $region30: #{nas201_cell_forward.5} parent=27 // pred_check_branch
        %209 = sbr.rel (%p207) target = $region32
      $region31: #{nas201_cell_forward.5} parent=27 // pred_region
        %s210 = smul.u32 32, %s12
        %p211 = scmp.lt.s32.totalorder %s210, 63
        %s212 = scalar_select %p211, %s210, 63
        %s213 = smul.addr %s212, 8
        %s214 = scalar_lea.vmem %s0, %s213
        %s215 = smul.u32 32, %s12
      $region32: #{nas201_cell_forward.5} parent=27 // pred_fallthru
        _
      // Predicated region
      $region33: #{nas201_cell_forward.5} parent=27 // pred_check
        %p216 = pneg %p58
      $region34: #{nas201_cell_forward.5} parent=27 // pred_check_branch
        %218 = sbr.rel (%p216) target = $region36
      $region35: #{nas201_cell_forward.5} parent=27 // pred_region
        %s219 = smul.u32 32, %s12
        %p220 = scmp.lt.s32.totalorder %s219, 63
        %s221 = scalar_select %p220, %s219, 63
        %s222 = smul.addr %s221, 2
        %s223 = smul.addr %s222, 8
        %s224 = scalar_lea.vmem %s1, %s223
        %s225 = smul.u32 32, %s12
      $region36: #{nas201_cell_forward.5} parent=27 // pred_fallthru
        _
      // Predicated region
      $region37: #{nas201_cell_forward.5} parent=27 // pred_check
        %p226 = pneg %p84
      $region38: #{nas201_cell_forward.5} parent=27 // pred_check_branch
        %228 = sbr.rel (%p226) target = $region40
      $region39: #{nas201_cell_forward.5} parent=27 // pred_region
        %s229 = smul.u32 32, %s12
        %p230 = scmp.lt.s32.totalorder %s229, 63
        %s231 = scalar_select %p230, %s229, 63
        %s232 = smul.addr %s231, 8
        %s233 = scalar_lea.vmem %s2, %s232
        %s234 = smul.u32 32, %s12
      $region40: #{nas201_cell_forward.5} parent=27 // pred_fallthru
        _
    $region28: #{nas201_cell_forward.5} parent=5 // pred_fallthru
      _
    %p235 = scmp.le.s32.totalorder 1, %s12
    %p236 = scmp.lt.s32.totalorder %s12, 3
    %p237 = pnand %p235, %p236
    %p238 = pneg %p237
    // Predicated region
    $region41: #{nas201_cell_forward.5} parent=5 // pred_check
      _
    $region42: #{nas201_cell_forward.5} parent=5 // pred_check_branch
      %240 = sbr.rel (%p237) target = $region44
    $region43: #{nas201_cell_forward.5} parent=5 // pred_region
      %s241 = ssub.s32 %s12, 1
      %s242 = smul.u32 32, %s17
      %p243 = scmp.lt.s32.totalorder %s242, 63
      %s244 = scalar_select %p243, %s242, 63
      %s245 = smul.addr %s244, 8
      %s246 = scalar_lea.vmem %s0, %s245
      %p247 = pneg %p38
      %p248 = pneg %p35
      %s249 = smul.u32 32, %s17
      %p250 = scmp.lt.s32.totalorder %s249, 63
      %s251 = scalar_select %p250, %s249, 63
      %s252 = smul.addr %s251, 2
      %s253 = smul.addr %s252, 8
      %s254 = scalar_lea.vmem %s1, %s253
      %p255 = pneg %p64
      %p256 = pneg %p61
      %s257 = smul.u32 32, %s17
      %p258 = scmp.lt.s32.totalorder %s257, 63
      %s259 = scalar_select %p258, %s257, 63
      %s260 = smul.addr %s259, 8
      %s261 = scalar_lea.vmem %s2, %s260
      %p262 = pneg %p90
      %p263 = pneg %p87
      %p264 = pneg %p111
      %p265 = pneg %p108
      %p266 = pneg %p132
      %p267 = pneg %p129
      %p268 = pneg %p153
      %p269 = pneg %p150
      %p270 = pneg %p179
      %p271 = pneg %p176
      %s272 = smul.u32 32, %s17
      %p273 = scmp.lt.s32.totalorder %s272, 63
      %s274 = scalar_select %p273, %s272, 63
      %s275 = smul.addr %s274, 8
      %s276 = scalar_lea.vmem %s6, %s275
      %s277 = smul.u32 32, %s17
      %p278 = scmp.lt.s32.totalorder %s277, 63
      %s279 = scalar_select %p278, %s277, 63
      %s280 = smul.addr %s279, 8
      %s281 = scalar_lea.vmem %s0, %s280
      %s282 = smul.u32 32, %s17
      %s283 = smul.u32 32, %s17
      %p284 = scmp.lt.s32.totalorder %s283, 63
      %s285 = scalar_select %p284, %s283, 63
      %s286 = smul.addr %s285, 2
      %s287 = smul.addr %s286, 8
      %s288 = scalar_lea.vmem %s1, %s287
      %s289 = smul.u32 32, %s17
      %s290 = smul.u32 32, %s17
      %p291 = scmp.lt.s32.totalorder %s290, 63
      %s292 = scalar_select %p291, %s290, 63
      %s293 = smul.addr %s292, 8
      %s294 = scalar_lea.vmem %s2, %s293
      %s295 = smul.u32 32, %s17
      %s296 = smul.u32 32, %s17
      %p297 = scmp.lt.s32.totalorder %s296, 63
      %s298 = scalar_select %p297, %s296, 63
      %s299 = smul.addr %s298, 8
      %s300 = scalar_lea.vmem %s6, %s299
      %s301 = smul.u32 32, %s17
      %v302 = vld [vmem:[%s288] sm:$0xff]
      %v303 = vld [vmem:[%s288 + $0x8] sm:$0xff]
      %v304 = vld [vmem:[%s288 + $0x10] sm:$0xff]
      %v305 = vld [vmem:[%s288 + $0x18] sm:$0xff]
      %v306 = vld [vmem:[%s288 + $0x20] sm:$0xff]
      %v307 = vld [vmem:[%s288 + $0x28] sm:$0xff]
      %v308 = vld [vmem:[%s288 + $0x30] sm:$0xff]
      %v309 = vld [vmem:[%s288 + $0x38] sm:$0xff]
      %v310 = vld [vmem:[%s288 + $0x40] sm:$0xff]
      %v311 = vld [vmem:[%s288 + $0x48] sm:$0xff]
      %v312 = vld [vmem:[%s288 + $0x50] sm:$0xff]
      %v313 = vld [vmem:[%s288 + $0x58] sm:$0xff]
      %v314 = vld [vmem:[%s288 + $0x60] sm:$0xff]
      %v315 = vld [vmem:[%s288 + $0x68] sm:$0xff]
      %v316 = vld [vmem:[%s288 + $0x70] sm:$0xff]
      %v317 = vld [vmem:[%s288 + $0x78] sm:$0xff]
      %v318 = vld [vmem:[%s288 + $0x80] sm:$0xff]
      %v319 = vld [vmem:[%s288 + $0x88] sm:$0xff]
      %v320 = vld [vmem:[%s288 + $0x90] sm:$0xff]
      %v321 = vld [vmem:[%s288 + $0x98] sm:$0xff]
      %v322 = vld [vmem:[%s288 + $0xa0] sm:$0xff]
      %v323 = vld [vmem:[%s288 + $0xa8] sm:$0xff]
      %v324 = vld [vmem:[%s288 + $0xb0] sm:$0xff]
      %v325 = vld [vmem:[%s288 + $0xb8] sm:$0xff]
      %v326 = vld [vmem:[%s288 + $0xc0] sm:$0xff]
      %v327 = vld [vmem:[%s288 + $0xc8] sm:$0xff]
      %v328 = vld [vmem:[%s288 + $0xd0] sm:$0xff]
      %v329 = vld [vmem:[%s288 + $0xd8] sm:$0xff]
      %v330 = vld [vmem:[%s288 + $0xe0] sm:$0xff]
      %v331 = vld [vmem:[%s288 + $0xe8] sm:$0xff]
      %v332 = vld [vmem:[%s288 + $0xf0] sm:$0xff]
      %v333 = vld [vmem:[%s288 + $0xf8] sm:$0xff]
      %v334 = vld [vmem:[%s288 + $0x100] sm:$0xff]
      %v335 = vld [vmem:[%s288 + $0x108] sm:$0xff]
      %v336 = vld [vmem:[%s288 + $0x110] sm:$0xff]
      %v337 = vld [vmem:[%s288 + $0x118] sm:$0xff]
      %v338 = vld [vmem:[%s288 + $0x120] sm:$0xff]
      %v339 = vld [vmem:[%s288 + $0x128] sm:$0xff]
      %v340 = vld [vmem:[%s288 + $0x130] sm:$0xff]
      %v341 = vld [vmem:[%s288 + $0x138] sm:$0xff]
      %v342 = vld [vmem:[%s288 + $0x140] sm:$0xff]
      %v343 = vld [vmem:[%s288 + $0x148] sm:$0xff]
      %v344 = vld [vmem:[%s288 + $0x150] sm:$0xff]
      %v345 = vld [vmem:[%s288 + $0x158] sm:$0xff]
      %v346 = vld [vmem:[%s288 + $0x160] sm:$0xff]
      %v347 = vld [vmem:[%s288 + $0x168] sm:$0xff]
      %v348 = vld [vmem:[%s288 + $0x170] sm:$0xff]
      %v349 = vld [vmem:[%s288 + $0x178] sm:$0xff]
      %v350 = vld [vmem:[%s288 + $0x180] sm:$0xff]
      %v351 = vld [vmem:[%s288 + $0x188] sm:$0xff]
      %v352 = vld [vmem:[%s288 + $0x190] sm:$0xff]
      %v353 = vld [vmem:[%s288 + $0x198] sm:$0xff]
      %v354 = vld [vmem:[%s288 + $0x1a0] sm:$0xff]
      %v355 = vld [vmem:[%s288 + $0x1a8] sm:$0xff]
      %v356 = vld [vmem:[%s288 + $0x1b0] sm:$0xff]
      %v357 = vld [vmem:[%s288 + $0x1b8] sm:$0xff]
      %v358 = vld [vmem:[%s288 + $0x1c0] sm:$0xff]
      %v359 = vld [vmem:[%s288 + $0x1c8] sm:$0xff]
      %v360 = vld [vmem:[%s288 + $0x1d0] sm:$0xff]
      %v361 = vld [vmem:[%s288 + $0x1d8] sm:$0xff]
      %v362 = vld [vmem:[%s288 + $0x1e0] sm:$0xff]
      %v363 = vld [vmem:[%s288 + $0x1e8] sm:$0xff]
      %v364 = vld [vmem:[%s288 + $0x1f0] sm:$0xff]
      %v365 = vld [vmem:[%s288 + $0x1f8] sm:$0xff]
      %v366 = vmax.f32 %v302, 0.0
      %v367 = vmax.f32 %v303, 0.0
      %v368 = vmax.f32 %v304, 0.0
      %v369 = vmax.f32 %v305, 0.0
      %v370 = vmax.f32 %v306, 0.0
      %v371 = vmax.f32 %v307, 0.0
      %v372 = vmax.f32 %v308, 0.0
      %v373 = vmax.f32 %v309, 0.0
      %v374 = vmax.f32 %v310, 0.0
      %v375 = vmax.f32 %v311, 0.0
      %v376 = vmax.f32 %v312, 0.0
      %v377 = vmax.f32 %v313, 0.0
      %v378 = vmax.f32 %v314, 0.0
      %v379 = vmax.f32 %v315, 0.0
      %v380 = vmax.f32 %v316, 0.0
      %v381 = vmax.f32 %v317, 0.0
      %v382 = vmax.f32 %v318, 0.0
      %v383 = vmax.f32 %v319, 0.0
      %v384 = vmax.f32 %v320, 0.0
      %v385 = vmax.f32 %v321, 0.0
      %v386 = vmax.f32 %v322, 0.0
      %v387 = vmax.f32 %v323, 0.0
      %v388 = vmax.f32 %v324, 0.0
      %v389 = vmax.f32 %v325, 0.0
      %v390 = vmax.f32 %v326, 0.0
      %v391 = vmax.f32 %v327, 0.0
      %v392 = vmax.f32 %v328, 0.0
      %v393 = vmax.f32 %v329, 0.0
      %v394 = vmax.f32 %v330, 0.0
      %v395 = vmax.f32 %v331, 0.0
      %v396 = vmax.f32 %v332, 0.0
      %v397 = vmax.f32 %v333, 0.0
      %v398 = vmax.f32 %v334, 0.0
      %v399 = vmax.f32 %v335, 0.0
      %v400 = vmax.f32 %v336, 0.0
      %v401 = vmax.f32 %v337, 0.0
      %v402 = vmax.f32 %v338, 0.0
      %v403 = vmax.f32 %v339, 0.0
      %v404 = vmax.f32 %v340, 0.0
      %v405 = vmax.f32 %v341, 0.0
      %v406 = vmax.f32 %v342, 0.0
      %v407 = vmax.f32 %v343, 0.0
      %v408 = vmax.f32 %v344, 0.0
      %v409 = vmax.f32 %v345, 0.0
      %v410 = vmax.f32 %v346, 0.0
      %v411 = vmax.f32 %v347, 0.0
      %v412 = vmax.f32 %v348, 0.0
      %v413 = vmax.f32 %v349, 0.0
      %v414 = vmax.f32 %v350, 0.0
      %v415 = vmax.f32 %v351, 0.0
      %v416 = vmax.f32 %v352, 0.0
      %v417 = vmax.f32 %v353, 0.0
      %v418 = vmax.f32 %v354, 0.0
      %v419 = vmax.f32 %v355, 0.0
      %v420 = vmax.f32 %v356, 0.0
      %v421 = vmax.f32 %v357, 0.0
      %v422 = vmax.f32 %v358, 0.0
      %v423 = vmax.f32 %v359, 0.0
      %v424 = vmax.f32 %v360, 0.0
      %v425 = vmax.f32 %v361, 0.0
      %v426 = vmax.f32 %v362, 0.0
      %v427 = vmax.f32 %v363, 0.0
      %v428 = vmax.f32 %v364, 0.0
      %v429 = vmax.f32 %v365, 0.0
      %v430 = vld [vmem:[%s3] sm:$0xff]
      %v431 = vld [vmem:[%s3 + $0x8] sm:$0xff]
      %v432 = vld [vmem:[%s3 + $0x10] sm:$0xff]
      %v433 = vld [vmem:[%s3 + $0x18] sm:$0xff]
      %v434 = vld [vmem:[%s3 + $0x20] sm:$0xff]
      %v435 = vld [vmem:[%s3 + $0x28] sm:$0xff]
      %v436 = vld [vmem:[%s3 + $0x30] sm:$0xff]
      %v437 = vld [vmem:[%s3 + $0x38] sm:$0xff]
      %v438 = vld [vmem:[%s3 + $0x40] sm:$0xff]
      %v439 = vld [vmem:[%s3 + $0x48] sm:$0xff]
      %v440 = vld [vmem:[%s3 + $0x50] sm:$0xff]
      %v441 = vld [vmem:[%s3 + $0x58] sm:$0xff]
      %v442 = vld [vmem:[%s3 + $0x60] sm:$0xff]
      %v443 = vld [vmem:[%s3 + $0x68] sm:$0xff]
      %v444 = vld [vmem:[%s3 + $0x70] sm:$0xff]
      %v445 = vld [vmem:[%s3 + $0x78] sm:$0xff]
      %v446 = vld [vmem:[%s3 + $0x80] sm:$0xff]
      %v447 = vld [vmem:[%s3 + $0x88] sm:$0xff]
      %v448 = vld [vmem:[%s5] sm:$0xff]
      %v449 = vld [vmem:[%s5 + $0x8] sm:$0xff]
      %v450 = vld [vmem:[%s5 + $0x10] sm:$0xff]
      %v451 = vld [vmem:[%s5 + $0x18] sm:$0xff]
      %v452 = vld [vmem:[%s5 + $0x20] sm:$0xff]
      %v453 = vld [vmem:[%s5 + $0x28] sm:$0xff]
      %v454 = vld [vmem:[%s5 + $0x30] sm:$0xff]
      %v455 = vld [vmem:[%s5 + $0x38] sm:$0xff]
      %v456 = vld [vmem:[%s5 + $0x40] sm:$0xff]
      %v457 = vld [vmem:[%s5 + $0x48] sm:$0xff]
      %v458 = vld [vmem:[%s5 + $0x50] sm:$0xff]
      %v459 = vld [vmem:[%s5 + $0x58] sm:$0xff]
      %v460 = vld [vmem:[%s5 + $0x60] sm:$0xff]
      %v461 = vld [vmem:[%s5 + $0x68] sm:$0xff]
      %v462 = vld [vmem:[%s5 + $0x70] sm:$0xff]
      %v463 = vld [vmem:[%s5 + $0x78] sm:$0xff]
      %v464 = vld [vmem:[%s5 + $0x80] sm:$0xff]
      %v465 = vld [vmem:[%s5 + $0x88] sm:$0xff]
      %vm466 = vcmask 130048
      %v468 = vsel %vm466, %v303, 0
      %v471 = vsel %vm466, %v305, 0
      %v474 = vsel %vm466, %v307, 0
      %v477 = vsel %vm466, %v309, 0
      %v480 = vsel %vm466, %v311, 0
      %v483 = vsel %vm466, %v313, 0
      %v486 = vsel %vm466, %v315, 0
      %v489 = vsel %vm466, %v317, 0
      %v492 = vsel %vm466, %v319, 0
      %v495 = vsel %vm466, %v321, 0
      %v498 = vsel %vm466, %v323, 0
      %v501 = vsel %vm466, %v325, 0
      %v504 = vsel %vm466, %v327, 0
      %v507 = vsel %vm466, %v329, 0
      %v510 = vsel %vm466, %v331, 0
      %v513 = vsel %vm466, %v333, 0
      %v516 = vsel %vm466, %v335, 0
      %v519 = vsel %vm466, %v337, 0
      %v522 = vsel %vm466, %v339, 0
      %v525 = vsel %vm466, %v341, 0
      %v528 = vsel %vm466, %v343, 0
      %v531 = vsel %vm466, %v345, 0
      %v534 = vsel %vm466, %v347, 0
      %v537 = vsel %vm466, %v349, 0
      %v540 = vsel %vm466, %v351, 0
      %v543 = vsel %vm466, %v353, 0
      %v546 = vsel %vm466, %v355, 0
      %v549 = vsel %vm466, %v357, 0
      %v552 = vsel %vm466, %v359, 0
      %v555 = vsel %vm466, %v361, 0
      %v558 = vsel %vm466, %v363, 0
      %v561 = vsel %vm466, %v365, 0
      %563 = vmatpush.msra.mxu0 %v463
      %564 = vmatpush.msra.mxu0 %v462
      %565 = vmatpush.msra.mxu0 %v461
      %566 = vmatpush.msra.mxu0 %v460
      %567 = vmatpush.msra.mxu0 %v459
      %568 = vmatpush.msra.mxu0 %v458
      %569 = vmatpush.msra.mxu0 %v457
      %570 = vmatpush.msra.mxu0 %v456
      %571 = vmatpush.msra.mxu0 %v455
      %572 = vmatpush.msra.mxu0 %v454
      %573 = vmatpush.msra.mxu0 %v453
      %574 = vmatpush.msra.mxu0 %v452
      %575 = vmatpush.msra.mxu0 %v451
      %576 = vmatpush.msra.mxu0 %v450
      %577 = vmatpush.msra.mxu0 %v449
      %578 = vmatpush.msra.mxu0 %v448
      %579 = vmatmul.f32.gmra.mxu0 %v302
      %v580 = vpop.f32.mrf.mxu0
      %v581 = vadd.f32 0.0, %v580
      %582 = vmatmul.f32.gmra.mxu0 %v304
      %v583 = vpop.f32.mrf.mxu0
      %v584 = vadd.f32 0.0, %v583
      %585 = vmatmul.f32.gmra.mxu0 %v306
      %v586 = vpop.f32.mrf.mxu0
      %v587 = vadd.f32 0.0, %v586
      %588 = vmatmul.f32.gmra.mxu0 %v308
      %v589 = vpop.f32.mrf.mxu0
      %v590 = vadd.f32 0.0, %v589
      %591 = vmatmul.f32.gmra.mxu0 %v310
      %v592 = vpop.f32.mrf.mxu0
      %v593 = vadd.f32 0.0, %v592
      %594 = vmatmul.f32.gmra.mxu0 %v312
      %v595 = vpop.f32.mrf.mxu0
      %v596 = vadd.f32 0.0, %v595
      %597 = vmatmul.f32.gmra.mxu0 %v314
      %v598 = vpop.f32.mrf.mxu0
      %v599 = vadd.f32 0.0, %v598
      %600 = vmatmul.f32.gmra.mxu0 %v316
      %v601 = vpop.f32.mrf.mxu0
      %v602 = vadd.f32 0.0, %v601
      %603 = vmatmul.f32.gmra.mxu0 %v318
      %v604 = vpop.f32.mrf.mxu0
      %v605 = vadd.f32 0.0, %v604
      %606 = vmatmul.f32.gmra.mxu0 %v320
      %v607 = vpop.f32.mrf.mxu0
      %v608 = vadd.f32 0.0, %v607
      %609 = vmatmul.f32.gmra.mxu0 %v322
      %v610 = vpop.f32.mrf.mxu0
      %v611 = vadd.f32 0.0, %v610
      %612 = vmatmul.f32.gmra.mxu0 %v324
      %v613 = vpop.f32.mrf.mxu0
      %v614 = vadd.f32 0.0, %v613
      %615 = vmatmul.f32.gmra.mxu0 %v326
      %v616 = vpop.f32.mrf.mxu0
      %v617 = vadd.f32 0.0, %v616
      %618 = vmatmul.f32.gmra.mxu0 %v328
      %v619 = vpop.f32.mrf.mxu0
      %v620 = vadd.f32 0.0, %v619
      %621 = vmatmul.f32.gmra.mxu0 %v330
      %v622 = vpop.f32.mrf.mxu0
      %v623 = vadd.f32 0.0, %v622
      %624 = vmatmul.f32.gmra.mxu0 %v332
      %v625 = vpop.f32.mrf.mxu0
      %v626 = vadd.f32 0.0, %v625
      %627 = vmatmul.f32.gmra.mxu0 %v334
      %v628 = vpop.f32.mrf.mxu0
      %v629 = vadd.f32 0.0, %v628
      %630 = vmatmul.f32.gmra.mxu0 %v336
      %v631 = vpop.f32.mrf.mxu0
      %v632 = vadd.f32 0.0, %v631
      %633 = vmatmul.f32.gmra.mxu0 %v338
      %v634 = vpop.f32.mrf.mxu0
      %v635 = vadd.f32 0.0, %v634
      %636 = vmatmul.f32.gmra.mxu0 %v340
      %v637 = vpop.f32.mrf.mxu0
      %v638 = vadd.f32 0.0, %v637
      %639 = vmatmul.f32.gmra.mxu0 %v342
      %v640 = vpop.f32.mrf.mxu0
      %v641 = vadd.f32 0.0, %v640
      %642 = vmatmul.f32.gmra.mxu0 %v344
      %v643 = vpop.f32.mrf.mxu0
      %v644 = vadd.f32 0.0, %v643
      %645 = vmatmul.f32.gmra.mxu0 %v346
      %v646 = vpop.f32.mrf.mxu0
      %v647 = vadd.f32 0.0, %v646
      %648 = vmatmul.f32.gmra.mxu0 %v348
      %v649 = vpop.f32.mrf.mxu0
      %v650 = vadd.f32 0.0, %v649
      %651 = vmatmul.f32.gmra.mxu0 %v350
      %v652 = vpop.f32.mrf.mxu0
      %v653 = vadd.f32 0.0, %v652
      %654 = vmatmul.f32.gmra.mxu0 %v352
      %v655 = vpop.f32.mrf.mxu0
      %v656 = vadd.f32 0.0, %v655
      %657 = vmatmul.f32.gmra.mxu0 %v354
      %v658 = vpop.f32.mrf.mxu0
      %v659 = vadd.f32 0.0, %v658
      %660 = vmatmul.f32.gmra.mxu0 %v356
      %v661 = vpop.f32.mrf.mxu0
      %v662 = vadd.f32 0.0, %v661
      %663 = vmatmul.f32.gmra.mxu0 %v358
      %v664 = vpop.f32.mrf.mxu0
      %v665 = vadd.f32 0.0, %v664
      %666 = vmatmul.f32.gmra.mxu0 %v360
      %v667 = vpop.f32.mrf.mxu0
      %v668 = vadd.f32 0.0, %v667
      %669 = vmatmul.f32.gmra.mxu0 %v362
      %v670 = vpop.f32.mrf.mxu0
      %v671 = vadd.f32 0.0, %v670
      %672 = vmatmul.f32.gmra.mxu0 %v364
      %v673 = vpop.f32.mrf.mxu0
      %v674 = vadd.f32 0.0, %v673
      %675 = vdwg.mxu0
      %676 = vmatpush.msra.mxu0 0.0
      %677 = vmatpush.msra.mxu0 0.0
      %678 = vmatpush.msra.mxu0 0.0
      %679 = vmatpush.msra.mxu0 0.0
      %680 = vmatpush.msra.mxu0 0.0
      %681 = vmatpush.msra.mxu0 0.0
      %682 = vmatpush.msra.mxu0 0.0
      %683 = vmatpush.msra.mxu0 0.0
      %684 = vmatpush.msra.mxu0 0.0
      %685 = vmatpush.msra.mxu0 0.0
      %686 = vmatpush.msra.mxu0 0.0
      %687 = vmatpush.msra.mxu0 0.0
      %688 = vmatpush.msra.mxu0 0.0
      %689 = vmatpush.msra.mxu0 0.0
      %690 = vmatpush.msra.mxu0 %v465
      %691 = vmatpush.msra.mxu0 %v464
      %692 = vmatmul.f32.gmra.mxu0 %v468
      %v693 = vpop.f32.mrf.mxu0
      %v694 = vadd.f32 %v581, %v693
      %695 = vmatmul.f32.gmra.mxu0 %v471
      %v696 = vpop.f32.mrf.mxu0
      %v697 = vadd.f32 %v584, %v696
      %698 = vmatmul.f32.gmra.mxu0 %v474
      %v699 = vpop.f32.mrf.mxu0
      %v700 = vadd.f32 %v587, %v699
      %701 = vmatmul.f32.gmra.mxu0 %v477
      %v702 = vpop.f32.mrf.mxu0
      %v703 = vadd.f32 %v590, %v702
      %704 = vmatmul.f32.gmra.mxu0 %v480
      %v705 = vpop.f32.mrf.mxu0
      %v706 = vadd.f32 %v593, %v705
      %707 = vmatmul.f32.gmra.mxu0 %v483
      %v708 = vpop.f32.mrf.mxu0
      %v709 = vadd.f32 %v596, %v708
      %710 = vmatmul.f32.gmra.mxu0 %v486
      %v711 = vpop.f32.mrf.mxu0
      %v712 = vadd.f32 %v599, %v711
      %713 = vmatmul.f32.gmra.mxu0 %v489
      %v714 = vpop.f32.mrf.mxu0
      %v715 = vadd.f32 %v602, %v714
      %716 = vmatmul.f32.gmra.mxu0 %v492
      %v717 = vpop.f32.mrf.mxu0
      %v718 = vadd.f32 %v605, %v717
      %719 = vmatmul.f32.gmra.mxu0 %v495
      %v720 = vpop.f32.mrf.mxu0
      %v721 = vadd.f32 %v608, %v720
      %722 = vmatmul.f32.gmra.mxu0 %v498
      %v723 = vpop.f32.mrf.mxu0
      %v724 = vadd.f32 %v611, %v723
      %725 = vmatmul.f32.gmra.mxu0 %v501
      %v726 = vpop.f32.mrf.mxu0
      %v727 = vadd.f32 %v614, %v726
      %728 = vmatmul.f32.gmra.mxu0 %v504
      %v729 = vpop.f32.mrf.mxu0
      %v730 = vadd.f32 %v617, %v729
      %731 = vmatmul.f32.gmra.mxu0 %v507
      %v732 = vpop.f32.mrf.mxu0
      %v733 = vadd.f32 %v620, %v732
      %734 = vmatmul.f32.gmra.mxu0 %v510
      %v735 = vpop.f32.mrf.mxu0
      %v736 = vadd.f32 %v623, %v735
      %737 = vmatmul.f32.gmra.mxu0 %v513
      %v738 = vpop.f32.mrf.mxu0
      %v739 = vadd.f32 %v626, %v738
      %740 = vmatmul.f32.gmra.mxu0 %v516
      %v741 = vpop.f32.mrf.mxu0
      %v742 = vadd.f32 %v629, %v741
      %743 = vmatmul.f32.gmra.mxu0 %v519
      %v744 = vpop.f32.mrf.mxu0
      %v745 = vadd.f32 %v632, %v744
      %746 = vmatmul.f32.gmra.mxu0 %v522
      %v747 = vpop.f32.mrf.mxu0
      %v748 = vadd.f32 %v635, %v747
      %749 = vmatmul.f32.gmra.mxu0 %v525
      %v750 = vpop.f32.mrf.mxu0
      %v751 = vadd.f32 %v638, %v750
      %752 = vmatmul.f32.gmra.mxu0 %v528
      %v753 = vpop.f32.mrf.mxu0
      %v754 = vadd.f32 %v641, %v753
      %755 = vmatmul.f32.gmra.mxu0 %v531
      %v756 = vpop.f32.mrf.mxu0
      %v757 = vadd.f32 %v644, %v756
      %758 = vmatmul.f32.gmra.mxu0 %v534
      %v759 = vpop.f32.mrf.mxu0
      %v760 = vadd.f32 %v647, %v759
      %761 = vmatmul.f32.gmra.mxu0 %v537
      %v762 = vpop.f32.mrf.mxu0
      %v763 = vadd.f32 %v650, %v762
      %764 = vmatmul.f32.gmra.mxu0 %v540
      %v765 = vpop.f32.mrf.mxu0
      %v766 = vadd.f32 %v653, %v765
      %767 = vmatmul.f32.gmra.mxu0 %v543
      %v768 = vpop.f32.mrf.mxu0
      %v769 = vadd.f32 %v656, %v768
      %770 = vmatmul.f32.gmra.mxu0 %v546
      %v771 = vpop.f32.mrf.mxu0
      %v772 = vadd.f32 %v659, %v771
      %773 = vmatmul.f32.gmra.mxu0 %v549
      %v774 = vpop.f32.mrf.mxu0
      %v775 = vadd.f32 %v662, %v774
      %776 = vmatmul.f32.gmra.mxu0 %v552
      %v777 = vpop.f32.mrf.mxu0
      %v778 = vadd.f32 %v665, %v777
      %779 = vmatmul.f32.gmra.mxu0 %v555
      %v780 = vpop.f32.mrf.mxu0
      %v781 = vadd.f32 %v668, %v780
      %782 = vmatmul.f32.gmra.mxu0 %v558
      %v783 = vpop.f32.mrf.mxu0
      %v784 = vadd.f32 %v671, %v783
      %785 = vmatmul.f32.gmra.mxu0 %v561
      %v786 = vpop.f32.mrf.mxu0
      %v787 = vadd.f32 %v674, %v786
      %788 = vdwg.mxu0
      %v789 = vld [vmem:[%s294] sm:$0xff]
      %v790 = vld [vmem:[%s294 + $0x8] sm:$0xff]
      %v791 = vld [vmem:[%s294 + $0x10] sm:$0xff]
      %v792 = vld [vmem:[%s294 + $0x18] sm:$0xff]
      %v793 = vld [vmem:[%s294 + $0x20] sm:$0xff]
      %v794 = vld [vmem:[%s294 + $0x28] sm:$0xff]
      %v795 = vld [vmem:[%s294 + $0x30] sm:$0xff]
      %v796 = vld [vmem:[%s294 + $0x38] sm:$0xff]
      %v797 = vld [vmem:[%s294 + $0x40] sm:$0xff]
      %v798 = vld [vmem:[%s294 + $0x48] sm:$0xff]
      %v799 = vld [vmem:[%s294 + $0x50] sm:$0xff]
      %v800 = vld [vmem:[%s294 + $0x58] sm:$0xff]
      %v801 = vld [vmem:[%s294 + $0x60] sm:$0xff]
      %v802 = vld [vmem:[%s294 + $0x68] sm:$0xff]
      %v803 = vld [vmem:[%s294 + $0x70] sm:$0xff]
      %v804 = vld [vmem:[%s294 + $0x78] sm:$0xff]
      %v805 = vld [vmem:[%s294 + $0x80] sm:$0xff]
      %v806 = vld [vmem:[%s294 + $0x88] sm:$0xff]
      %v807 = vld [vmem:[%s294 + $0x90] sm:$0xff]
      %v808 = vld [vmem:[%s294 + $0x98] sm:$0xff]
      %v809 = vld [vmem:[%s294 + $0xa0] sm:$0xff]
      %v810 = vld [vmem:[%s294 + $0xa8] sm:$0xff]
      %v811 = vld [vmem:[%s294 + $0xb0] sm:$0xff]
      %v812 = vld [vmem:[%s294 + $0xb8] sm:$0xff]
      %v813 = vld [vmem:[%s294 + $0xc0] sm:$0xff]
      %v814 = vld [vmem:[%s294 + $0xc8] sm:$0xff]
      %v815 = vld [vmem:[%s294 + $0xd0] sm:$0xff]
      %v816 = vld [vmem:[%s294 + $0xd8] sm:$0xff]
      %v817 = vld [vmem:[%s294 + $0xe0] sm:$0xff]
      %v818 = vld [vmem:[%s294 + $0xe8] sm:$0xff]
      %v819 = vld [vmem:[%s294 + $0xf0] sm:$0xff]
      %v820 = vld [vmem:[%s294 + $0xf8] sm:$0xff]
      %822 = vset.pattern.permute.xlu0 0
      %823 = vperm.xlu0 %822, %v789
      %v824 = vpop.permute.xlu0 %823
      %827 = vset.pattern.permute.xlu0 0
      %828 = vperm.xlu0 %827, %v790
      %v829 = vpop.permute.xlu0 %828
      %832 = vset.pattern.permute.xlu0 0
      %833 = vperm.xlu0 %832, %v791
      %v834 = vpop.permute.xlu0 %833
      %837 = vset.pattern.permute.xlu0 0
      %838 = vperm.xlu0 %837, %v792
      %v839 = vpop.permute.xlu0 %838
      %842 = vset.pattern.permute.xlu0 0
      %843 = vperm.xlu0 %842, %v793
      %v844 = vpop.permute.xlu0 %843
      %847 = vset.pattern.permute.xlu0 0
      %848 = vperm.xlu0 %847, %v794
      %v849 = vpop.permute.xlu0 %848
      %852 = vset.pattern.permute.xlu0 0
      %853 = vperm.xlu0 %852, %v795
      %v854 = vpop.permute.xlu0 %853
      %857 = vset.pattern.permute.xlu0 0
      %858 = vperm.xlu0 %857, %v796
      %v859 = vpop.permute.xlu0 %858
      %862 = vset.pattern.permute.xlu0 0
      %863 = vperm.xlu0 %862, %v797
      %v864 = vpop.permute.xlu0 %863
      %867 = vset.pattern.permute.xlu0 0
      %868 = vperm.xlu0 %867, %v798
      %v869 = vpop.permute.xlu0 %868
      %872 = vset.pattern.permute.xlu0 0
      %873 = vperm.xlu0 %872, %v799
      %v874 = vpop.permute.xlu0 %873
      %877 = vset.pattern.permute.xlu0 0
      %878 = vperm.xlu0 %877, %v800
      %v879 = vpop.permute.xlu0 %878
      %882 = vset.pattern.permute.xlu0 0
      %883 = vperm.xlu0 %882, %v801
      %v884 = vpop.permute.xlu0 %883
      %887 = vset.pattern.permute.xlu0 0
      %888 = vperm.xlu0 %887, %v802
      %v889 = vpop.permute.xlu0 %888
      %892 = vset.pattern.permute.xlu0 0
      %893 = vperm.xlu0 %892, %v803
      %v894 = vpop.permute.xlu0 %893
      %897 = vset.pattern.permute.xlu0 0
      %898 = vperm.xlu0 %897, %v804
      %v899 = vpop.permute.xlu0 %898
      %902 = vset.pattern.permute.xlu0 0
      %903 = vperm.xlu0 %902, %v805
      %v904 = vpop.permute.xlu0 %903
      %907 = vset.pattern.permute.xlu0 0
      %908 = vperm.xlu0 %907, %v806
      %v909 = vpop.permute.xlu0 %908
      %912 = vset.pattern.permute.xlu0 0
      %913 = vperm.xlu0 %912, %v807
      %v914 = vpop.permute.xlu0 %913
      %917 = vset.pattern.permute.xlu0 0
      %918 = vperm.xlu0 %917, %v808
      %v919 = vpop.permute.xlu0 %918
      %922 = vset.pattern.permute.xlu0 0
      %923 = vperm.xlu0 %922, %v809
      %v924 = vpop.permute.xlu0 %923
      %927 = vset.pattern.permute.xlu0 0
      %928 = vperm.xlu0 %927, %v810
      %v929 = vpop.permute.xlu0 %928
      %932 = vset.pattern.permute.xlu0 0
      %933 = vperm.xlu0 %932, %v811
      %v934 = vpop.permute.xlu0 %933
      %937 = vset.pattern.permute.xlu0 0
      %938 = vperm.xlu0 %937, %v812
      %v939 = vpop.permute.xlu0 %938
      %942 = vset.pattern.permute.xlu0 0
      %943 = vperm.xlu0 %942, %v813
      %v944 = vpop.permute.xlu0 %943
      %947 = vset.pattern.permute.xlu0 0
      %948 = vperm.xlu0 %947, %v814
      %v949 = vpop.permute.xlu0 %948
      %952 = vset.pattern.permute.xlu0 0
      %953 = vperm.xlu0 %952, %v815
      %v954 = vpop.permute.xlu0 %953
      %957 = vset.pattern.permute.xlu0 0
      %958 = vperm.xlu0 %957, %v816
      %v959 = vpop.permute.xlu0 %958
      %962 = vset.pattern.permute.xlu0 0
      %963 = vperm.xlu0 %962, %v817
      %v964 = vpop.permute.xlu0 %963
      %967 = vset.pattern.permute.xlu0 0
      %968 = vperm.xlu0 %967, %v818
      %v969 = vpop.permute.xlu0 %968
      %972 = vset.pattern.permute.xlu0 0
      %973 = vperm.xlu0 %972, %v819
      %v974 = vpop.permute.xlu0 %973
      %977 = vset.pattern.permute.xlu0 0
      %978 = vperm.xlu0 %977, %v820
      %v979 = vpop.permute.xlu0 %978
      %v981 = vmul.f32 %v694, %v824
      %v982 = vmul.f32 %v697, %v829
      %v983 = vmul.f32 %v700, %v834
      %v984 = vmul.f32 %v703, %v839
      %v985 = vmul.f32 %v706, %v844
      %v986 = vmul.f32 %v709, %v849
      %v987 = vmul.f32 %v712, %v854
      %v988 = vmul.f32 %v715, %v859
      %v989 = vmul.f32 %v718, %v864
      %v990 = vmul.f32 %v721, %v869
      %v991 = vmul.f32 %v724, %v874
      %v992 = vmul.f32 %v727, %v879
      %v993 = vmul.f32 %v730, %v884
      %v994 = vmul.f32 %v733, %v889
      %v995 = vmul.f32 %v736, %v894
      %v996 = vmul.f32 %v739, %v899
      %v997 = vmul.f32 %v742, %v904
      %v998 = vmul.f32 %v745, %v909
      %v999 = vmul.f32 %v748, %v914
      %v1000 = vmul.f32 %v751, %v919
      %v1001 = vmul.f32 %v754, %v924
      %v1002 = vmul.f32 %v757, %v929
      %v1003 = vmul.f32 %v760, %v934
      %v1004 = vmul.f32 %v763, %v939
      %v1005 = vmul.f32 %v766, %v944
      %v1006 = vmul.f32 %v769, %v949
      %v1007 = vmul.f32 %v772, %v954
      %v1008 = vmul.f32 %v775, %v959
      %v1009 = vmul.f32 %v778, %v964
      %v1010 = vmul.f32 %v781, %v969
      %v1011 = vmul.f32 %v784, %v974
      %v1012 = vmul.f32 %v787, %v979
      %v1014 = vsel %vm466, %v367, 0
      %v1017 = vsel %vm466, %v369, 0
      %v1020 = vsel %vm466, %v371, 0
      %v1023 = vsel %vm466, %v373, 0
      %v1026 = vsel %vm466, %v375, 0
      %v1029 = vsel %vm466, %v377, 0
      %v1032 = vsel %vm466, %v379, 0
      %v1035 = vsel %vm466, %v381, 0
      %v1038 = vsel %vm466, %v383, 0
      %v1041 = vsel %vm466, %v385, 0
      %v1044 = vsel %vm466, %v387, 0
      %v1047 = vsel %vm466, %v389, 0
      %v1050 = vsel %vm466, %v391, 0
      %v1053 = vsel %vm466, %v393, 0
      %v1056 = vsel %vm466, %v395, 0
      %v1059 = vsel %vm466, %v397, 0
      %v1062 = vsel %vm466, %v399, 0
      %v1065 = vsel %vm466, %v401, 0
      %v1068 = vsel %vm466, %v403, 0
      %v1071 = vsel %vm466, %v405, 0
      %v1074 = vsel %vm466, %v407, 0
      %v1077 = vsel %vm466, %v409, 0
      %v1080 = vsel %vm466, %v411, 0
      %v1083 = vsel %vm466, %v413, 0
      %v1086 = vsel %vm466, %v415, 0
      %v1089 = vsel %vm466, %v417, 0
      %v1092 = vsel %vm466, %v419, 0
      %v1095 = vsel %vm466, %v421, 0
      %v1098 = vsel %vm466, %v423, 0
      %v1101 = vsel %vm466, %v425, 0
      %v1104 = vsel %vm466, %v427, 0
      %v1107 = vsel %vm466, %v429, 0
      %1109 = vmatpush.msra.mxu0 %v445
      %1110 = vmatpush.msra.mxu0 %v444
      %1111 = vmatpush.msra.mxu0 %v443
      %1112 = vmatpush.msra.mxu0 %v442
      %1113 = vmatpush.msra.mxu0 %v441
      %1114 = vmatpush.msra.mxu0 %v440
      %1115 = vmatpush.msra.mxu0 %v439
      %1116 = vmatpush.msra.mxu0 %v438
      %1117 = vmatpush.msra.mxu0 %v437
      %1118 = vmatpush.msra.mxu0 %v436
      %1119 = vmatpush.msra.mxu0 %v435
      %1120 = vmatpush.msra.mxu0 %v434
      %1121 = vmatpush.msra.mxu0 %v433
      %1122 = vmatpush.msra.mxu0 %v432
      %1123 = vmatpush.msra.mxu0 %v431
      %1124 = vmatpush.msra.mxu0 %v430
      %1125 = vmatmul.f32.gmra.mxu0 %v366
      %v1126 = vpop.f32.mrf.mxu0
      %v1127 = vadd.f32 %v981, %v1126
      %1128 = vmatmul.f32.gmra.mxu0 %v368
      %v1129 = vpop.f32.mrf.mxu0
      %v1130 = vadd.f32 %v982, %v1129
      %1131 = vmatmul.f32.gmra.mxu0 %v370
      %v1132 = vpop.f32.mrf.mxu0
      %v1133 = vadd.f32 %v983, %v1132
      %1134 = vmatmul.f32.gmra.mxu0 %v372
      %v1135 = vpop.f32.mrf.mxu0
      %v1136 = vadd.f32 %v984, %v1135
      %1137 = vmatmul.f32.gmra.mxu0 %v374
      %v1138 = vpop.f32.mrf.mxu0
      %v1139 = vadd.f32 %v985, %v1138
      %1140 = vmatmul.f32.gmra.mxu0 %v376
      %v1141 = vpop.f32.mrf.mxu0
      %v1142 = vadd.f32 %v986, %v1141
      %1143 = vmatmul.f32.gmra.mxu0 %v378
      %v1144 = vpop.f32.mrf.mxu0
      %v1145 = vadd.f32 %v987, %v1144
      %1146 = vmatmul.f32.gmra.mxu0 %v380
      %v1147 = vpop.f32.mrf.mxu0
      %v1148 = vadd.f32 %v988, %v1147
      %1149 = vmatmul.f32.gmra.mxu0 %v382
      %v1150 = vpop.f32.mrf.mxu0
      %v1151 = vadd.f32 %v989, %v1150
      %1152 = vmatmul.f32.gmra.mxu0 %v384
      %v1153 = vpop.f32.mrf.mxu0
      %v1154 = vadd.f32 %v990, %v1153
      %1155 = vmatmul.f32.gmra.mxu0 %v386
      %v1156 = vpop.f32.mrf.mxu0
      %v1157 = vadd.f32 %v991, %v1156
      %1158 = vmatmul.f32.gmra.mxu0 %v388
      %v1159 = vpop.f32.mrf.mxu0
      %v1160 = vadd.f32 %v992, %v1159
      %1161 = vmatmul.f32.gmra.mxu0 %v390
      %v1162 = vpop.f32.mrf.mxu0
      %v1163 = vadd.f32 %v993, %v1162
      %1164 = vmatmul.f32.gmra.mxu0 %v392
      %v1165 = vpop.f32.mrf.mxu0
      %v1166 = vadd.f32 %v994, %v1165
      %1167 = vmatmul.f32.gmra.mxu0 %v394
      %v1168 = vpop.f32.mrf.mxu0
      %v1169 = vadd.f32 %v995, %v1168
      %1170 = vmatmul.f32.gmra.mxu0 %v396
      %v1171 = vpop.f32.mrf.mxu0
      %v1172 = vadd.f32 %v996, %v1171
      %1173 = vmatmul.f32.gmra.mxu0 %v398
      %v1174 = vpop.f32.mrf.mxu0
      %v1175 = vadd.f32 %v997, %v1174
      %1176 = vmatmul.f32.gmra.mxu0 %v400
      %v1177 = vpop.f32.mrf.mxu0
      %v1178 = vadd.f32 %v998, %v1177
      %1179 = vmatmul.f32.gmra.mxu0 %v402
      %v1180 = vpop.f32.mrf.mxu0
      %v1181 = vadd.f32 %v999, %v1180
      %1182 = vmatmul.f32.gmra.mxu0 %v404
      %v1183 = vpop.f32.mrf.mxu0
      %v1184 = vadd.f32 %v1000, %v1183
      %1185 = vmatmul.f32.gmra.mxu0 %v406
      %v1186 = vpop.f32.mrf.mxu0
      %v1187 = vadd.f32 %v1001, %v1186
      %1188 = vmatmul.f32.gmra.mxu0 %v408
      %v1189 = vpop.f32.mrf.mxu0
      %v1190 = vadd.f32 %v1002, %v1189
      %1191 = vmatmul.f32.gmra.mxu0 %v410
      %v1192 = vpop.f32.mrf.mxu0
      %v1193 = vadd.f32 %v1003, %v1192
      %1194 = vmatmul.f32.gmra.mxu0 %v412
      %v1195 = vpop.f32.mrf.mxu0
      %v1196 = vadd.f32 %v1004, %v1195
      %1197 = vmatmul.f32.gmra.mxu0 %v414
      %v1198 = vpop.f32.mrf.mxu0
      %v1199 = vadd.f32 %v1005, %v1198
      %1200 = vmatmul.f32.gmra.mxu0 %v416
      %v1201 = vpop.f32.mrf.mxu0
      %v1202 = vadd.f32 %v1006, %v1201
      %1203 = vmatmul.f32.gmra.mxu0 %v418
      %v1204 = vpop.f32.mrf.mxu0
      %v1205 = vadd.f32 %v1007, %v1204
      %1206 = vmatmul.f32.gmra.mxu0 %v420
      %v1207 = vpop.f32.mrf.mxu0
      %v1208 = vadd.f32 %v1008, %v1207
      %1209 = vmatmul.f32.gmra.mxu0 %v422
      %v1210 = vpop.f32.mrf.mxu0
      %v1211 = vadd.f32 %v1009, %v1210
      %1212 = vmatmul.f32.gmra.mxu0 %v424
      %v1213 = vpop.f32.mrf.mxu0
      %v1214 = vadd.f32 %v1010, %v1213
      %1215 = vmatmul.f32.gmra.mxu0 %v426
      %v1216 = vpop.f32.mrf.mxu0
      %v1217 = vadd.f32 %v1011, %v1216
      %1218 = vmatmul.f32.gmra.mxu0 %v428
      %v1219 = vpop.f32.mrf.mxu0
      %v1220 = vadd.f32 %v1012, %v1219
      %1221 = vdwg.mxu0
      %1222 = vmatpush.msra.mxu0 0.0
      %1223 = vmatpush.msra.mxu0 0.0
      %1224 = vmatpush.msra.mxu0 0.0
      %1225 = vmatpush.msra.mxu0 0.0
      %1226 = vmatpush.msra.mxu0 0.0
      %1227 = vmatpush.msra.mxu0 0.0
      %1228 = vmatpush.msra.mxu0 0.0
      %1229 = vmatpush.msra.mxu0 0.0
      %1230 = vmatpush.msra.mxu0 0.0
      %1231 = vmatpush.msra.mxu0 0.0
      %1232 = vmatpush.msra.mxu0 0.0
      %1233 = vmatpush.msra.mxu0 0.0
      %1234 = vmatpush.msra.mxu0 0.0
      %1235 = vmatpush.msra.mxu0 0.0
      %1236 = vmatpush.msra.mxu0 %v447
      %1237 = vmatpush.msra.mxu0 %v446
      %1238 = vmatmul.f32.gmra.mxu0 %v1014
      %v1239 = vpop.f32.mrf.mxu0
      %v1240 = vadd.f32 %v1127, %v1239
      %1241 = vmatmul.f32.gmra.mxu0 %v1017
      %v1242 = vpop.f32.mrf.mxu0
      %v1243 = vadd.f32 %v1130, %v1242
      %1244 = vmatmul.f32.gmra.mxu0 %v1020
      %v1245 = vpop.f32.mrf.mxu0
      %v1246 = vadd.f32 %v1133, %v1245
      %1247 = vmatmul.f32.gmra.mxu0 %v1023
      %v1248 = vpop.f32.mrf.mxu0
      %v1249 = vadd.f32 %v1136, %v1248
      %1250 = vmatmul.f32.gmra.mxu0 %v1026
      %v1251 = vpop.f32.mrf.mxu0
      %v1252 = vadd.f32 %v1139, %v1251
      %1253 = vmatmul.f32.gmra.mxu0 %v1029
      %v1254 = vpop.f32.mrf.mxu0
      %v1255 = vadd.f32 %v1142, %v1254
      %1256 = vmatmul.f32.gmra.mxu0 %v1032
      %v1257 = vpop.f32.mrf.mxu0
      %v1258 = vadd.f32 %v1145, %v1257
      %1259 = vmatmul.f32.gmra.mxu0 %v1035
      %v1260 = vpop.f32.mrf.mxu0
      %v1261 = vadd.f32 %v1148, %v1260
      %1262 = vmatmul.f32.gmra.mxu0 %v1038
      %v1263 = vpop.f32.mrf.mxu0
      %v1264 = vadd.f32 %v1151, %v1263
      %1265 = vmatmul.f32.gmra.mxu0 %v1041
      %v1266 = vpop.f32.mrf.mxu0
      %v1267 = vadd.f32 %v1154, %v1266
      %1268 = vmatmul.f32.gmra.mxu0 %v1044
      %v1269 = vpop.f32.mrf.mxu0
      %v1270 = vadd.f32 %v1157, %v1269
      %1271 = vmatmul.f32.gmra.mxu0 %v1047
      %v1272 = vpop.f32.mrf.mxu0
      %v1273 = vadd.f32 %v1160, %v1272
      %1274 = vmatmul.f32.gmra.mxu0 %v1050
      %v1275 = vpop.f32.mrf.mxu0
      %v1276 = vadd.f32 %v1163, %v1275
      %1277 = vmatmul.f32.gmra.mxu0 %v1053
      %v1278 = vpop.f32.mrf.mxu0
      %v1279 = vadd.f32 %v1166, %v1278
      %1280 = vmatmul.f32.gmra.mxu0 %v1056
      %v1281 = vpop.f32.mrf.mxu0
      %v1282 = vadd.f32 %v1169, %v1281
      %1283 = vmatmul.f32.gmra.mxu0 %v1059
      %v1284 = vpop.f32.mrf.mxu0
      %v1285 = vadd.f32 %v1172, %v1284
      %1286 = vmatmul.f32.gmra.mxu0 %v1062
      %v1287 = vpop.f32.mrf.mxu0
      %v1288 = vadd.f32 %v1175, %v1287
      %1289 = vmatmul.f32.gmra.mxu0 %v1065
      %v1290 = vpop.f32.mrf.mxu0
      %v1291 = vadd.f32 %v1178, %v1290
      %1292 = vmatmul.f32.gmra.mxu0 %v1068
      %v1293 = vpop.f32.mrf.mxu0
      %v1294 = vadd.f32 %v1181, %v1293
      %1295 = vmatmul.f32.gmra.mxu0 %v1071
      %v1296 = vpop.f32.mrf.mxu0
      %v1297 = vadd.f32 %v1184, %v1296
      %1298 = vmatmul.f32.gmra.mxu0 %v1074
      %v1299 = vpop.f32.mrf.mxu0
      %v1300 = vadd.f32 %v1187, %v1299
      %1301 = vmatmul.f32.gmra.mxu0 %v1077
      %v1302 = vpop.f32.mrf.mxu0
      %v1303 = vadd.f32 %v1190, %v1302
      %1304 = vmatmul.f32.gmra.mxu0 %v1080
      %v1305 = vpop.f32.mrf.mxu0
      %v1306 = vadd.f32 %v1193, %v1305
      %1307 = vmatmul.f32.gmra.mxu0 %v1083
      %v1308 = vpop.f32.mrf.mxu0
      %v1309 = vadd.f32 %v1196, %v1308
      %1310 = vmatmul.f32.gmra.mxu0 %v1086
      %v1311 = vpop.f32.mrf.mxu0
      %v1312 = vadd.f32 %v1199, %v1311
      %1313 = vmatmul.f32.gmra.mxu0 %v1089
      %v1314 = vpop.f32.mrf.mxu0
      %v1315 = vadd.f32 %v1202, %v1314
      %1316 = vmatmul.f32.gmra.mxu0 %v1092
      %v1317 = vpop.f32.mrf.mxu0
      %v1318 = vadd.f32 %v1205, %v1317
      %1319 = vmatmul.f32.gmra.mxu0 %v1095
      %v1320 = vpop.f32.mrf.mxu0
      %v1321 = vadd.f32 %v1208, %v1320
      %1322 = vmatmul.f32.gmra.mxu0 %v1098
      %v1323 = vpop.f32.mrf.mxu0
      %v1324 = vadd.f32 %v1211, %v1323
      %1325 = vmatmul.f32.gmra.mxu0 %v1101
      %v1326 = vpop.f32.mrf.mxu0
      %v1327 = vadd.f32 %v1214, %v1326
      %1328 = vmatmul.f32.gmra.mxu0 %v1104
      %v1329 = vpop.f32.mrf.mxu0
      %v1330 = vadd.f32 %v1217, %v1329
      %1331 = vmatmul.f32.gmra.mxu0 %v1107
      %v1332 = vpop.f32.mrf.mxu0
      %v1333 = vadd.f32 %v1220, %v1332
      %1334 = vdwg.mxu0
      %v1335 = vld [vmem:[%s281] sm:$0xff]
      %v1336 = vld [vmem:[%s281 + $0x8] sm:$0xff]
      %v1337 = vld [vmem:[%s281 + $0x10] sm:$0xff]
      %v1338 = vld [vmem:[%s281 + $0x18] sm:$0xff]
      %v1339 = vld [vmem:[%s281 + $0x20] sm:$0xff]
      %v1340 = vld [vmem:[%s281 + $0x28] sm:$0xff]
      %v1341 = vld [vmem:[%s281 + $0x30] sm:$0xff]
      %v1342 = vld [vmem:[%s281 + $0x38] sm:$0xff]
      %v1343 = vld [vmem:[%s281 + $0x40] sm:$0xff]
      %v1344 = vld [vmem:[%s281 + $0x48] sm:$0xff]
      %v1345 = vld [vmem:[%s281 + $0x50] sm:$0xff]
      %v1346 = vld [vmem:[%s281 + $0x58] sm:$0xff]
      %v1347 = vld [vmem:[%s281 + $0x60] sm:$0xff]
      %v1348 = vld [vmem:[%s281 + $0x68] sm:$0xff]
      %v1349 = vld [vmem:[%s281 + $0x70] sm:$0xff]
      %v1350 = vld [vmem:[%s281 + $0x78] sm:$0xff]
      %v1351 = vld [vmem:[%s281 + $0x80] sm:$0xff]
      %v1352 = vld [vmem:[%s281 + $0x88] sm:$0xff]
      %v1353 = vld [vmem:[%s281 + $0x90] sm:$0xff]
      %v1354 = vld [vmem:[%s281 + $0x98] sm:$0xff]
      %v1355 = vld [vmem:[%s281 + $0xa0] sm:$0xff]
      %v1356 = vld [vmem:[%s281 + $0xa8] sm:$0xff]
      %v1357 = vld [vmem:[%s281 + $0xb0] sm:$0xff]
      %v1358 = vld [vmem:[%s281 + $0xb8] sm:$0xff]
      %v1359 = vld [vmem:[%s281 + $0xc0] sm:$0xff]
      %v1360 = vld [vmem:[%s281 + $0xc8] sm:$0xff]
      %v1361 = vld [vmem:[%s281 + $0xd0] sm:$0xff]
      %v1362 = vld [vmem:[%s281 + $0xd8] sm:$0xff]
      %v1363 = vld [vmem:[%s281 + $0xe0] sm:$0xff]
      %v1364 = vld [vmem:[%s281 + $0xe8] sm:$0xff]
      %v1365 = vld [vmem:[%s281 + $0xf0] sm:$0xff]
      %v1366 = vld [vmem:[%s281 + $0xf8] sm:$0xff]
      %v1367 = vld [vmem:[%s4] sm:$0xff]
      %v1368 = vld [vmem:[%s4 + $0x8] sm:$0xff]
      %v1370 = vsel %vm466, %v1335, 0
      %v1373 = vsel %vm466, %v1336, 0
      %v1376 = vsel %vm466, %v1337, 0
      %v1379 = vsel %vm466, %v1338, 0
      %v1382 = vsel %vm466, %v1339, 0
      %v1385 = vsel %vm466, %v1340, 0
      %v1388 = vsel %vm466, %v1341, 0
      %v1391 = vsel %vm466, %v1342, 0
      %v1394 = vsel %vm466, %v1343, 0
      %v1397 = vsel %vm466, %v1344, 0
      %v1400 = vsel %vm466, %v1345, 0
      %v1403 = vsel %vm466, %v1346, 0
      %v1406 = vsel %vm466, %v1347, 0
      %v1409 = vsel %vm466, %v1348, 0
      %v1412 = vsel %vm466, %v1349, 0
      %v1415 = vsel %vm466, %v1350, 0
      %v1418 = vsel %vm466, %v1351, 0
      %v1421 = vsel %vm466, %v1352, 0
      %v1424 = vsel %vm466, %v1353, 0
      %v1427 = vsel %vm466, %v1354, 0
      %v1430 = vsel %vm466, %v1355, 0
      %v1433 = vsel %vm466, %v1356, 0
      %v1436 = vsel %vm466, %v1357, 0
      %v1439 = vsel %vm466, %v1358, 0
      %v1442 = vsel %vm466, %v1359, 0
      %v1445 = vsel %vm466, %v1360, 0
      %v1448 = vsel %vm466, %v1361, 0
      %v1451 = vsel %vm466, %v1362, 0
      %v1454 = vsel %vm466, %v1363, 0
      %v1457 = vsel %vm466, %v1364, 0
      %v1460 = vsel %vm466, %v1365, 0
      %v1463 = vsel %vm466, %v1366, 0
      %1465 = vmatpush.msra.mxu0 0.0
      %1466 = vmatpush.msra.mxu0 0.0
      %1467 = vmatpush.msra.mxu0 0.0
      %1468 = vmatpush.msra.mxu0 0.0
      %1469 = vmatpush.msra.mxu0 0.0
      %1470 = vmatpush.msra.mxu0 0.0
      %1471 = vmatpush.msra.mxu0 0.0
      %1472 = vmatpush.msra.mxu0 0.0
      %1473 = vmatpush.msra.mxu0 0.0
      %1474 = vmatpush.msra.mxu0 0.0
      %1475 = vmatpush.msra.mxu0 0.0
      %1476 = vmatpush.msra.mxu0 0.0
      %1477 = vmatpush.msra.mxu0 0.0
      %1478 = vmatpush.msra.mxu0 0.0
      %1479 = vmatpush.msra.mxu0 %v1368
      %1480 = vmatpush.msra.mxu0 %v1367
      %1481 = vmatmul.f32.gmra.mxu0 %v1370
      %v1482 = vpop.f32.mrf.mxu0
      %v1483 = vadd.f32 0.0, %v1482
      %1484 = vmatmul.f32.gmra.mxu0 %v1373
      %v1485 = vpop.f32.mrf.mxu0
      %v1486 = vadd.f32 0.0, %v1485
      %1487 = vmatmul.f32.gmra.mxu0 %v1376
      %v1488 = vpop.f32.mrf.mxu0
      %v1489 = vadd.f32 0.0, %v1488
      %1490 = vmatmul.f32.gmra.mxu0 %v1379
      %v1491 = vpop.f32.mrf.mxu0
      %v1492 = vadd.f32 0.0, %v1491
      %1493 = vmatmul.f32.gmra.mxu0 %v1382
      %v1494 = vpop.f32.mrf.mxu0
      %v1495 = vadd.f32 0.0, %v1494
      %1496 = vmatmul.f32.gmra.mxu0 %v1385
      %v1497 = vpop.f32.mrf.mxu0
      %v1498 = vadd.f32 0.0, %v1497
      %1499 = vmatmul.f32.gmra.mxu0 %v1388
      %v1500 = vpop.f32.mrf.mxu0
      %v1501 = vadd.f32 0.0, %v1500
      %1502 = vmatmul.f32.gmra.mxu0 %v1391
      %v1503 = vpop.f32.mrf.mxu0
      %v1504 = vadd.f32 0.0, %v1503
      %1505 = vmatmul.f32.gmra.mxu0 %v1394
      %v1506 = vpop.f32.mrf.mxu0
      %v1507 = vadd.f32 0.0, %v1506
      %1508 = vmatmul.f32.gmra.mxu0 %v1397
      %v1509 = vpop.f32.mrf.mxu0
      %v1510 = vadd.f32 0.0, %v1509
      %1511 = vmatmul.f32.gmra.mxu0 %v1400
      %v1512 = vpop.f32.mrf.mxu0
      %v1513 = vadd.f32 0.0, %v1512
      %1514 = vmatmul.f32.gmra.mxu0 %v1403
      %v1515 = vpop.f32.mrf.mxu0
      %v1516 = vadd.f32 0.0, %v1515
      %1517 = vmatmul.f32.gmra.mxu0 %v1406
      %v1518 = vpop.f32.mrf.mxu0
      %v1519 = vadd.f32 0.0, %v1518
      %1520 = vmatmul.f32.gmra.mxu0 %v1409
      %v1521 = vpop.f32.mrf.mxu0
      %v1522 = vadd.f32 0.0, %v1521
      %1523 = vmatmul.f32.gmra.mxu0 %v1412
      %v1524 = vpop.f32.mrf.mxu0
      %v1525 = vadd.f32 0.0, %v1524
      %1526 = vmatmul.f32.gmra.mxu0 %v1415
      %v1527 = vpop.f32.mrf.mxu0
      %v1528 = vadd.f32 0.0, %v1527
      %1529 = vmatmul.f32.gmra.mxu0 %v1418
      %v1530 = vpop.f32.mrf.mxu0
      %v1531 = vadd.f32 0.0, %v1530
      %1532 = vmatmul.f32.gmra.mxu0 %v1421
      %v1533 = vpop.f32.mrf.mxu0
      %v1534 = vadd.f32 0.0, %v1533
      %1535 = vmatmul.f32.gmra.mxu0 %v1424
      %v1536 = vpop.f32.mrf.mxu0
      %v1537 = vadd.f32 0.0, %v1536
      %1538 = vmatmul.f32.gmra.mxu0 %v1427
      %v1539 = vpop.f32.mrf.mxu0
      %v1540 = vadd.f32 0.0, %v1539
      %1541 = vmatmul.f32.gmra.mxu0 %v1430
      %v1542 = vpop.f32.mrf.mxu0
      %v1543 = vadd.f32 0.0, %v1542
      %1544 = vmatmul.f32.gmra.mxu0 %v1433
      %v1545 = vpop.f32.mrf.mxu0
      %v1546 = vadd.f32 0.0, %v1545
      %1547 = vmatmul.f32.gmra.mxu0 %v1436
      %v1548 = vpop.f32.mrf.mxu0
      %v1549 = vadd.f32 0.0, %v1548
      %1550 = vmatmul.f32.gmra.mxu0 %v1439
      %v1551 = vpop.f32.mrf.mxu0
      %v1552 = vadd.f32 0.0, %v1551
      %1553 = vmatmul.f32.gmra.mxu0 %v1442
      %v1554 = vpop.f32.mrf.mxu0
      %v1555 = vadd.f32 0.0, %v1554
      %1556 = vmatmul.f32.gmra.mxu0 %v1445
      %v1557 = vpop.f32.mrf.mxu0
      %v1558 = vadd.f32 0.0, %v1557
      %1559 = vmatmul.f32.gmra.mxu0 %v1448
      %v1560 = vpop.f32.mrf.mxu0
      %v1561 = vadd.f32 0.0, %v1560
      %1562 = vmatmul.f32.gmra.mxu0 %v1451
      %v1563 = vpop.f32.mrf.mxu0
      %v1564 = vadd.f32 0.0, %v1563
      %1565 = vmatmul.f32.gmra.mxu0 %v1454
      %v1566 = vpop.f32.mrf.mxu0
      %v1567 = vadd.f32 0.0, %v1566
      %1568 = vmatmul.f32.gmra.mxu0 %v1457
      %v1569 = vpop.f32.mrf.mxu0
      %v1570 = vadd.f32 0.0, %v1569
      %1571 = vmatmul.f32.gmra.mxu0 %v1460
      %v1572 = vpop.f32.mrf.mxu0
      %v1573 = vadd.f32 0.0, %v1572
      %1574 = vmatmul.f32.gmra.mxu0 %v1463
      %v1575 = vpop.f32.mrf.mxu0
      %v1576 = vadd.f32 0.0, %v1575
      %1577 = vdwg.mxu0
      %v1578 = vadd.f32 %v1240, %v1483
      %v1579 = vadd.f32 %v1243, %v1486
      %v1580 = vadd.f32 %v1246, %v1489
      %v1581 = vadd.f32 %v1249, %v1492
      %v1582 = vadd.f32 %v1252, %v1495
      %v1583 = vadd.f32 %v1255, %v1498
      %v1584 = vadd.f32 %v1258, %v1501
      %v1585 = vadd.f32 %v1261, %v1504
      %v1586 = vadd.f32 %v1264, %v1507
      %v1587 = vadd.f32 %v1267, %v1510
      %v1588 = vadd.f32 %v1270, %v1513
      %v1589 = vadd.f32 %v1273, %v1516
      %v1590 = vadd.f32 %v1276, %v1519
      %v1591 = vadd.f32 %v1279, %v1522
      %v1592 = vadd.f32 %v1282, %v1525
      %v1593 = vadd.f32 %v1285, %v1528
      %v1594 = vadd.f32 %v1288, %v1531
      %v1595 = vadd.f32 %v1291, %v1534
      %v1596 = vadd.f32 %v1294, %v1537
      %v1597 = vadd.f32 %v1297, %v1540
      %v1598 = vadd.f32 %v1300, %v1543
      %v1599 = vadd.f32 %v1303, %v1546
      %v1600 = vadd.f32 %v1306, %v1549
      %v1601 = vadd.f32 %v1309, %v1552
      %v1602 = vadd.f32 %v1312, %v1555
      %v1603 = vadd.f32 %v1315, %v1558
      %v1604 = vadd.f32 %v1318, %v1561
      %v1605 = vadd.f32 %v1321, %v1564
      %v1606 = vadd.f32 %v1324, %v1567
      %v1607 = vadd.f32 %v1327, %v1570
      %v1608 = vadd.f32 %v1330, %v1573
      %v1609 = vadd.f32 %v1333, %v1576
      %1610 = vst.msk [vmem:[%s300] sm:$0xff] %vm466, %v1578
      %1611 = vst.msk [vmem:[%s300 + $0x8] sm:$0xff] %vm466, %v1579
      %1612 = vst.msk [vmem:[%s300 + $0x10] sm:$0xff] %vm466, %v1580
      %1613 = vst.msk [vmem:[%s300 + $0x18] sm:$0xff] %vm466, %v1581
      %1614 = vst.msk [vmem:[%s300 + $0x20] sm:$0xff] %vm466, %v1582
      %1615 = vst.msk [vmem:[%s300 + $0x28] sm:$0xff] %vm466, %v1583
      %1616 = vst.msk [vmem:[%s300 + $0x30] sm:$0xff] %vm466, %v1584
      %1617 = vst.msk [vmem:[%s300 + $0x38] sm:$0xff] %vm466, %v1585
      %1618 = vst.msk [vmem:[%s300 + $0x40] sm:$0xff] %vm466, %v1586
      %1619 = vst.msk [vmem:[%s300 + $0x48] sm:$0xff] %vm466, %v1587
      %1620 = vst.msk [vmem:[%s300 + $0x50] sm:$0xff] %vm466, %v1588
      %1621 = vst.msk [vmem:[%s300 + $0x58] sm:$0xff] %vm466, %v1589
      %1622 = vst.msk [vmem:[%s300 + $0x60] sm:$0xff] %vm466, %v1590
      %1623 = vst.msk [vmem:[%s300 + $0x68] sm:$0xff] %vm466, %v1591
      %1624 = vst.msk [vmem:[%s300 + $0x70] sm:$0xff] %vm466, %v1592
      %1625 = vst.msk [vmem:[%s300 + $0x78] sm:$0xff] %vm466, %v1593
      %1626 = vst.msk [vmem:[%s300 + $0x80] sm:$0xff] %vm466, %v1594
      %1627 = vst.msk [vmem:[%s300 + $0x88] sm:$0xff] %vm466, %v1595
      %1628 = vst.msk [vmem:[%s300 + $0x90] sm:$0xff] %vm466, %v1596
      %1629 = vst.msk [vmem:[%s300 + $0x98] sm:$0xff] %vm466, %v1597
      %1630 = vst.msk [vmem:[%s300 + $0xa0] sm:$0xff] %vm466, %v1598
      %1631 = vst.msk [vmem:[%s300 + $0xa8] sm:$0xff] %vm466, %v1599
      %1632 = vst.msk [vmem:[%s300 + $0xb0] sm:$0xff] %vm466, %v1600
      %1633 = vst.msk [vmem:[%s300 + $0xb8] sm:$0xff] %vm466, %v1601
      %1634 = vst.msk [vmem:[%s300 + $0xc0] sm:$0xff] %vm466, %v1602
      %1635 = vst.msk [vmem:[%s300 + $0xc8] sm:$0xff] %vm466, %v1603
      %1636 = vst.msk [vmem:[%s300 + $0xd0] sm:$0xff] %vm466, %v1604
      %1637 = vst.msk [vmem:[%s300 + $0xd8] sm:$0xff] %vm466, %v1605
      %1638 = vst.msk [vmem:[%s300 + $0xe0] sm:$0xff] %vm466, %v1606
      %1639 = vst.msk [vmem:[%s300 + $0xe8] sm:$0xff] %vm466, %v1607
      %1640 = vst.msk [vmem:[%s300 + $0xf0] sm:$0xff] %vm466, %v1608
      %1641 = vst.msk [vmem:[%s300 + $0xf8] sm:$0xff] %vm466, %v1609
      %s1642 = smul.u32 32, %s17
      %p1643 = scmp.lt.s32.totalorder %s1642, 63
      %s1644 = scalar_select %p1643, %s1642, 63
      %s1645 = smul.addr %s1644, 8
      %s1646 = scalar_lea.vmem %s6, %s1645
      // Predicated region
      $region45: #{nas201_cell_forward.5} parent=43 // pred_check
        %p1647 = pneg %p176
      $region46: #{nas201_cell_forward.5} parent=43 // pred_check_branch
        %1649 = sbr.rel (%p1647) target = $region48
      $region47: #{nas201_cell_forward.5} parent=43 // pred_region
        %s1650 = smul.u32 32, %s17
      $region48: #{nas201_cell_forward.5} parent=43 // pred_fallthru
        _
    $region44: #{nas201_cell_forward.5} parent=5 // pred_fallthru
      _
    %p1651 = scmp.le.s32.totalorder 2, %s12
    // Predicated region
    $region49: #{nas201_cell_forward.5} parent=5 // pred_check
      %p1652 = pneg %p1651
    $region50: #{nas201_cell_forward.5} parent=5 // pred_check_branch
      %1654 = sbr.rel (%p1652) target = $region52
    $region51: #{nas201_cell_forward.5} parent=5 // pred_region
      %s1655 = ssub.s32 %s12, 2
      // Predicated region
      $region53: #{nas201_cell_forward.5} parent=51 // pred_check
        %p1656 = pneg %p182
      $region54: #{nas201_cell_forward.5} parent=51 // pred_check_branch
        %1658 = sbr.rel (%p1656) target = $region56
      $region55: #{nas201_cell_forward.5} parent=51 // pred_region
        %s1659 = smul.u32 32, %s18
        %p1660 = scmp.lt.s32.totalorder %s1659, 63
        %s1661 = scalar_select %p1660, %s1659, 63
        %s1662 = smul.addr %s1661, 8
        %s1663 = scalar_lea.vmem %s6, %s1662
      $region56: #{nas201_cell_forward.5} parent=51 // pred_fallthru
        _
    $region52: #{nas201_cell_forward.5} parent=5 // pred_fallthru
      _
  $region6: #{nas201_cell_forward.5} parent=0 // loop_footer
    %s16 = sadd.s32 1, %s12
  $region7: #{nas201_cell_forward.5} parent=0 // loop_footer_branch
    %11 = sbr.rel target = $region3
  $region8: #{nas201_cell_forward.5} parent=0 // loop_exit
    _

</llo_original>
